<compile_context>
chip_gen: v5e
topology: v5e:2x2
jax: 0.10.0
libtpu: 0.0.40
codegen_flags: <defaults>
</compile_context>

<pallas_src>
import functools

import jax
import jax.numpy as jnp
from jax import lax
from jax.experimental import pallas as pl
from jax.experimental.pallas import tpu as pltpu


# ------------------------------ Pallas kernel -------------------------------

def basic_block_kernel(x_ref, w1_ref, b1_ref, w2_ref, b2_ref, mask_ref, o_ref,
                       *, H, W):
    """Fused BasicBlock forward for one image.

    x_ref    : (1, (H+8)*(W+4), Cp) f32 -- zero-padded NHWC image, spatially
               flattened; real pixels live at padded rows [4,4+H), cols [2,2+W).
    w1/w2_ref: (9, Cp, Cp) bf16 -- 3x3 taps as matmul matrices, BN scale folded
               into the output-channel columns.
    b1/b2_ref: (1, Cp) f32  -- folded BN bias.
    mask_ref : (M1, 1) f32  -- 1.0 inside the original HxW image, 0.0 on the
               halo (this gives conv2 its zero padding).
    o_ref    : (1, H*(W+4), Cp) f32.
    """
    Wp = W + 4                 # padded width (2 zero cols each side)
    M1 = (H + 4) * Wp          # conv1 slab: padded rows [2, H+6), all cols
    M2 = H * Wp                # conv2 slab: padded rows [4, H+4), all cols
    base = 2 * Wp              # flat offset of each slab's centre tap

    # ---- conv1 (+ folded bn1 scale): 9 shifted bf16 MXU matmuls, f32 acc.
    acc1 = None
    for t in range(9):
        dh, dw = t // 3 - 1, t % 3 - 1
        s = base + dh * Wp + dw                       # static offset
        a = x_ref[0, s:s + M1, :].astype(jnp.bfloat16)
        p = jnp.dot(a, w1_ref[t], preferred_element_type=jnp.float32)
        acc1 = p if acc1 is None else acc1 + p

    # bn1 bias + relu, then zero everything outside the real HxW image so the
    # second conv sees correct zero padding.  y1 stays in VMEM.
    y1 = jnp.maximum(acc1 + b1_ref[...], 0.0) * mask_ref[...]

    # ---- conv2 (+ folded bn2 scale)
    acc2 = None
    for t in range(9):
        dh, dw = t // 3 - 1, t % 3 - 1
        s = base + dh * Wp + dw
        p = jnp.dot(y1[s:s + M2, :].astype(jnp.bfloat16), w2_ref[t],
                    preferred_element_type=jnp.float32)
        acc2 = p if acc2 is None else acc2 + p

    # residual add (exact, f32) + relu
    residual = x_ref[0, 4 * Wp:4 * Wp + M2, :]
    o_ref[0] = jnp.maximum(acc2 + b2_ref[...] + residual, 0.0)


# ------------------------------- JAX wrapper --------------------------------

def _fold_bn_into_conv(w_oihw, gamma, beta, mean, var, cp, eps=1e-5):
    """OIHW conv weight + BN params -> (9, Cp, Cp) bf16 taps and (1, Cp) f32 bias."""
    cout, cin = w_oihw.shape[0], w_oihw.shape[1]
    scale = gamma / jnp.sqrt(var + eps)
    bias = beta - mean * scale
    w = jnp.transpose(w_oihw, (2, 3, 1, 0)) * scale[None, None, None, :]  # (kh,kw,cin,cout)
    w = w.reshape(9, cin, cout)
    w = jnp.pad(w, ((0, 0), (0, cp - cin), (0, cp - cout))).astype(jnp.bfloat16)
    bias = jnp.pad(bias, (0, cp - cout)).astype(jnp.float32)[None, :]
    return w, bias


def basic_block_forward(x_nchw, params):
    """BasicBlock forward. x_nchw: (N, C, H, W) float32, inplanes == planes."""
    N, C, H, W = x_nchw.shape
    Cp = ((C + 127) // 128) * 128          # lane-dense channel padding
    Wp, HP = W + 4, H + 8                  # spatial halo covering both 3x3 convs
    L = HP * Wp
    M1 = (H + 4) * Wp
    M2 = H * Wp

    # NCHW -> NHWC, zero-pad spatially + channels, flatten (H, W) so every
    # 3x3 tap becomes a single contiguous shifted slice inside the kernel.
    x_nhwc = jnp.transpose(x_nchw, (0, 2, 3, 1)).astype(jnp.float32)
    x_pad = jnp.pad(x_nhwc, ((0, 0), (4, 4), (2, 2), (0, Cp - C)))
    x_flat = x_pad.reshape(N, L, Cp)

    w1, b1 = _fold_bn_into_conv(params["w1"], params["g1"], params["be1"],
                                params["m1"], params["v1"], Cp)
    w2, b2 = _fold_bn_into_conv(params["w2"], params["g2"], params["be2"],
                                params["m2"], params["v2"], Cp)

    # Mask over conv1's computed slab: 1 inside the original image, 0 on halo.
    r = jnp.arange(M1)
    pi, pj = r // Wp + 2, r % Wp
    mask = (((pi >= 4) & (pi < 4 + H) & (pj >= 2) & (pj < 2 + W))
            .astype(jnp.float32)[:, None])

    kernel = functools.partial(basic_block_kernel, H=H, W=W)
    out_flat = pl.pallas_call(
        kernel,
        out_shape=jax.ShapeDtypeStruct((N, M2, Cp), jnp.float32),
        grid_spec=pltpu.PrefetchScalarGridSpec(
            num_scalar_prefetch=0,
            grid=(N,),                                     # one image per step
            in_specs=[
                pl.BlockSpec((1, L, Cp), lambda b: (b, 0, 0)),       # x
                pl.BlockSpec((9, Cp, Cp), lambda b: (0, 0, 0)),      # w1 (resident)
                pl.BlockSpec((1, Cp), lambda b: (0, 0)),             # b1
                pl.BlockSpec((9, Cp, Cp), lambda b: (0, 0, 0)),      # w2 (resident)
                pl.BlockSpec((1, Cp), lambda b: (0, 0)),             # b2
                pl.BlockSpec((M1, 1), lambda b: (0, 0)),             # mask
            ],
            out_specs=pl.BlockSpec((1, M2, Cp), lambda b: (b, 0, 0)),
        ),
        compiler_params=pltpu.CompilerParams(
            dimension_semantics=("parallel",),       # shard batch across TCs (v7x)
            vmem_limit_bytes=32 * 1024 * 1024),      # explicit, safe for 64 MiB v7x
    )(x_flat, w1, b1, w2, b2, mask)

    out = out_flat.reshape(N, H, Wp, Cp)[:, :, 2:2 + W, :C]     # drop halo/pad
    return jnp.transpose(out, (0, 3, 1, 2))                     # NHWC -> NCHW


# ----------------------------- references -----------------------------------

def reference_forward(x, params, eps=1e-5):
    """Pure-f32 reference matching the PyTorch module (inference BN)."""
    def conv(a, w):
        return lax.conv_general_dilated(
            a, w, window_strides=(1, 1), padding="SAME",
            dimension_numbers=("NCHW", "OIHW", "NCHW"))

    def bn(a, g, b, m, v):
        return ((a - m[None, :, None, None]) /
                jnp.sqrt(v + eps)[None, :, None, None] *
                g[None, :, None, None] + b[None, :, None, None])

    out = jnp.maximum(bn(conv(x, params["w1"]), params["g1"], params["be1"],
                         params["m1"], params["v1"]), 0.0)
    out = bn(conv(out, params["w2"]), params["g2"], params["be2"],
             params["m2"], params["v2"])
    return jnp.maximum(out + x, 0.0)


def reference_forward_mixed(x, params, eps=1e-5):
    """Same math, but conv operands rounded to bf16 like the kernel's MXU inputs."""
    def conv_bf16(a, w):
        return lax.conv_general_dilated(
            a.astype(jnp.bfloat16), w.astype(jnp.bfloat16),
            window_strides=(1, 1), padding="SAME",
            dimension_numbers=("NCHW", "OIHW", "NCHW"),
            preferred_element_type=jnp.float32)

    s1 = params["g1"] / jnp.sqrt(params["v1"] + eps)
    s2 = params["g2"] / jnp.sqrt(params["v2"] + eps)
    b1 = params["be1"] - params["m1"] * s1
    b2 = params["be2"] - params["m2"] * s2
    w1 = params["w1"] * s1[:, None, None, None]
    w2 = params["w2"] * s2[:, None, None, None]
    y1 = jnp.maximum(conv_bf16(x, w1) + b1[None, :, None, None], 0.0)
    return jnp.maximum(conv_bf16(y1, w2) + b2[None, :, None, None] + x, 0.0)


# ---------------------------------- main -------------------------------------

if __name__ == "__main__":
    N, C, H, W = 2, 4, 16, 16            # inplanes == planes == 4, stride = 1
    key = jax.random.PRNGKey(0)
    ks = jax.random.split(key, 8)

    x = jax.random.normal(ks[0], (N, C, H, W), dtype=jnp.float32)

    params = {
        # conv weights, PyTorch OIHW layout
        "w1": 0.2 * jax.random.normal(ks[1], (C, C, 3, 3), dtype=jnp.float32),
        "w2": 0.2 * jax.random.normal(ks[2], (C, C, 3, 3), dtype=jnp.float32),
        # bn1 params (inference-style)
        "g1": 1.0 + 0.1 * jnp.arange(C, dtype=jnp.float32),
        "be1": 0.05 * jnp.arange(C, dtype=jnp.float32),
        "m1": 0.1 * jax.random.normal(ks[3], (C,), dtype=jnp.float32),
        "v1": 1.0 + 0.1 * jnp.abs(jax.random.normal(ks[4], (C,), dtype=jnp.float32)),
        # bn2 params
        "g2": 1.0 - 0.05 * jnp.arange(C, dtype=jnp.float32),
        "be2": -0.03 * jnp.arange(C, dtype=jnp.float32),
        "m2": 0.1 * jax.random.normal(ks[5], (C,), dtype=jnp.float32),
        "v2": 1.0 + 0.1 * jnp.abs(jax.random.normal(ks[6], (C,), dtype=jnp.float32)),
    }

    out = jax.block_until_ready(jax.jit(basic_block_forward)(x, params))
    ref_mixed = jax.block_until_ready(reference_forward_mixed(x, params))
    ref_f32 = jax.block_until_ready(reference_forward(x, params))

    assert out.shape == (N, C, H, W), out.shape
    # Tight check vs. a reference with identically bf16-rounded MXU operands
    # (validates the kernel math / indexing exactly).
    err_mixed = float(jnp.max(jnp.abs(out - ref_mixed)))
    assert err_mixed < 1e-2, f"mixed-precision max abs err = {err_mixed}"
    # Loose check vs. the pure-f32 reference (bf16 MXU rounding tolerance).
    err_f32 = float(jnp.max(jnp.abs(out - ref_f32)))
    assert err_f32 < 1e-1, f"f32 max abs err = {err_f32}"

    print("KERNEL_OK")
</pallas_src>

<mosaic_0001>
module attributes {stable_mosaic.version = 11 : i64} {
  func.func @basic_block_kernel(%arg0: i32, %arg1: memref<1x480x128xf32, #tpu.memory_space<vmem>>, %arg2: memref<9x128x128xbf16, #tpu.memory_space<vmem>>, %arg3: memref<1x128xf32, #tpu.memory_space<vmem>>, %arg4: memref<9x128x128xbf16, #tpu.memory_space<vmem>>, %arg5: memref<1x128xf32, #tpu.memory_space<vmem>>, %arg6: memref<400x1xf32, #tpu.memory_space<vmem>>, %arg7: memref<1x320x128xf32, #tpu.memory_space<vmem>>) attributes {dimension_semantics = [#tpu.dimension_semantics<parallel>], iteration_bounds = array<i64: 2>, scalar_prefetch = 0 : i64, scratch_operands = 0 : i64, tpu.core_type = #tpu.core_type<tc>, window_params = [{transform_indices = @transform_0, window_bounds = array<i64: 1, 480, 128>}, {pipeline_mode = #tpu.pipeline_mode<synchronous>, transform_indices = @transform_1, window_bounds = array<i64: 9, 128, 128>}, {pipeline_mode = #tpu.pipeline_mode<synchronous>, transform_indices = @transform_2, window_bounds = array<i64: 1, 128>}, {pipeline_mode = #tpu.pipeline_mode<synchronous>, transform_indices = @transform_3, window_bounds = array<i64: 9, 128, 128>}, {pipeline_mode = #tpu.pipeline_mode<synchronous>, transform_indices = @transform_4, window_bounds = array<i64: 1, 128>}, {pipeline_mode = #tpu.pipeline_mode<synchronous>, transform_indices = @transform_5, window_bounds = array<i64: 400, 1>}, {transform_indices = @transform_6, window_bounds = array<i64: 1, 320, 128>}]} {
    %c0 = arith.constant 0 : index
    %c19 = arith.constant 19 : index
    %c0_0 = arith.constant 0 : index
    %0 = vector.load %arg1[%c0, %c19, %c0_0] : memref<1x480x128xf32, #tpu.memory_space<vmem>>, vector<1x400x128xf32>
    %1 = vector.shape_cast %0 : vector<1x400x128xf32> to vector<400x128xf32>
    %2 = arith.truncf %1 : vector<400x128xf32> to vector<400x128xbf16>
    %c0_1 = arith.constant 0 : index
    %c0_2 = arith.constant 0 : index
    %c0_3 = arith.constant 0 : index
    %3 = vector.load %arg2[%c0_1, %c0_2, %c0_3] : memref<9x128x128xbf16, #tpu.memory_space<vmem>>, vector<1x128x128xbf16>
    %4 = vector.shape_cast %3 : vector<1x128x128xbf16> to vector<128x128xbf16>
    %cst = arith.constant dense<0.000000e+00> : vector<400x128xf32>
    %5 = tpu.matmul %2, %4, %cst {dimension_numbers = #tpu.dot_dimension_numbers<[1], [0], [0], [1], [0, 0, 1, 1], [], []>} : vector<400x128xbf16>, vector<128x128xbf16>, vector<400x128xf32> -> vector<400x128xf32>
    %c0_4 = arith.constant 0 : index
    %c20 = arith.constant 20 : index
    %c0_5 = arith.constant 0 : index
    %6 = vector.load %arg1[%c0_4, %c20, %c0_5] : memref<1x480x128xf32, #tpu.memory_space<vmem>>, vector<1x400x128xf32>
    %7 = vector.shape_cast %6 : vector<1x400x128xf32> to vector<400x128xf32>
    %8 = arith.truncf %7 : vector<400x128xf32> to vector<400x128xbf16>
    %c1 = arith.constant 1 : index
    %c0_6 = arith.constant 0 : index
    %c0_7 = arith.constant 0 : index
    %9 = vector.load %arg2[%c1, %c0_6, %c0_7] : memref<9x128x128xbf16, #tpu.memory_space<vmem>>, vector<1x128x128xbf16>
    %10 = vector.shape_cast %9 : vector<1x128x128xbf16> to vector<128x128xbf16>
    %cst_8 = arith.constant dense<0.000000e+00> : vector<400x128xf32>
    %11 = tpu.matmul %8, %10, %cst_8 {dimension_numbers = #tpu.dot_dimension_numbers<[1], [0], [0], [1], [0, 0, 1, 1], [], []>} : vector<400x128xbf16>, vector<128x128xbf16>, vector<400x128xf32> -> vector<400x128xf32>
    %12 = arith.addf %5, %11 : vector<400x128xf32>
    %c0_9 = arith.constant 0 : index
    %c21 = arith.constant 21 : index
    %c0_10 = arith.constant 0 : index
    %13 = vector.load %arg1[%c0_9, %c21, %c0_10] : memref<1x480x128xf32, #tpu.memory_space<vmem>>, vector<1x400x128xf32>
    %14 = vector.shape_cast %13 : vector<1x400x128xf32> to vector<400x128xf32>
    %15 = arith.truncf %14 : vector<400x128xf32> to vector<400x128xbf16>
    %c2 = arith.constant 2 : index
    %c0_11 = arith.constant 0 : index
    %c0_12 = arith.constant 0 : index
    %16 = vector.load %arg2[%c2, %c0_11, %c0_12] : memref<9x128x128xbf16, #tpu.memory_space<vmem>>, vector<1x128x128xbf16>
    %17 = vector.shape_cast %16 : vector<1x128x128xbf16> to vector<128x128xbf16>
    %cst_13 = arith.constant dense<0.000000e+00> : vector<400x128xf32>
    %18 = tpu.matmul %15, %17, %cst_13 {dimension_numbers = #tpu.dot_dimension_numbers<[1], [0], [0], [1], [0, 0, 1, 1], [], []>} : vector<400x128xbf16>, vector<128x128xbf16>, vector<400x128xf32> -> vector<400x128xf32>
    %19 = arith.addf %12, %18 : vector<400x128xf32>
    %c0_14 = arith.constant 0 : index
    %c39 = arith.constant 39 : index
    %c0_15 = arith.constant 0 : index
    %20 = vector.load %arg1[%c0_14, %c39, %c0_15] : memref<1x480x128xf32, #tpu.memory_space<vmem>>, vector<1x400x128xf32>
    %21 = vector.shape_cast %20 : vector<1x400x128xf32> to vector<400x128xf32>
    %22 = arith.truncf %21 : vector<400x128xf32> to vector<400x128xbf16>
    %c3 = arith.constant 3 : index
    %c0_16 = arith.constant 0 : index
    %c0_17 = arith.constant 0 : index
    %23 = vector.load %arg2[%c3, %c0_16, %c0_17] : memref<9x128x128xbf16, #tpu.memory_space<vmem>>, vector<1x128x128xbf16>
    %24 = vector.shape_cast %23 : vector<1x128x128xbf16> to vector<128x128xbf16>
    %cst_18 = arith.constant dense<0.000000e+00> : vector<400x128xf32>
    %25 = tpu.matmul %22, %24, %cst_18 {dimension_numbers = #tpu.dot_dimension_numbers<[1], [0], [0], [1], [0, 0, 1, 1], [], []>} : vector<400x128xbf16>, vector<128x128xbf16>, vector<400x128xf32> -> vector<400x128xf32>
    %26 = arith.addf %19, %25 : vector<400x128xf32>
    %c0_19 = arith.constant 0 : index
    %c40 = arith.constant 40 : index
    %c0_20 = arith.constant 0 : index
    %27 = vector.load %arg1[%c0_19, %c40, %c0_20] : memref<1x480x128xf32, #tpu.memory_space<vmem>>, vector<1x400x128xf32>
    %28 = vector.shape_cast %27 : vector<1x400x128xf32> to vector<400x128xf32>
    %29 = arith.truncf %28 : vector<400x128xf32> to vector<400x128xbf16>
    %c4 = arith.constant 4 : index
    %c0_21 = arith.constant 0 : index
    %c0_22 = arith.constant 0 : index
    %30 = vector.load %arg2[%c4, %c0_21, %c0_22] : memref<9x128x128xbf16, #tpu.memory_space<vmem>>, vector<1x128x128xbf16>
    %31 = vector.shape_cast %30 : vector<1x128x128xbf16> to vector<128x128xbf16>
    %cst_23 = arith.constant dense<0.000000e+00> : vector<400x128xf32>
    %32 = tpu.matmul %29, %31, %cst_23 {dimension_numbers = #tpu.dot_dimension_numbers<[1], [0], [0], [1], [0, 0, 1, 1], [], []>} : vector<400x128xbf16>, vector<128x128xbf16>, vector<400x128xf32> -> vector<400x128xf32>
    %33 = arith.addf %26, %32 : vector<400x128xf32>
    %c0_24 = arith.constant 0 : index
    %c41 = arith.constant 41 : index
    %c0_25 = arith.constant 0 : index
    %34 = vector.load %arg1[%c0_24, %c41, %c0_25] : memref<1x480x128xf32, #tpu.memory_space<vmem>>, vector<1x400x128xf32>
    %35 = vector.shape_cast %34 : vector<1x400x128xf32> to vector<400x128xf32>
    %36 = arith.truncf %35 : vector<400x128xf32> to vector<400x128xbf16>
    %c5 = arith.constant 5 : index
    %c0_26 = arith.constant 0 : index
    %c0_27 = arith.constant 0 : index
    %37 = vector.load %arg2[%c5, %c0_26, %c0_27] : memref<9x128x128xbf16, #tpu.memory_space<vmem>>, vector<1x128x128xbf16>
    %38 = vector.shape_cast %37 : vector<1x128x128xbf16> to vector<128x128xbf16>
    %cst_28 = arith.constant dense<0.000000e+00> : vector<400x128xf32>
    %39 = tpu.matmul %36, %38, %cst_28 {dimension_numbers = #tpu.dot_dimension_numbers<[1], [0], [0], [1], [0, 0, 1, 1], [], []>} : vector<400x128xbf16>, vector<128x128xbf16>, vector<400x128xf32> -> vector<400x128xf32>
    %40 = arith.addf %33, %39 : vector<400x128xf32>
    %c0_29 = arith.constant 0 : index
    %c59 = arith.constant 59 : index
    %c0_30 = arith.constant 0 : index
    %41 = vector.load %arg1[%c0_29, %c59, %c0_30] : memref<1x480x128xf32, #tpu.memory_space<vmem>>, vector<1x400x128xf32>
    %42 = vector.shape_cast %41 : vector<1x400x128xf32> to vector<400x128xf32>
    %43 = arith.truncf %42 : vector<400x128xf32> to vector<400x128xbf16>
    %c6 = arith.constant 6 : index
    %c0_31 = arith.constant 0 : index
    %c0_32 = arith.constant 0 : index
    %44 = vector.load %arg2[%c6, %c0_31, %c0_32] : memref<9x128x128xbf16, #tpu.memory_space<vmem>>, vector<1x128x128xbf16>
    %45 = vector.shape_cast %44 : vector<1x128x128xbf16> to vector<128x128xbf16>
    %cst_33 = arith.constant dense<0.000000e+00> : vector<400x128xf32>
    %46 = tpu.matmul %43, %45, %cst_33 {dimension_numbers = #tpu.dot_dimension_numbers<[1], [0], [0], [1], [0, 0, 1, 1], [], []>} : vector<400x128xbf16>, vector<128x128xbf16>, vector<400x128xf32> -> vector<400x128xf32>
    %47 = arith.addf %40, %46 : vector<400x128xf32>
    %c0_34 = arith.constant 0 : index
    %c60 = arith.constant 60 : index
    %c0_35 = arith.constant 0 : index
    %48 = vector.load %arg1[%c0_34, %c60, %c0_35] : memref<1x480x128xf32, #tpu.memory_space<vmem>>, vector<1x400x128xf32>
    %49 = vector.shape_cast %48 : vector<1x400x128xf32> to vector<400x128xf32>
    %50 = arith.truncf %49 : vector<400x128xf32> to vector<400x128xbf16>
    %c7 = arith.constant 7 : index
    %c0_36 = arith.constant 0 : index
    %c0_37 = arith.constant 0 : index
    %51 = vector.load %arg2[%c7, %c0_36, %c0_37] : memref<9x128x128xbf16, #tpu.memory_space<vmem>>, vector<1x128x128xbf16>
    %52 = vector.shape_cast %51 : vector<1x128x128xbf16> to vector<128x128xbf16>
    %cst_38 = arith.constant dense<0.000000e+00> : vector<400x128xf32>
    %53 = tpu.matmul %50, %52, %cst_38 {dimension_numbers = #tpu.dot_dimension_numbers<[1], [0], [0], [1], [0, 0, 1, 1], [], []>} : vector<400x128xbf16>, vector<128x128xbf16>, vector<400x128xf32> -> vector<400x128xf32>
    %54 = arith.addf %47, %53 : vector<400x128xf32>
    %c0_39 = arith.constant 0 : index
    %c61 = arith.constant 61 : index
    %c0_40 = arith.constant 0 : index
    %55 = vector.load %arg1[%c0_39, %c61, %c0_40] : memref<1x480x128xf32, #tpu.memory_space<vmem>>, vector<1x400x128xf32>
    %56 = vector.shape_cast %55 : vector<1x400x128xf32> to vector<400x128xf32>
    %57 = arith.truncf %56 : vector<400x128xf32> to vector<400x128xbf16>
    %c8 = arith.constant 8 : index
    %c0_41 = arith.constant 0 : index
    %c0_42 = arith.constant 0 : index
    %58 = vector.load %arg2[%c8, %c0_41, %c0_42] : memref<9x128x128xbf16, #tpu.memory_space<vmem>>, vector<1x128x128xbf16>
    %59 = vector.shape_cast %58 : vector<1x128x128xbf16> to vector<128x128xbf16>
    %cst_43 = arith.constant dense<0.000000e+00> : vector<400x128xf32>
    %60 = tpu.matmul %57, %59, %cst_43 {dimension_numbers = #tpu.dot_dimension_numbers<[1], [0], [0], [1], [0, 0, 1, 1], [], []>} : vector<400x128xbf16>, vector<128x128xbf16>, vector<400x128xf32> -> vector<400x128xf32>
    %61 = arith.addf %54, %60 : vector<400x128xf32>
    %c0_44 = arith.constant 0 : index
    %c0_45 = arith.constant 0 : index
    %62 = vector.load %arg3[%c0_44, %c0_45] : memref<1x128xf32, #tpu.memory_space<vmem>>, vector<1x128xf32>
    %63 = vector.broadcast %62 : vector<1x128xf32> to vector<400x128xf32>
    %64 = arith.addf %61, %63 : vector<400x128xf32>
    %cst_46 = arith.constant 0.000000e+00 : f32
    %65 = vector.broadcast %cst_46 : f32 to vector<400x128xf32>
    %66 = arith.maximumf %64, %65 : vector<400x128xf32>
    %c0_47 = arith.constant 0 : index
    %c0_48 = arith.constant 0 : index
    %67 = vector.load %arg6[%c0_47, %c0_48] : memref<400x1xf32, #tpu.memory_space<vmem>>, vector<400x1xf32>
    %68 = vector.broadcast %67 : vector<400x1xf32> to vector<400x128xf32>
    %69 = arith.mulf %66, %68 : vector<400x128xf32>
    %70 = vector.extract_strided_slice %69 {offsets = [19, 0], sizes = [320, 128], strides = [1, 1]} : vector<400x128xf32> to vector<320x128xf32>
    %71 = arith.truncf %70 : vector<320x128xf32> to vector<320x128xbf16>
    %c0_49 = arith.constant 0 : index
    %c0_50 = arith.constant 0 : index
    %c0_51 = arith.constant 0 : index
    %72 = vector.load %arg4[%c0_49, %c0_50, %c0_51] : memref<9x128x128xbf16, #tpu.memory_space<vmem>>, vector<1x128x128xbf16>
    %73 = vector.shape_cast %72 : vector<1x128x128xbf16> to vector<128x128xbf16>
    %cst_52 = arith.constant dense<0.000000e+00> : vector<320x128xf32>
    %74 = tpu.matmul %71, %73, %cst_52 {dimension_numbers = #tpu.dot_dimension_numbers<[1], [0], [0], [1], [0, 0, 1, 1], [], []>} : vector<320x128xbf16>, vector<128x128xbf16>, vector<320x128xf32> -> vector<320x128xf32>
    %75 = vector.extract_strided_slice %69 {offsets = [20, 0], sizes = [320, 128], strides = [1, 1]} : vector<400x128xf32> to vector<320x128xf32>
    %76 = arith.truncf %75 : vector<320x128xf32> to vector<320x128xbf16>
    %c1_53 = arith.constant 1 : index
    %c0_54 = arith.constant 0 : index
    %c0_55 = arith.constant 0 : index
    %77 = vector.load %arg4[%c1_53, %c0_54, %c0_55] : memref<9x128x128xbf16, #tpu.memory_space<vmem>>, vector<1x128x128xbf16>
    %78 = vector.shape_cast %77 : vector<1x128x128xbf16> to vector<128x128xbf16>
    %cst_56 = arith.constant dense<0.000000e+00> : vector<320x128xf32>
    %79 = tpu.matmul %76, %78, %cst_56 {dimension_numbers = #tpu.dot_dimension_numbers<[1], [0], [0], [1], [0, 0, 1, 1], [], []>} : vector<320x128xbf16>, vector<128x128xbf16>, vector<320x128xf32> -> vector<320x128xf32>
    %80 = arith.addf %74, %79 : vector<320x128xf32>
    %81 = vector.extract_strided_slice %69 {offsets = [21, 0], sizes = [320, 128], strides = [1, 1]} : vector<400x128xf32> to vector<320x128xf32>
    %82 = arith.truncf %81 : vector<320x128xf32> to vector<320x128xbf16>
    %c2_57 = arith.constant 2 : index
    %c0_58 = arith.constant 0 : index
    %c0_59 = arith.constant 0 : index
    %83 = vector.load %arg4[%c2_57, %c0_58, %c0_59] : memref<9x128x128xbf16, #tpu.memory_space<vmem>>, vector<1x128x128xbf16>
    %84 = vector.shape_cast %83 : vector<1x128x128xbf16> to vector<128x128xbf16>
    %cst_60 = arith.constant dense<0.000000e+00> : vector<320x128xf32>
    %85 = tpu.matmul %82, %84, %cst_60 {dimension_numbers = #tpu.dot_dimension_numbers<[1], [0], [0], [1], [0, 0, 1, 1], [], []>} : vector<320x128xbf16>, vector<128x128xbf16>, vector<320x128xf32> -> vector<320x128xf32>
    %86 = arith.addf %80, %85 : vector<320x128xf32>
    %87 = vector.extract_strided_slice %69 {offsets = [39, 0], sizes = [320, 128], strides = [1, 1]} : vector<400x128xf32> to vector<320x128xf32>
    %88 = arith.truncf %87 : vector<320x128xf32> to vector<320x128xbf16>
    %c3_61 = arith.constant 3 : index
    %c0_62 = arith.constant 0 : index
    %c0_63 = arith.constant 0 : index
    %89 = vector.load %arg4[%c3_61, %c0_62, %c0_63] : memref<9x128x128xbf16, #tpu.memory_space<vmem>>, vector<1x128x128xbf16>
    %90 = vector.shape_cast %89 : vector<1x128x128xbf16> to vector<128x128xbf16>
    %cst_64 = arith.constant dense<0.000000e+00> : vector<320x128xf32>
    %91 = tpu.matmul %88, %90, %cst_64 {dimension_numbers = #tpu.dot_dimension_numbers<[1], [0], [0], [1], [0, 0, 1, 1], [], []>} : vector<320x128xbf16>, vector<128x128xbf16>, vector<320x128xf32> -> vector<320x128xf32>
    %92 = arith.addf %86, %91 : vector<320x128xf32>
    %93 = vector.extract_strided_slice %69 {offsets = [40, 0], sizes = [320, 128], strides = [1, 1]} : vector<400x128xf32> to vector<320x128xf32>
    %94 = arith.truncf %93 : vector<320x128xf32> to vector<320x128xbf16>
    %c4_65 = arith.constant 4 : index
    %c0_66 = arith.constant 0 : index
    %c0_67 = arith.constant 0 : index
    %95 = vector.load %arg4[%c4_65, %c0_66, %c0_67] : memref<9x128x128xbf16, #tpu.memory_space<vmem>>, vector<1x128x128xbf16>
    %96 = vector.shape_cast %95 : vector<1x128x128xbf16> to vector<128x128xbf16>
    %cst_68 = arith.constant dense<0.000000e+00> : vector<320x128xf32>
    %97 = tpu.matmul %94, %96, %cst_68 {dimension_numbers = #tpu.dot_dimension_numbers<[1], [0], [0], [1], [0, 0, 1, 1], [], []>} : vector<320x128xbf16>, vector<128x128xbf16>, vector<320x128xf32> -> vector<320x128xf32>
    %98 = arith.addf %92, %97 : vector<320x128xf32>
    %99 = vector.extract_strided_slice %69 {offsets = [41, 0], sizes = [320, 128], strides = [1, 1]} : vector<400x128xf32> to vector<320x128xf32>
    %100 = arith.truncf %99 : vector<320x128xf32> to vector<320x128xbf16>
    %c5_69 = arith.constant 5 : index
    %c0_70 = arith.constant 0 : index
    %c0_71 = arith.constant 0 : index
    %101 = vector.load %arg4[%c5_69, %c0_70, %c0_71] : memref<9x128x128xbf16, #tpu.memory_space<vmem>>, vector<1x128x128xbf16>
    %102 = vector.shape_cast %101 : vector<1x128x128xbf16> to vector<128x128xbf16>
    %cst_72 = arith.constant dense<0.000000e+00> : vector<320x128xf32>
    %103 = tpu.matmul %100, %102, %cst_72 {dimension_numbers = #tpu.dot_dimension_numbers<[1], [0], [0], [1], [0, 0, 1, 1], [], []>} : vector<320x128xbf16>, vector<128x128xbf16>, vector<320x128xf32> -> vector<320x128xf32>
    %104 = arith.addf %98, %103 : vector<320x128xf32>
    %105 = vector.extract_strided_slice %69 {offsets = [59, 0], sizes = [320, 128], strides = [1, 1]} : vector<400x128xf32> to vector<320x128xf32>
    %106 = arith.truncf %105 : vector<320x128xf32> to vector<320x128xbf16>
    %c6_73 = arith.constant 6 : index
    %c0_74 = arith.constant 0 : index
    %c0_75 = arith.constant 0 : index
    %107 = vector.load %arg4[%c6_73, %c0_74, %c0_75] : memref<9x128x128xbf16, #tpu.memory_space<vmem>>, vector<1x128x128xbf16>
    %108 = vector.shape_cast %107 : vector<1x128x128xbf16> to vector<128x128xbf16>
    %cst_76 = arith.constant dense<0.000000e+00> : vector<320x128xf32>
    %109 = tpu.matmul %106, %108, %cst_76 {dimension_numbers = #tpu.dot_dimension_numbers<[1], [0], [0], [1], [0, 0, 1, 1], [], []>} : vector<320x128xbf16>, vector<128x128xbf16>, vector<320x128xf32> -> vector<320x128xf32>
    %110 = arith.addf %104, %109 : vector<320x128xf32>
    %111 = vector.extract_strided_slice %69 {offsets = [60, 0], sizes = [320, 128], strides = [1, 1]} : vector<400x128xf32> to vector<320x128xf32>
    %112 = arith.truncf %111 : vector<320x128xf32> to vector<320x128xbf16>
    %c7_77 = arith.constant 7 : index
    %c0_78 = arith.constant 0 : index
    %c0_79 = arith.constant 0 : index
    %113 = vector.load %arg4[%c7_77, %c0_78, %c0_79] : memref<9x128x128xbf16, #tpu.memory_space<vmem>>, vector<1x128x128xbf16>
    %114 = vector.shape_cast %113 : vector<1x128x128xbf16> to vector<128x128xbf16>
    %cst_80 = arith.constant dense<0.000000e+00> : vector<320x128xf32>
    %115 = tpu.matmul %112, %114, %cst_80 {dimension_numbers = #tpu.dot_dimension_numbers<[1], [0], [0], [1], [0, 0, 1, 1], [], []>} : vector<320x128xbf16>, vector<128x128xbf16>, vector<320x128xf32> -> vector<320x128xf32>
    %116 = arith.addf %110, %115 : vector<320x128xf32>
    %117 = vector.extract_strided_slice %69 {offsets = [61, 0], sizes = [320, 128], strides = [1, 1]} : vector<400x128xf32> to vector<320x128xf32>
    %118 = arith.truncf %117 : vector<320x128xf32> to vector<320x128xbf16>
    %c8_81 = arith.constant 8 : index
    %c0_82 = arith.constant 0 : index
    %c0_83 = arith.constant 0 : index
    %119 = vector.load %arg4[%c8_81, %c0_82, %c0_83] : memref<9x128x128xbf16, #tpu.memory_space<vmem>>, vector<1x128x128xbf16>
    %120 = vector.shape_cast %119 : vector<1x128x128xbf16> to vector<128x128xbf16>
    %cst_84 = arith.constant dense<0.000000e+00> : vector<320x128xf32>
    %121 = tpu.matmul %118, %120, %cst_84 {dimension_numbers = #tpu.dot_dimension_numbers<[1], [0], [0], [1], [0, 0, 1, 1], [], []>} : vector<320x128xbf16>, vector<128x128xbf16>, vector<320x128xf32> -> vector<320x128xf32>
    %122 = arith.addf %116, %121 : vector<320x128xf32>
    %c0_85 = arith.constant 0 : index
    %c80 = arith.constant 80 : index
    %c0_86 = arith.constant 0 : index
    %123 = vector.load %arg1[%c0_85, %c80, %c0_86] : memref<1x480x128xf32, #tpu.memory_space<vmem>>, vector<1x320x128xf32>
    %124 = vector.shape_cast %123 : vector<1x320x128xf32> to vector<320x128xf32>
    %c0_87 = arith.constant 0 : index
    %c0_88 = arith.constant 0 : index
    %125 = vector.load %arg5[%c0_87, %c0_88] : memref<1x128xf32, #tpu.memory_space<vmem>>, vector<1x128xf32>
    %126 = vector.broadcast %125 : vector<1x128xf32> to vector<320x128xf32>
    %127 = arith.addf %122, %126 : vector<320x128xf32>
    %128 = arith.addf %127, %124 : vector<320x128xf32>
    %cst_89 = arith.constant 0.000000e+00 : f32
    %129 = vector.broadcast %cst_89 : f32 to vector<320x128xf32>
    %130 = arith.maximumf %128, %129 : vector<320x128xf32>
    %c0_90 = arith.constant 0 : index
    %c0_91 = arith.constant 0 : index
    %c0_92 = arith.constant 0 : index
    %131 = vector.load %arg7[%c0_90, %c0_91, %c0_92] : memref<1x320x128xf32, #tpu.memory_space<vmem>>, vector<1x320x128xf32>
    %132 = vector.shape_cast %131 : vector<1x320x128xf32> to vector<320x128xf32>
    %133 = vector.shape_cast %130 : vector<320x128xf32> to vector<1x320x128xf32>
    tpu.vector_store %arg7[%c0_90, %c0_91, %c0_92], %133 {strides = array<i32>} : memref<1x320x128xf32, #tpu.memory_space<vmem>>, vector<1x320x128xf32>,
    return
  }
  func.func @transform_0(%arg0: i32) -> (i32, i32, i32) {
    %c0_i32 = arith.constant 0 : i32
    %c0_i32_0 = arith.constant 0 : i32
    %c0_i32_1 = arith.constant 0 : i32
    return %arg0, %c0_i32, %c0_i32_0 : i32, i32, i32
  }
  func.func @transform_1(%arg0: i32) -> (i32, i32, i32) {
    %c0_i32 = arith.constant 0 : i32
    %c0_i32_0 = arith.constant 0 : i32
    %c0_i32_1 = arith.constant 0 : i32
    %c0_i32_2 = arith.constant 0 : i32
    return %c0_i32, %c0_i32_0, %c0_i32_1 : i32, i32, i32
  }
  func.func @transform_2(%arg0: i32) -> (i32, i32) {
    %c0_i32 = arith.constant 0 : i32
    %c0_i32_0 = arith.constant 0 : i32
    %c0_i32_1 = arith.constant 0 : i32
    return %c0_i32, %c0_i32_0 : i32, i32
  }
  func.func @transform_3(%arg0: i32) -> (i32, i32, i32) {
    %c0_i32 = arith.constant 0 : i32
    %c0_i32_0 = arith.constant 0 : i32
    %c0_i32_1 = arith.constant 0 : i32
    %c0_i32_2 = arith.constant 0 : i32
    return %c0_i32, %c0_i32_0, %c0_i32_1 : i32, i32, i32
  }
  func.func @transform_4(%arg0: i32) -> (i32, i32) {
    %c0_i32 = arith.constant 0 : i32
    %c0_i32_0 = arith.constant 0 : i32
    %c0_i32_1 = arith.constant 0 : i32
    return %c0_i32, %c0_i32_0 : i32, i32
  }
  func.func @transform_5(%arg0: i32) -> (i32, i32) {
    %c0_i32 = arith.constant 0 : i32
    %c0_i32_0 = arith.constant 0 : i32
    %c0_i32_1 = arith.constant 0 : i32
    return %c0_i32, %c0_i32_0 : i32, i32
  }
  func.func @transform_6(%arg0: i32) -> (i32, i32, i32) {
    %c0_i32 = arith.constant 0 : i32
    %c0_i32_0 = arith.constant 0 : i32
    %c0_i32_1 = arith.constant 0 : i32
    return %arg0, %c0_i32, %c0_i32_0 : i32, i32, i32
  }
}

</mosaic_0001>

<llo_original>
// kernel: basic_block_forward.1
$region0: #{basic_block_forward.1}
  #allocation0 [shape = 'u32[]', space=smem, size = 0x4, offset = 0x4, fixed_abs, tag = 'smem constant byte address 0x4 - core index']
  #allocation1 [shape = 'u32[72,128]{1,0:T(1,128)}', space=vmem, size = 0x9000, scoped, tag = 'internal scratch']
  %s0 = inlined_call_operand.vmem [shape: f32[2,480,128], index: 0, kind: input, shape index: {}]
  %s1 = inlined_call_operand.vmem [shape: bf16[9,128,128], index: 1, kind: input, shape index: {}]
  %s2 = inlined_call_operand.vmem [shape: f32[1,128], index: 2, kind: input, shape index: {}]
  %s3 = inlined_call_operand.vmem [shape: bf16[9,128,128], index: 3, kind: input, shape index: {}]
  %s4 = inlined_call_operand.vmem [shape: f32[1,128], index: 4, kind: input, shape index: {}]
  %s5 = inlined_call_operand.vmem [shape: f32[400,1], index: 5, kind: input, shape index: {}]
  %s6 = inlined_call_operand.vmem [shape: f32[2,320,128], index: 6, kind: output, shape index: {}]
  %s7 = sld [smem:[#allocation0]]
  $region57: #{basic_block_forward.1} parent=0
    _
  %s9 = ssub.s32 1, %s7
  %s10 = scalar_select 0, %s9, %s7
  loop: start=0, step=1, limit=4
  $region2: #{basic_block_forward.1} parent=0 // loop_pre_header
    _
  $region3: #{basic_block_forward.1} parent=0 // loop_header
    %s12 = sphi 0, %s16
    %p13 = scmp.ge.s32.totalorder %s12, 4
    %s22 = sphi 0, %s24
    %s25 = sphi 0, %s22
    %s26 = sphi 0, %s25
    %s42 = sphi 0, %s26
    %s46 = sphi 0, %s46
    %s48 = sphi 0, %s46
    %s49 = sphi 0, %s48
    %s63 = sphi 0, %s49
    %s67 = sphi 0, %s67
    %s69 = sphi 0, %s67
    %s70 = sphi 0, %s69
    %s84 = sphi 0, %s70
    %s88 = sphi 0, %s88
    %s90 = sphi 0, %s88
    %s91 = sphi 0, %s90
    %s105 = sphi 0, %s91
    %s109 = sphi 0, %s109
    %s111 = sphi 0, %s109
    %s112 = sphi 0, %s111
    %s126 = sphi 0, %s112
    %s130 = sphi 0, %s130
    %s132 = sphi 0, %s130
    %s133 = sphi 0, %s132
    %s147 = sphi 0, %s133
    %s153 = sphi 0, %s155
    %s156 = sphi 0, %s153
    %s157 = sphi 0, %s156
    %s173 = sphi 0, %s157
  $region4: #{basic_block_forward.1} parent=0 // loop_header_branch
    %15 = sbr.rel (%p13) target = $region8
  $region5: #{basic_block_forward.1} parent=0 // loop_body
    %s17 = ssub.s32 %s12, 1
    %s18 = ssub.s32 %s12, 2
    %s19 = sadd.s32 %s12, 1
    %s20 = ssub.s32 %s12, %s19
    %p21 = scmp.eq.s32.totalorder %s20, 0
    %s23 = sadd.s32 %s22, 1
    %s24 = scalar_select %p21, %s22, %s23
    %p27 = pneg %p21
    %p28 = scmp.eq.s32.totalorder %s12, 1
    %p29 = por %p27, %p28
    %p30 = scmp.ne.s32.totalorder %s22, %s25
    %p31 = scmp.eq.s32.totalorder %s12, 0
    %p32 = por %p30, %p31
    %p33 = scmp.ne.s32.totalorder %s22, %s25
    %p34 = scmp.eq.s32.totalorder %s17, 1
    %p35 = por %p33, %p34
    %p36 = scmp.ne.s32.totalorder %s25, %s26
    %p37 = scmp.eq.s32.totalorder %s17, 0
    %p38 = por %p36, %p37
    %p39 = scmp.ne.s32.totalorder %s25, %s26
    %p40 = scmp.eq.s32.totalorder %s18, 1
    %p41 = por %p39, %p40
    %p43 = scmp.ne.s32.totalorder %s26, %s42
    %p44 = scmp.eq.s32.totalorder %s18, 0
    %p45 = por %p43, %p44
    %s47 = sadd.s32 %s46, 1
    %p50 = scmp.eq.s32.totalorder %s12, 1
    %p51 = scmp.ne.s32.totalorder %s46, %s48
    %p52 = scmp.eq.s32.totalorder %s12, 0
    %p53 = por %p51, %p52
    %p54 = scmp.ne.s32.totalorder %s46, %s48
    %p55 = scmp.eq.s32.totalorder %s17, 1
    %p56 = por %p54, %p55
    %p57 = scmp.ne.s32.totalorder %s48, %s49
    %p58 = scmp.eq.s32.totalorder %s17, 0
    %p59 = por %p57, %p58
    %p60 = scmp.ne.s32.totalorder %s48, %s49
    %p61 = scmp.eq.s32.totalorder %s18, 1
    %p62 = por %p60, %p61
    %p64 = scmp.ne.s32.totalorder %s49, %s63
    %p65 = scmp.eq.s32.totalorder %s18, 0
    %p66 = por %p64, %p65
    %s68 = sadd.s32 %s67, 1
    %p71 = scmp.eq.s32.totalorder %s12, 1
    %p72 = scmp.ne.s32.totalorder %s67, %s69
    %p73 = scmp.eq.s32.totalorder %s12, 0
    %p74 = por %p72, %p73
    %p75 = scmp.ne.s32.totalorder %s67, %s69
    %p76 = scmp.eq.s32.totalorder %s17, 1
    %p77 = por %p75, %p76
    %p78 = scmp.ne.s32.totalorder %s69, %s70
    %p79 = scmp.eq.s32.totalorder %s17, 0
    %p80 = por %p78, %p79
    %p81 = scmp.ne.s32.totalorder %s69, %s70
    %p82 = scmp.eq.s32.totalorder %s18, 1
    %p83 = por %p81, %p82
    %p85 = scmp.ne.s32.totalorder %s70, %s84
    %p86 = scmp.eq.s32.totalorder %s18, 0
    %p87 = por %p85, %p86
    %s89 = sadd.s32 %s88, 1
    %p92 = scmp.eq.s32.totalorder %s12, 1
    %p93 = scmp.ne.s32.totalorder %s88, %s90
    %p94 = scmp.eq.s32.totalorder %s12, 0
    %p95 = por %p93, %p94
    %p96 = scmp.ne.s32.totalorder %s88, %s90
    %p97 = scmp.eq.s32.totalorder %s17, 1
    %p98 = por %p96, %p97
    %p99 = scmp.ne.s32.totalorder %s90, %s91
    %p100 = scmp.eq.s32.totalorder %s17, 0
    %p101 = por %p99, %p100
    %p102 = scmp.ne.s32.totalorder %s90, %s91
    %p103 = scmp.eq.s32.totalorder %s18, 1
    %p104 = por %p102, %p103
    %p106 = scmp.ne.s32.totalorder %s91, %s105
    %p107 = scmp.eq.s32.totalorder %s18, 0
    %p108 = por %p106, %p107
    %s110 = sadd.s32 %s109, 1
    %p113 = scmp.eq.s32.totalorder %s12, 1
    %p114 = scmp.ne.s32.totalorder %s109, %s111
    %p115 = scmp.eq.s32.totalorder %s12, 0
    %p116 = por %p114, %p115
    %p117 = scmp.ne.s32.totalorder %s109, %s111
    %p118 = scmp.eq.s32.totalorder %s17, 1
    %p119 = por %p117, %p118
    %p120 = scmp.ne.s32.totalorder %s111, %s112
    %p121 = scmp.eq.s32.totalorder %s17, 0
    %p122 = por %p120, %p121
    %p123 = scmp.ne.s32.totalorder %s111, %s112
    %p124 = scmp.eq.s32.totalorder %s18, 1
    %p125 = por %p123, %p124
    %p127 = scmp.ne.s32.totalorder %s112, %s126
    %p128 = scmp.eq.s32.totalorder %s18, 0
    %p129 = por %p127, %p128
    %s131 = sadd.s32 %s130, 1
    %p134 = scmp.eq.s32.totalorder %s12, 1
    %p135 = scmp.ne.s32.totalorder %s130, %s132
    %p136 = scmp.eq.s32.totalorder %s12, 0
    %p137 = por %p135, %p136
    %p138 = scmp.ne.s32.totalorder %s130, %s132
    %p139 = scmp.eq.s32.totalorder %s17, 1
    %p140 = por %p138, %p139
    %p141 = scmp.ne.s32.totalorder %s132, %s133
    %p142 = scmp.eq.s32.totalorder %s17, 0
    %p143 = por %p141, %p142
    %p144 = scmp.ne.s32.totalorder %s132, %s133
    %p145 = scmp.eq.s32.totalorder %s18, 1
    %p146 = por %p144, %p145
    %p148 = scmp.ne.s32.totalorder %s133, %s147
    %p149 = scmp.eq.s32.totalorder %s18, 0
    %p150 = por %p148, %p149
    %s151 = ssub.s32 %s12, %s19
    %p152 = scmp.eq.s32.totalorder %s151, 0
    %s154 = sadd.s32 %s153, 1
    %s155 = scalar_select %p152, %s153, %s154
    %p158 = pneg %p152
    %p159 = scmp.eq.s32.totalorder %s12, 1
    %p160 = por %p158, %p159
    %p161 = scmp.ne.s32.totalorder %s153, %s156
    %p162 = scmp.eq.s32.totalorder %s12, 0
    %p163 = por %p161, %p162
    %p164 = scmp.ne.s32.totalorder %s153, %s156
    %p165 = scmp.eq.s32.totalorder %s17, 1
    %p166 = por %p164, %p165
    %p167 = scmp.ne.s32.totalorder %s156, %s157
    %p168 = scmp.eq.s32.totalorder %s17, 0
    %p169 = por %p167, %p168
    %p170 = scmp.ne.s32.totalorder %s156, %s157
    %p171 = scmp.eq.s32.totalorder %s18, 1
    %p172 = por %p170, %p171
    %p174 = scmp.ne.s32.totalorder %s157, %s173
    %p175 = scmp.eq.s32.totalorder %s18, 0
    %p176 = por %p174, %p175
    %p177 = scmp.le.s32.totalorder 1, %s12
    %p178 = scmp.lt.s32.totalorder %s12, 3
    %p179 = pnand %p177, %p178
    %p180 = pneg %p179
    // Predicated region
    $region9: #{basic_block_forward.1} parent=5 // pred_check
      _
    $region10: #{basic_block_forward.1} parent=5 // pred_check_branch
      %182 = sbr.rel (%p179) target = $region12
    $region11: #{basic_block_forward.1} parent=5 // pred_region
      %s183 = ssub.s32 %s12, 1
      // Predicated region
      $region13: #{basic_block_forward.1} parent=11 // pred_check
        %p184 = pneg %p59
      $region14: #{basic_block_forward.1} parent=11 // pred_check_branch
        %186 = sbr.rel (%p184) target = $region16
      $region15: #{basic_block_forward.1} parent=11 // pred_region
        _
      $region16: #{basic_block_forward.1} parent=11 // pred_fallthru
        _
      // Predicated region
      $region17: #{basic_block_forward.1} parent=11 // pred_check
        %p187 = pneg %p80
      $region18: #{basic_block_forward.1} parent=11 // pred_check_branch
        %189 = sbr.rel (%p187) target = $region20
      $region19: #{basic_block_forward.1} parent=11 // pred_region
        _
      $region20: #{basic_block_forward.1} parent=11 // pred_fallthru
        _
      // Predicated region
      $region21: #{basic_block_forward.1} parent=11 // pred_check
        %p190 = pneg %p101
      $region22: #{basic_block_forward.1} parent=11 // pred_check_branch
        %192 = sbr.rel (%p190) target = $region24
      $region23: #{basic_block_forward.1} parent=11 // pred_region
        _
      $region24: #{basic_block_forward.1} parent=11 // pred_fallthru
        _
      // Predicated region
      $region25: #{basic_block_forward.1} parent=11 // pred_check
        %p193 = pneg %p122
      $region26: #{basic_block_forward.1} parent=11 // pred_check_branch
        %195 = sbr.rel (%p193) target = $region28
      $region27: #{basic_block_forward.1} parent=11 // pred_region
        _
      $region28: #{basic_block_forward.1} parent=11 // pred_fallthru
        _
      // Predicated region
      $region29: #{basic_block_forward.1} parent=11 // pred_check
        %p196 = pneg %p143
      $region30: #{basic_block_forward.1} parent=11 // pred_check_branch
        %198 = sbr.rel (%p196) target = $region32
      $region31: #{basic_block_forward.1} parent=11 // pred_region
        _
      $region32: #{basic_block_forward.1} parent=11 // pred_fallthru
        _
    $region12: #{basic_block_forward.1} parent=5 // pred_fallthru
      _
    %p199 = scmp.lt.s32.totalorder %s12, 2
    // Predicated region
    $region33: #{basic_block_forward.1} parent=5 // pred_check
      %p200 = pneg %p199
    $region34: #{basic_block_forward.1} parent=5 // pred_check_branch
      %202 = sbr.rel (%p200) target = $region36
    $region35: #{basic_block_forward.1} parent=5 // pred_region
      // Predicated region
      $region37: #{basic_block_forward.1} parent=35 // pred_check
        %p203 = pneg %p32
      $region38: #{basic_block_forward.1} parent=35 // pred_check_branch
        %205 = sbr.rel (%p203) target = $region40
      $region39: #{basic_block_forward.1} parent=35 // pred_region
        %p206 = scmp.lt.s32.totalorder %s12, 1
        %s207 = scalar_select %p206, %s12, 1
        %s208 = smul.addr %s207, 60
        %s209 = smul.addr %s208, 8
        %s210 = scalar_lea.vmem %s0, %s209
      $region40: #{basic_block_forward.1} parent=35 // pred_fallthru
        _
    $region36: #{basic_block_forward.1} parent=5 // pred_fallthru
      _
    %p211 = scmp.le.s32.totalorder 1, %s12
    %p212 = scmp.lt.s32.totalorder %s12, 3
    %p213 = pnand %p211, %p212
    %p214 = pneg %p213
    // Predicated region
    $region41: #{basic_block_forward.1} parent=5 // pred_check
      _
    $region42: #{basic_block_forward.1} parent=5 // pred_check_branch
      %216 = sbr.rel (%p213) target = $region44
    $region43: #{basic_block_forward.1} parent=5 // pred_region
      %s217 = ssub.s32 %s12, 1
      %p218 = scmp.lt.s32.totalorder %s17, 1
      %s219 = scalar_select %p218, %s17, 1
      %s220 = smul.addr %s219, 60
      %s221 = smul.addr %s220, 8
      %s222 = scalar_lea.vmem %s0, %s221
      %p223 = pneg %p38
      %p224 = pneg %p35
      %p225 = pneg %p59
      %p226 = pneg %p56
      %p227 = pneg %p80
      %p228 = pneg %p77
      %p229 = pneg %p101
      %p230 = pneg %p98
      %p231 = pneg %p122
      %p232 = pneg %p119
      %p233 = pneg %p143
      %p234 = pneg %p140
      %p235 = pneg %p169
      %p236 = pneg %p166
      %p237 = scmp.lt.s32.totalorder %s17, 1
      %s238 = scalar_select %p237, %s17, 1
      %s239 = smul.addr %s238, 40
      %s240 = smul.addr %s239, 8
      %s241 = scalar_lea.vmem %s6, %s240
      %p242 = scmp.lt.s32.totalorder %s17, 1
      %s243 = scalar_select %p242, %s17, 1
      %s244 = smul.addr %s243, 60
      %s245 = smul.addr %s244, 8
      %s246 = scalar_lea.vmem %s0, %s245
      %p247 = scmp.lt.s32.totalorder %s17, 1
      %s248 = scalar_select %p247, %s17, 1
      %s249 = smul.addr %s248, 40
      %s250 = smul.addr %s249, 8
      %s251 = scalar_lea.vmem %s6, %s250
      %v252 = vld [vmem:[%s246 + $0x13] sm:$0xff]
      %v253 = vld [vmem:[%s246 + $0x1b] sm:$0xff]
      %v254 = vld [vmem:[%s246 + $0x23] sm:$0xff]
      %v255 = vld [vmem:[%s246 + $0x2b] sm:$0xff]
      %v256 = vld [vmem:[%s246 + $0x33] sm:$0xff]
      %v257 = vld [vmem:[%s246 + $0x3b] sm:$0xff]
      %v258 = vld [vmem:[%s246 + $0x43] sm:$0xff]
      %v259 = vld [vmem:[%s246 + $0x4b] sm:$0xff]
      %v260 = vld [vmem:[%s246 + $0x53] sm:$0xff]
      %v261 = vld [vmem:[%s246 + $0x5b] sm:$0xff]
      %v262 = vld [vmem:[%s246 + $0x63] sm:$0xff]
      %v263 = vld [vmem:[%s246 + $0x6b] sm:$0xff]
      %v264 = vld [vmem:[%s246 + $0x73] sm:$0xff]
      %v265 = vld [vmem:[%s246 + $0x7b] sm:$0xff]
      %v266 = vld [vmem:[%s246 + $0x83] sm:$0xff]
      %v267 = vld [vmem:[%s246 + $0x8b] sm:$0xff]
      %v268 = vld [vmem:[%s246 + $0x93] sm:$0xff]
      %v269 = vld [vmem:[%s246 + $0x9b] sm:$0xff]
      %v270 = vld [vmem:[%s246 + $0xa3] sm:$0xff]
      %v271 = vld [vmem:[%s246 + $0xab] sm:$0xff]
      %v272 = vld [vmem:[%s246 + $0xb3] sm:$0xff]
      %v273 = vld [vmem:[%s246 + $0xbb] sm:$0xff]
      %v274 = vld [vmem:[%s246 + $0xc3] sm:$0xff]
      %v275 = vld [vmem:[%s246 + $0xcb] sm:$0xff]
      %v276 = vld [vmem:[%s246 + $0xd3] sm:$0xff]
      %v277 = vld [vmem:[%s246 + $0xdb] sm:$0xff]
      %v278 = vld [vmem:[%s246 + $0xe3] sm:$0xff]
      %v279 = vld [vmem:[%s246 + $0xeb] sm:$0xff]
      %v280 = vld [vmem:[%s246 + $0xf3] sm:$0xff]
      %v281 = vld [vmem:[%s246 + $0xfb] sm:$0xff]
      %v282 = vld [vmem:[%s246 + $0x103] sm:$0xff]
      %v283 = vld [vmem:[%s246 + $0x10b] sm:$0xff]
      %v284 = vld [vmem:[%s246 + $0x113] sm:$0xff]
      %v285 = vld [vmem:[%s246 + $0x11b] sm:$0xff]
      %v286 = vld [vmem:[%s246 + $0x123] sm:$0xff]
      %v287 = vld [vmem:[%s246 + $0x12b] sm:$0xff]
      %v288 = vld [vmem:[%s246 + $0x133] sm:$0xff]
      %v289 = vld [vmem:[%s246 + $0x13b] sm:$0xff]
      %v290 = vld [vmem:[%s246 + $0x143] sm:$0xff]
      %v291 = vld [vmem:[%s246 + $0x14b] sm:$0xff]
      %v292 = vld [vmem:[%s246 + $0x153] sm:$0xff]
      %v293 = vld [vmem:[%s246 + $0x15b] sm:$0xff]
      %v294 = vld [vmem:[%s246 + $0x163] sm:$0xff]
      %v295 = vld [vmem:[%s246 + $0x16b] sm:$0xff]
      %v296 = vld [vmem:[%s246 + $0x173] sm:$0xff]
      %v297 = vld [vmem:[%s246 + $0x17b] sm:$0xff]
      %v298 = vld [vmem:[%s246 + $0x183] sm:$0xff]
      %v299 = vld [vmem:[%s246 + $0x18b] sm:$0xff]
      %v300 = vld [vmem:[%s246 + $0x193] sm:$0xff]
      %v301 = vld [vmem:[%s246 + $0x19b] sm:$0xff]
      %v302 = vpack.c.bf16 %v253, %v252
      %v303 = vpack.c.bf16 %v255, %v254
      %v304 = vpack.c.bf16 %v257, %v256
      %v305 = vpack.c.bf16 %v259, %v258
      %v306 = vpack.c.bf16 %v261, %v260
      %v307 = vpack.c.bf16 %v263, %v262
      %v308 = vpack.c.bf16 %v265, %v264
      %v309 = vpack.c.bf16 %v267, %v266
      %v310 = vpack.c.bf16 %v269, %v268
      %v311 = vpack.c.bf16 %v271, %v270
      %v312 = vpack.c.bf16 %v273, %v272
      %v313 = vpack.c.bf16 %v275, %v274
      %v314 = vpack.c.bf16 %v277, %v276
      %v315 = vpack.c.bf16 %v279, %v278
      %v316 = vpack.c.bf16 %v281, %v280
      %v317 = vpack.c.bf16 %v283, %v282
      %v318 = vpack.c.bf16 %v285, %v284
      %v319 = vpack.c.bf16 %v287, %v286
      %v320 = vpack.c.bf16 %v289, %v288
      %v321 = vpack.c.bf16 %v291, %v290
      %v322 = vpack.c.bf16 %v293, %v292
      %v323 = vpack.c.bf16 %v295, %v294
      %v324 = vpack.c.bf16 %v297, %v296
      %v325 = vpack.c.bf16 %v299, %v298
      %v326 = vpack.c.bf16 %v301, %v300
      %v327 = vld [vmem:[%s1] sm:$0xf]
      %v328 = vld [vmem:[%s1 + $0x4] sm:$0xf]
      %v329 = vld [vmem:[%s1 + $0x8] sm:$0xf]
      %v330 = vld [vmem:[%s1 + $0xc] sm:$0xf]
      %v331 = vld [vmem:[%s1 + $0x10] sm:$0xf]
      %v332 = vld [vmem:[%s1 + $0x14] sm:$0xf]
      %v333 = vld [vmem:[%s1 + $0x18] sm:$0xf]
      %v334 = vld [vmem:[%s1 + $0x1c] sm:$0xf]
      %v335 = vld [vmem:[%s1 + $0x20] sm:$0xf]
      %v336 = vld [vmem:[%s1 + $0x24] sm:$0xf]
      %v337 = vld [vmem:[%s1 + $0x28] sm:$0xf]
      %v338 = vld [vmem:[%s1 + $0x2c] sm:$0xf]
      %v339 = vld [vmem:[%s1 + $0x30] sm:$0xf]
      %v340 = vld [vmem:[%s1 + $0x34] sm:$0xf]
      %v341 = vld [vmem:[%s1 + $0x38] sm:$0xf]
      %v342 = vld [vmem:[%s1 + $0x3c] sm:$0xf]
      %v343 = vld [vmem:[%s246 + $0x14] sm:$0xff]
      %v344 = vld [vmem:[%s246 + $0x1c] sm:$0xff]
      %v345 = vld [vmem:[%s246 + $0x24] sm:$0xff]
      %v346 = vld [vmem:[%s246 + $0x2c] sm:$0xff]
      %v347 = vld [vmem:[%s246 + $0x34] sm:$0xff]
      %v348 = vld [vmem:[%s246 + $0x3c] sm:$0xff]
      %v349 = vld [vmem:[%s246 + $0x44] sm:$0xff]
      %v350 = vld [vmem:[%s246 + $0x4c] sm:$0xff]
      %v351 = vld [vmem:[%s246 + $0x54] sm:$0xff]
      %v352 = vld [vmem:[%s246 + $0x5c] sm:$0xff]
      %v353 = vld [vmem:[%s246 + $0x64] sm:$0xff]
      %v354 = vld [vmem:[%s246 + $0x6c] sm:$0xff]
      %v355 = vld [vmem:[%s246 + $0x74] sm:$0xff]
      %v356 = vld [vmem:[%s246 + $0x7c] sm:$0xff]
      %v357 = vld [vmem:[%s246 + $0x84] sm:$0xff]
      %v358 = vld [vmem:[%s246 + $0x8c] sm:$0xff]
      %v359 = vld [vmem:[%s246 + $0x94] sm:$0xff]
      %v360 = vld [vmem:[%s246 + $0x9c] sm:$0xff]
      %v361 = vld [vmem:[%s246 + $0xa4] sm:$0xff]
      %v362 = vld [vmem:[%s246 + $0xac] sm:$0xff]
      %v363 = vld [vmem:[%s246 + $0xb4] sm:$0xff]
      %v364 = vld [vmem:[%s246 + $0xbc] sm:$0xff]
      %v365 = vld [vmem:[%s246 + $0xc4] sm:$0xff]
      %v366 = vld [vmem:[%s246 + $0xcc] sm:$0xff]
      %v367 = vld [vmem:[%s246 + $0xd4] sm:$0xff]
      %v368 = vld [vmem:[%s246 + $0xdc] sm:$0xff]
      %v369 = vld [vmem:[%s246 + $0xe4] sm:$0xff]
      %v370 = vld [vmem:[%s246 + $0xec] sm:$0xff]
      %v371 = vld [vmem:[%s246 + $0xf4] sm:$0xff]
      %v372 = vld [vmem:[%s246 + $0xfc] sm:$0xff]
      %v373 = vld [vmem:[%s246 + $0x104] sm:$0xff]
      %v374 = vld [vmem:[%s246 + $0x10c] sm:$0xff]
      %v375 = vld [vmem:[%s246 + $0x114] sm:$0xff]
      %v376 = vld [vmem:[%s246 + $0x11c] sm:$0xff]
      %v377 = vld [vmem:[%s246 + $0x124] sm:$0xff]
      %v378 = vld [vmem:[%s246 + $0x12c] sm:$0xff]
      %v379 = vld [vmem:[%s246 + $0x134] sm:$0xff]
      %v380 = vld [vmem:[%s246 + $0x13c] sm:$0xff]
      %v381 = vld [vmem:[%s246 + $0x144] sm:$0xff]
      %v382 = vld [vmem:[%s246 + $0x14c] sm:$0xff]
      %v383 = vld [vmem:[%s246 + $0x154] sm:$0xff]
      %v384 = vld [vmem:[%s246 + $0x15c] sm:$0xff]
      %v385 = vld [vmem:[%s246 + $0x164] sm:$0xff]
      %v386 = vld [vmem:[%s246 + $0x16c] sm:$0xff]
      %v387 = vld [vmem:[%s246 + $0x174] sm:$0xff]
      %v388 = vld [vmem:[%s246 + $0x17c] sm:$0xff]
      %v389 = vld [vmem:[%s246 + $0x184] sm:$0xff]
      %v390 = vld [vmem:[%s246 + $0x18c] sm:$0xff]
      %v391 = vld [vmem:[%s246 + $0x194] sm:$0xff]
      %v392 = vld [vmem:[%s246 + $0x19c] sm:$0xff]
      %v393 = vpack.c.bf16 %v344, %v343
      %v394 = vpack.c.bf16 %v346, %v345
      %v395 = vpack.c.bf16 %v348, %v347
      %v396 = vpack.c.bf16 %v350, %v349
      %v397 = vpack.c.bf16 %v352, %v351
      %v398 = vpack.c.bf16 %v354, %v353
      %v399 = vpack.c.bf16 %v356, %v355
      %v400 = vpack.c.bf16 %v358, %v357
      %v401 = vpack.c.bf16 %v360, %v359
      %v402 = vpack.c.bf16 %v362, %v361
      %v403 = vpack.c.bf16 %v364, %v363
      %v404 = vpack.c.bf16 %v366, %v365
      %v405 = vpack.c.bf16 %v368, %v367
      %v406 = vpack.c.bf16 %v370, %v369
      %v407 = vpack.c.bf16 %v372, %v371
      %v408 = vpack.c.bf16 %v374, %v373
      %v409 = vpack.c.bf16 %v376, %v375
      %v410 = vpack.c.bf16 %v378, %v377
      %v411 = vpack.c.bf16 %v380, %v379
      %v412 = vpack.c.bf16 %v382, %v381
      %v413 = vpack.c.bf16 %v384, %v383
      %v414 = vpack.c.bf16 %v386, %v385
      %v415 = vpack.c.bf16 %v388, %v387
      %v416 = vpack.c.bf16 %v390, %v389
      %v417 = vpack.c.bf16 %v392, %v391
      %s418 = scalar_lea.vmem %s1, 64
      %v419 = vld [vmem:[%s418] sm:$0xf]
      %v420 = vld [vmem:[%s418 + $0x4] sm:$0xf]
      %v421 = vld [vmem:[%s418 + $0x8] sm:$0xf]
      %v422 = vld [vmem:[%s418 + $0xc] sm:$0xf]
      %v423 = vld [vmem:[%s418 + $0x10] sm:$0xf]
      %v424 = vld [vmem:[%s418 + $0x14] sm:$0xf]
      %v425 = vld [vmem:[%s418 + $0x18] sm:$0xf]
      %v426 = vld [vmem:[%s418 + $0x1c] sm:$0xf]
      %v427 = vld [vmem:[%s418 + $0x20] sm:$0xf]
      %v428 = vld [vmem:[%s418 + $0x24] sm:$0xf]
      %v429 = vld [vmem:[%s418 + $0x28] sm:$0xf]
      %v430 = vld [vmem:[%s418 + $0x2c] sm:$0xf]
      %v431 = vld [vmem:[%s418 + $0x30] sm:$0xf]
      %v432 = vld [vmem:[%s418 + $0x34] sm:$0xf]
      %v433 = vld [vmem:[%s418 + $0x38] sm:$0xf]
      %v434 = vld [vmem:[%s418 + $0x3c] sm:$0xf]
      %v451 = vunpack.c.l.b16 %v419
      %v452 = vunpack.c.l.b16 %v420
      %v453 = vunpack.c.l.b16 %v421
      %v454 = vunpack.c.l.b16 %v422
      %v455 = vunpack.c.l.b16 %v423
      %v456 = vunpack.c.l.b16 %v424
      %v457 = vunpack.c.l.b16 %v425
      %v458 = vunpack.c.l.b16 %v426
      %v459 = vunpack.c.l.b16 %v427
      %v460 = vunpack.c.l.b16 %v428
      %v461 = vunpack.c.l.b16 %v429
      %v462 = vunpack.c.l.b16 %v430
      %v463 = vunpack.c.l.b16 %v431
      %v464 = vunpack.c.l.b16 %v432
      %v465 = vunpack.c.l.b16 %v433
      %v466 = vunpack.c.l.b16 %v434
      %v467 = vpack.c.b16 %v452, %v451
      %v468 = vpack.c.b16 %v454, %v453
      %v469 = vpack.c.b16 %v456, %v455
      %v470 = vpack.c.b16 %v458, %v457
      %v471 = vpack.c.b16 %v460, %v459
      %v472 = vpack.c.b16 %v462, %v461
      %v473 = vpack.c.b16 %v464, %v463
      %v474 = vpack.c.b16 %v466, %v465
      %483 = vmatpush.bf16.msra.mxu0 %v474
      %484 = vmatpush.bf16.msra.mxu0 %v473
      %485 = vmatpush.bf16.msra.mxu0 %v472
      %486 = vmatpush.bf16.msra.mxu0 %v471
      %487 = vmatpush.bf16.msra.mxu0 %v470
      %488 = vmatpush.bf16.msra.mxu0 %v469
      %489 = vmatpush.bf16.msra.mxu0 %v468
      %490 = vmatpush.bf16.msra.mxu0 %v467
      %491 = vmatmul.bf16.gmra.mxu0 %v393
      %v492 = vpop.f32.mrf.mxu0
      %v493 = vpop.f32.mrf.mxu0
      %494 = vmatmul.bf16.gmra.mxu0 %v394
      %v495 = vpop.f32.mrf.mxu0
      %v496 = vadd.f32 0.0, %v495
      %v497 = vpop.f32.mrf.mxu0
      %v498 = vadd.f32 0.0, %v497
      %499 = vmatmul.bf16.gmra.mxu0 %v395
      %v500 = vpop.f32.mrf.mxu0
      %v501 = vadd.f32 0.0, %v500
      %v502 = vpop.f32.mrf.mxu0
      %v503 = vadd.f32 0.0, %v502
      %504 = vmatmul.bf16.gmra.mxu0 %v396
      %v505 = vpop.f32.mrf.mxu0
      %v506 = vadd.f32 0.0, %v505
      %v507 = vpop.f32.mrf.mxu0
      %v508 = vadd.f32 0.0, %v507
      %509 = vmatmul.bf16.gmra.mxu0 %v397
      %v510 = vpop.f32.mrf.mxu0
      %v511 = vadd.f32 0.0, %v510
      %v512 = vpop.f32.mrf.mxu0
      %v513 = vadd.f32 0.0, %v512
      %514 = vmatmul.bf16.gmra.mxu0 %v398
      %v515 = vpop.f32.mrf.mxu0
      %v516 = vadd.f32 0.0, %v515
      %v517 = vpop.f32.mrf.mxu0
      %v518 = vadd.f32 0.0, %v517
      %519 = vmatmul.bf16.gmra.mxu0 %v399
      %v520 = vpop.f32.mrf.mxu0
      %v521 = vadd.f32 0.0, %v520
      %v522 = vpop.f32.mrf.mxu0
      %v523 = vadd.f32 0.0, %v522
      %524 = vmatmul.bf16.gmra.mxu0 %v400
      %v525 = vpop.f32.mrf.mxu0
      %v526 = vadd.f32 0.0, %v525
      %v527 = vpop.f32.mrf.mxu0
      %v528 = vadd.f32 0.0, %v527
      %529 = vmatmul.bf16.gmra.mxu0 %v401
      %v530 = vpop.f32.mrf.mxu0
      %v531 = vadd.f32 0.0, %v530
      %v532 = vpop.f32.mrf.mxu0
      %v533 = vadd.f32 0.0, %v532
      %534 = vmatmul.bf16.gmra.mxu0 %v402
      %v535 = vpop.f32.mrf.mxu0
      %v536 = vadd.f32 0.0, %v535
      %v537 = vpop.f32.mrf.mxu0
      %v538 = vadd.f32 0.0, %v537
      %539 = vmatmul.bf16.gmra.mxu0 %v403
      %v540 = vpop.f32.mrf.mxu0
      %v541 = vadd.f32 0.0, %v540
      %v542 = vpop.f32.mrf.mxu0
      %v543 = vadd.f32 0.0, %v542
      %544 = vmatmul.bf16.gmra.mxu0 %v404
      %v545 = vpop.f32.mrf.mxu0
      %v546 = vadd.f32 0.0, %v545
      %v547 = vpop.f32.mrf.mxu0
      %v548 = vadd.f32 0.0, %v547
      %549 = vmatmul.bf16.gmra.mxu0 %v405
      %v550 = vpop.f32.mrf.mxu0
      %v551 = vadd.f32 0.0, %v550
      %v552 = vpop.f32.mrf.mxu0
      %v553 = vadd.f32 0.0, %v552
      %554 = vmatmul.bf16.gmra.mxu0 %v406
      %v555 = vpop.f32.mrf.mxu0
      %v556 = vadd.f32 0.0, %v555
      %v557 = vpop.f32.mrf.mxu0
      %v558 = vadd.f32 0.0, %v557
      %559 = vmatmul.bf16.gmra.mxu0 %v407
      %v560 = vpop.f32.mrf.mxu0
      %v561 = vadd.f32 0.0, %v560
      %v562 = vpop.f32.mrf.mxu0
      %v563 = vadd.f32 0.0, %v562
      %564 = vmatmul.bf16.gmra.mxu0 %v408
      %v565 = vpop.f32.mrf.mxu0
      %v566 = vadd.f32 0.0, %v565
      %v567 = vpop.f32.mrf.mxu0
      %v568 = vadd.f32 0.0, %v567
      %569 = vmatmul.bf16.gmra.mxu0 %v409
      %v570 = vpop.f32.mrf.mxu0
      %v571 = vadd.f32 0.0, %v570
      %v572 = vpop.f32.mrf.mxu0
      %v573 = vadd.f32 0.0, %v572
      %574 = vmatmul.bf16.gmra.mxu0 %v410
      %v575 = vpop.f32.mrf.mxu0
      %v576 = vadd.f32 0.0, %v575
      %v577 = vpop.f32.mrf.mxu0
      %v578 = vadd.f32 0.0, %v577
      %579 = vmatmul.bf16.gmra.mxu0 %v411
      %v580 = vpop.f32.mrf.mxu0
      %v581 = vadd.f32 0.0, %v580
      %v582 = vpop.f32.mrf.mxu0
      %v583 = vadd.f32 0.0, %v582
      %584 = vmatmul.bf16.gmra.mxu0 %v412
      %v585 = vpop.f32.mrf.mxu0
      %v586 = vadd.f32 0.0, %v585
      %v587 = vpop.f32.mrf.mxu0
      %v588 = vadd.f32 0.0, %v587
      %589 = vmatmul.bf16.gmra.mxu0 %v413
      %v590 = vpop.f32.mrf.mxu0
      %v591 = vadd.f32 0.0, %v590
      %v592 = vpop.f32.mrf.mxu0
      %v593 = vadd.f32 0.0, %v592
      %594 = vmatmul.bf16.gmra.mxu0 %v414
      %v595 = vpop.f32.mrf.mxu0
      %v596 = vadd.f32 0.0, %v595
      %v597 = vpop.f32.mrf.mxu0
      %v598 = vadd.f32 0.0, %v597
      %599 = vmatmul.bf16.gmra.mxu0 %v415
      %v600 = vpop.f32.mrf.mxu0
      %v601 = vadd.f32 0.0, %v600
      %v602 = vpop.f32.mrf.mxu0
      %v603 = vadd.f32 0.0, %v602
      %604 = vmatmul.bf16.gmra.mxu0 %v416
      %v605 = vpop.f32.mrf.mxu0
      %v606 = vadd.f32 0.0, %v605
      %v607 = vpop.f32.mrf.mxu0
      %v608 = vadd.f32 0.0, %v607
      %609 = vmatmul.bf16.gmra.mxu0 %v417
      %v610 = vpop.f32.mrf.mxu0
      %v611 = vpop.f32.mrf.mxu0
      %612 = vdwg.mxu0
      %v629 = vunpack.c.l.b16 %v327
      %v630 = vunpack.c.l.b16 %v328
      %v631 = vunpack.c.l.b16 %v329
      %v632 = vunpack.c.l.b16 %v330
      %v633 = vunpack.c.l.b16 %v331
      %v634 = vunpack.c.l.b16 %v332
      %v635 = vunpack.c.l.b16 %v333
      %v636 = vunpack.c.l.b16 %v334
      %v637 = vunpack.c.l.b16 %v335
      %v638 = vunpack.c.l.b16 %v336
      %v639 = vunpack.c.l.b16 %v337
      %v640 = vunpack.c.l.b16 %v338
      %v641 = vunpack.c.l.b16 %v339
      %v642 = vunpack.c.l.b16 %v340
      %v643 = vunpack.c.l.b16 %v341
      %v644 = vunpack.c.l.b16 %v342
      %v645 = vpack.c.b16 %v630, %v629
      %v646 = vpack.c.b16 %v632, %v631
      %v647 = vpack.c.b16 %v634, %v633
      %v648 = vpack.c.b16 %v636, %v635
      %v649 = vpack.c.b16 %v638, %v637
      %v650 = vpack.c.b16 %v640, %v639
      %v651 = vpack.c.b16 %v642, %v641
      %v652 = vpack.c.b16 %v644, %v643
      %661 = vmatpush.bf16.msra.mxu0 %v652
      %662 = vmatpush.bf16.msra.mxu0 %v651
      %663 = vmatpush.bf16.msra.mxu0 %v650
      %664 = vmatpush.bf16.msra.mxu0 %v649
      %665 = vmatpush.bf16.msra.mxu0 %v648
      %666 = vmatpush.bf16.msra.mxu0 %v647
      %667 = vmatpush.bf16.msra.mxu0 %v646
      %668 = vmatpush.bf16.msra.mxu0 %v645
      %669 = vmatmul.bf16.gmra.mxu0 %v302
      %v670 = vpop.f32.mrf.mxu0
      %v671 = vpop.f32.mrf.mxu0
      %672 = vmatmul.bf16.gmra.mxu0 %v303
      %v673 = vpop.f32.mrf.mxu0
      %v674 = vadd.f32 %v496, %v673
      %v675 = vpop.f32.mrf.mxu0
      %v676 = vadd.f32 %v498, %v675
      %677 = vmatmul.bf16.gmra.mxu0 %v304
      %v678 = vpop.f32.mrf.mxu0
      %v679 = vadd.f32 %v501, %v678
      %v680 = vpop.f32.mrf.mxu0
      %v681 = vadd.f32 %v503, %v680
      %682 = vmatmul.bf16.gmra.mxu0 %v305
      %v683 = vpop.f32.mrf.mxu0
      %v684 = vadd.f32 %v506, %v683
      %v685 = vpop.f32.mrf.mxu0
      %v686 = vadd.f32 %v508, %v685
      %687 = vmatmul.bf16.gmra.mxu0 %v306
      %v688 = vpop.f32.mrf.mxu0
      %v689 = vadd.f32 %v511, %v688
      %v690 = vpop.f32.mrf.mxu0
      %v691 = vadd.f32 %v513, %v690
      %692 = vmatmul.bf16.gmra.mxu0 %v307
      %v693 = vpop.f32.mrf.mxu0
      %v694 = vadd.f32 %v516, %v693
      %v695 = vpop.f32.mrf.mxu0
      %v696 = vadd.f32 %v518, %v695
      %697 = vmatmul.bf16.gmra.mxu0 %v308
      %v698 = vpop.f32.mrf.mxu0
      %v699 = vadd.f32 %v521, %v698
      %v700 = vpop.f32.mrf.mxu0
      %v701 = vadd.f32 %v523, %v700
      %702 = vmatmul.bf16.gmra.mxu0 %v309
      %v703 = vpop.f32.mrf.mxu0
      %v704 = vadd.f32 %v526, %v703
      %v705 = vpop.f32.mrf.mxu0
      %v706 = vadd.f32 %v528, %v705
      %707 = vmatmul.bf16.gmra.mxu0 %v310
      %v708 = vpop.f32.mrf.mxu0
      %v709 = vadd.f32 %v531, %v708
      %v710 = vpop.f32.mrf.mxu0
      %v711 = vadd.f32 %v533, %v710
      %712 = vmatmul.bf16.gmra.mxu0 %v311
      %v713 = vpop.f32.mrf.mxu0
      %v714 = vadd.f32 %v536, %v713
      %v715 = vpop.f32.mrf.mxu0
      %v716 = vadd.f32 %v538, %v715
      %717 = vmatmul.bf16.gmra.mxu0 %v312
      %v718 = vpop.f32.mrf.mxu0
      %v719 = vadd.f32 %v541, %v718
      %v720 = vpop.f32.mrf.mxu0
      %v721 = vadd.f32 %v543, %v720
      %722 = vmatmul.bf16.gmra.mxu0 %v313
      %v723 = vpop.f32.mrf.mxu0
      %v724 = vadd.f32 %v546, %v723
      %v725 = vpop.f32.mrf.mxu0
      %v726 = vadd.f32 %v548, %v725
      %727 = vmatmul.bf16.gmra.mxu0 %v314
      %v728 = vpop.f32.mrf.mxu0
      %v729 = vadd.f32 %v551, %v728
      %v730 = vpop.f32.mrf.mxu0
      %v731 = vadd.f32 %v553, %v730
      %732 = vmatmul.bf16.gmra.mxu0 %v315
      %v733 = vpop.f32.mrf.mxu0
      %v734 = vadd.f32 %v556, %v733
      %v735 = vpop.f32.mrf.mxu0
      %v736 = vadd.f32 %v558, %v735
      %737 = vmatmul.bf16.gmra.mxu0 %v316
      %v738 = vpop.f32.mrf.mxu0
      %v739 = vadd.f32 %v561, %v738
      %v740 = vpop.f32.mrf.mxu0
      %v741 = vadd.f32 %v563, %v740
      %742 = vmatmul.bf16.gmra.mxu0 %v317
      %v743 = vpop.f32.mrf.mxu0
      %v744 = vadd.f32 %v566, %v743
      %v745 = vpop.f32.mrf.mxu0
      %v746 = vadd.f32 %v568, %v745
      %747 = vmatmul.bf16.gmra.mxu0 %v318
      %v748 = vpop.f32.mrf.mxu0
      %v749 = vadd.f32 %v571, %v748
      %v750 = vpop.f32.mrf.mxu0
      %v751 = vadd.f32 %v573, %v750
      %752 = vmatmul.bf16.gmra.mxu0 %v319
      %v753 = vpop.f32.mrf.mxu0
      %v754 = vadd.f32 %v576, %v753
      %v755 = vpop.f32.mrf.mxu0
      %v756 = vadd.f32 %v578, %v755
      %757 = vmatmul.bf16.gmra.mxu0 %v320
      %v758 = vpop.f32.mrf.mxu0
      %v759 = vadd.f32 %v581, %v758
      %v760 = vpop.f32.mrf.mxu0
      %v761 = vadd.f32 %v583, %v760
      %762 = vmatmul.bf16.gmra.mxu0 %v321
      %v763 = vpop.f32.mrf.mxu0
      %v764 = vadd.f32 %v586, %v763
      %v765 = vpop.f32.mrf.mxu0
      %v766 = vadd.f32 %v588, %v765
      %767 = vmatmul.bf16.gmra.mxu0 %v322
      %v768 = vpop.f32.mrf.mxu0
      %v769 = vadd.f32 %v591, %v768
      %v770 = vpop.f32.mrf.mxu0
      %v771 = vadd.f32 %v593, %v770
      %772 = vmatmul.bf16.gmra.mxu0 %v323
      %v773 = vpop.f32.mrf.mxu0
      %v774 = vadd.f32 %v596, %v773
      %v775 = vpop.f32.mrf.mxu0
      %v776 = vadd.f32 %v598, %v775
      %777 = vmatmul.bf16.gmra.mxu0 %v324
      %v778 = vpop.f32.mrf.mxu0
      %v779 = vadd.f32 %v601, %v778
      %v780 = vpop.f32.mrf.mxu0
      %v781 = vadd.f32 %v603, %v780
      %782 = vmatmul.bf16.gmra.mxu0 %v325
      %v783 = vpop.f32.mrf.mxu0
      %v784 = vadd.f32 %v606, %v783
      %v785 = vpop.f32.mrf.mxu0
      %v786 = vadd.f32 %v608, %v785
      %787 = vmatmul.bf16.gmra.mxu0 %v326
      %v788 = vpop.f32.mrf.mxu0
      %v789 = vpop.f32.mrf.mxu0
      %790 = vdwg.mxu0
      %v791 = vld [vmem:[%s246 + $0x15] sm:$0xff]
      %v792 = vld [vmem:[%s246 + $0x1d] sm:$0xff]
      %v793 = vld [vmem:[%s246 + $0x25] sm:$0xff]
      %v794 = vld [vmem:[%s246 + $0x2d] sm:$0xff]
      %v795 = vld [vmem:[%s246 + $0x35] sm:$0xff]
      %v796 = vld [vmem:[%s246 + $0x3d] sm:$0xff]
      %v797 = vld [vmem:[%s246 + $0x45] sm:$0xff]
      %v798 = vld [vmem:[%s246 + $0x4d] sm:$0xff]
      %v799 = vld [vmem:[%s246 + $0x55] sm:$0xff]
      %v800 = vld [vmem:[%s246 + $0x5d] sm:$0xff]
      %v801 = vld [vmem:[%s246 + $0x65] sm:$0xff]
      %v802 = vld [vmem:[%s246 + $0x6d] sm:$0xff]
      %v803 = vld [vmem:[%s246 + $0x75] sm:$0xff]
      %v804 = vld [vmem:[%s246 + $0x7d] sm:$0xff]
      %v805 = vld [vmem:[%s246 + $0x85] sm:$0xff]
      %v806 = vld [vmem:[%s246 + $0x8d] sm:$0xff]
      %v807 = vld [vmem:[%s246 + $0x95] sm:$0xff]
      %v808 = vld [vmem:[%s246 + $0x9d] sm:$0xff]
      %v809 = vld [vmem:[%s246 + $0xa5] sm:$0xff]
      %v810 = vld [vmem:[%s246 + $0xad] sm:$0xff]
      %v811 = vld [vmem:[%s246 + $0xb5] sm:$0xff]
      %v812 = vld [vmem:[%s246 + $0xbd] sm:$0xff]
      %v813 = vld [vmem:[%s246 + $0xc5] sm:$0xff]
      %v814 = vld [vmem:[%s246 + $0xcd] sm:$0xff]
      %v815 = vld [vmem:[%s246 + $0xd5] sm:$0xff]
      %v816 = vld [vmem:[%s246 + $0xdd] sm:$0xff]
      %v817 = vld [vmem:[%s246 + $0xe5] sm:$0xff]
      %v818 = vld [vmem:[%s246 + $0xed] sm:$0xff]
      %v819 = vld [vmem:[%s246 + $0xf5] sm:$0xff]
      %v820 = vld [vmem:[%s246 + $0xfd] sm:$0xff]
      %v821 = vld [vmem:[%s246 + $0x105] sm:$0xff]
      %v822 = vld [vmem:[%s246 + $0x10d] sm:$0xff]
      %v823 = vld [vmem:[%s246 + $0x115] sm:$0xff]
      %v824 = vld [vmem:[%s246 + $0x11d] sm:$0xff]
      %v825 = vld [vmem:[%s246 + $0x125] sm:$0xff]
      %v826 = vld [vmem:[%s246 + $0x12d] sm:$0xff]
      %v827 = vld [vmem:[%s246 + $0x135] sm:$0xff]
      %v828 = vld [vmem:[%s246 + $0x13d] sm:$0xff]
      %v829 = vld [vmem:[%s246 + $0x145] sm:$0xff]
      %v830 = vld [vmem:[%s246 + $0x14d] sm:$0xff]
      %v831 = vld [vmem:[%s246 + $0x155] sm:$0xff]
      %v832 = vld [vmem:[%s246 + $0x15d] sm:$0xff]
      %v833 = vld [vmem:[%s246 + $0x165] sm:$0xff]
      %v834 = vld [vmem:[%s246 + $0x16d] sm:$0xff]
      %v835 = vld [vmem:[%s246 + $0x175] sm:$0xff]
      %v836 = vld [vmem:[%s246 + $0x17d] sm:$0xff]
      %v837 = vld [vmem:[%s246 + $0x185] sm:$0xff]
      %v838 = vld [vmem:[%s246 + $0x18d] sm:$0xff]
      %v839 = vld [vmem:[%s246 + $0x195] sm:$0xff]
      %v840 = vld [vmem:[%s246 + $0x19d] sm:$0xff]
      %v841 = vpack.c.bf16 %v792, %v791
      %v842 = vpack.c.bf16 %v794, %v793
      %v843 = vpack.c.bf16 %v796, %v795
      %v844 = vpack.c.bf16 %v798, %v797
      %v845 = vpack.c.bf16 %v800, %v799
      %v846 = vpack.c.bf16 %v802, %v801
      %v847 = vpack.c.bf16 %v804, %v803
      %v848 = vpack.c.bf16 %v806, %v805
      %v849 = vpack.c.bf16 %v808, %v807
      %v850 = vpack.c.bf16 %v810, %v809
      %v851 = vpack.c.bf16 %v812, %v811
      %v852 = vpack.c.bf16 %v814, %v813
      %v853 = vpack.c.bf16 %v816, %v815
      %v854 = vpack.c.bf16 %v818, %v817
      %v855 = vpack.c.bf16 %v820, %v819
      %v856 = vpack.c.bf16 %v822, %v821
      %v857 = vpack.c.bf16 %v824, %v823
      %v858 = vpack.c.bf16 %v826, %v825
      %v859 = vpack.c.bf16 %v828, %v827
      %v860 = vpack.c.bf16 %v830, %v829
      %v861 = vpack.c.bf16 %v832, %v831
      %v862 = vpack.c.bf16 %v834, %v833
      %v863 = vpack.c.bf16 %v836, %v835
      %v864 = vpack.c.bf16 %v838, %v837
      %v865 = vpack.c.bf16 %v840, %v839
      %s866 = scalar_lea.vmem %s1, 128
      %v867 = vld [vmem:[%s866] sm:$0xf]
      %v868 = vld [vmem:[%s866 + $0x4] sm:$0xf]
      %v869 = vld [vmem:[%s866 + $0x8] sm:$0xf]
      %v870 = vld [vmem:[%s866 + $0xc] sm:$0xf]
      %v871 = vld [vmem:[%s866 + $0x10] sm:$0xf]
      %v872 = vld [vmem:[%s866 + $0x14] sm:$0xf]
      %v873 = vld [vmem:[%s866 + $0x18] sm:$0xf]
      %v874 = vld [vmem:[%s866 + $0x1c] sm:$0xf]
      %v875 = vld [vmem:[%s866 + $0x20] sm:$0xf]
      %v876 = vld [vmem:[%s866 + $0x24] sm:$0xf]
      %v877 = vld [vmem:[%s866 + $0x28] sm:$0xf]
      %v878 = vld [vmem:[%s866 + $0x2c] sm:$0xf]
      %v879 = vld [vmem:[%s866 + $0x30] sm:$0xf]
      %v880 = vld [vmem:[%s866 + $0x34] sm:$0xf]
      %v881 = vld [vmem:[%s866 + $0x38] sm:$0xf]
      %v882 = vld [vmem:[%s866 + $0x3c] sm:$0xf]
      %v899 = vunpack.c.l.b16 %v867
      %v900 = vunpack.c.l.b16 %v868
      %v901 = vunpack.c.l.b16 %v869
      %v902 = vunpack.c.l.b16 %v870
      %v903 = vunpack.c.l.b16 %v871
      %v904 = vunpack.c.l.b16 %v872
      %v905 = vunpack.c.l.b16 %v873
      %v906 = vunpack.c.l.b16 %v874
      %v907 = vunpack.c.l.b16 %v875
      %v908 = vunpack.c.l.b16 %v876
      %v909 = vunpack.c.l.b16 %v877
      %v910 = vunpack.c.l.b16 %v878
      %v911 = vunpack.c.l.b16 %v879
      %v912 = vunpack.c.l.b16 %v880
      %v913 = vunpack.c.l.b16 %v881
      %v914 = vunpack.c.l.b16 %v882
      %v915 = vpack.c.b16 %v900, %v899
      %v916 = vpack.c.b16 %v902, %v901
      %v917 = vpack.c.b16 %v904, %v903
      %v918 = vpack.c.b16 %v906, %v905
      %v919 = vpack.c.b16 %v908, %v907
      %v920 = vpack.c.b16 %v910, %v909
      %v921 = vpack.c.b16 %v912, %v911
      %v922 = vpack.c.b16 %v914, %v913
      %931 = vmatpush.bf16.msra.mxu0 %v922
      %932 = vmatpush.bf16.msra.mxu0 %v921
      %933 = vmatpush.bf16.msra.mxu0 %v920
      %934 = vmatpush.bf16.msra.mxu0 %v919
      %935 = vmatpush.bf16.msra.mxu0 %v918
      %936 = vmatpush.bf16.msra.mxu0 %v917
      %937 = vmatpush.bf16.msra.mxu0 %v916
      %938 = vmatpush.bf16.msra.mxu0 %v915
      %939 = vmatmul.bf16.gmra.mxu0 %v841
      %v940 = vpop.f32.mrf.mxu0
      %v941 = vpop.f32.mrf.mxu0
      %942 = vmatmul.bf16.gmra.mxu0 %v842
      %v943 = vpop.f32.mrf.mxu0
      %v944 = vadd.f32 0.0, %v943
      %v945 = vpop.f32.mrf.mxu0
      %v946 = vadd.f32 0.0, %v945
      %947 = vmatmul.bf16.gmra.mxu0 %v843
      %v948 = vpop.f32.mrf.mxu0
      %v949 = vadd.f32 0.0, %v948
      %v950 = vpop.f32.mrf.mxu0
      %v951 = vadd.f32 0.0, %v950
      %952 = vmatmul.bf16.gmra.mxu0 %v844
      %v953 = vpop.f32.mrf.mxu0
      %v954 = vadd.f32 0.0, %v953
      %v955 = vpop.f32.mrf.mxu0
      %v956 = vadd.f32 0.0, %v955
      %957 = vmatmul.bf16.gmra.mxu0 %v845
      %v958 = vpop.f32.mrf.mxu0
      %v959 = vadd.f32 0.0, %v958
      %v960 = vpop.f32.mrf.mxu0
      %v961 = vadd.f32 0.0, %v960
      %962 = vmatmul.bf16.gmra.mxu0 %v846
      %v963 = vpop.f32.mrf.mxu0
      %v964 = vadd.f32 0.0, %v963
      %v965 = vpop.f32.mrf.mxu0
      %v966 = vadd.f32 0.0, %v965
      %967 = vmatmul.bf16.gmra.mxu0 %v847
      %v968 = vpop.f32.mrf.mxu0
      %v969 = vadd.f32 0.0, %v968
      %v970 = vpop.f32.mrf.mxu0
      %v971 = vadd.f32 0.0, %v970
      %972 = vmatmul.bf16.gmra.mxu0 %v848
      %v973 = vpop.f32.mrf.mxu0
      %v974 = vadd.f32 0.0, %v973
      %v975 = vpop.f32.mrf.mxu0
      %v976 = vadd.f32 0.0, %v975
      %977 = vmatmul.bf16.gmra.mxu0 %v849
      %v978 = vpop.f32.mrf.mxu0
      %v979 = vadd.f32 0.0, %v978
      %v980 = vpop.f32.mrf.mxu0
      %v981 = vadd.f32 0.0, %v980
      %982 = vmatmul.bf16.gmra.mxu0 %v850
      %v983 = vpop.f32.mrf.mxu0
      %v984 = vadd.f32 0.0, %v983
      %v985 = vpop.f32.mrf.mxu0
      %v986 = vadd.f32 0.0, %v985
      %987 = vmatmul.bf16.gmra.mxu0 %v851
      %v988 = vpop.f32.mrf.mxu0
      %v989 = vadd.f32 0.0, %v988
      %v990 = vpop.f32.mrf.mxu0
      %v991 = vadd.f32 0.0, %v990
      %992 = vmatmul.bf16.gmra.mxu0 %v852
      %v993 = vpop.f32.mrf.mxu0
      %v994 = vadd.f32 0.0, %v993
      %v995 = vpop.f32.mrf.mxu0
      %v996 = vadd.f32 0.0, %v995
      %997 = vmatmul.bf16.gmra.mxu0 %v853
      %v998 = vpop.f32.mrf.mxu0
      %v999 = vadd.f32 0.0, %v998
      %v1000 = vpop.f32.mrf.mxu0
      %v1001 = vadd.f32 0.0, %v1000
      %1002 = vmatmul.bf16.gmra.mxu0 %v854
      %v1003 = vpop.f32.mrf.mxu0
      %v1004 = vadd.f32 0.0, %v1003
      %v1005 = vpop.f32.mrf.mxu0
      %v1006 = vadd.f32 0.0, %v1005
      %1007 = vmatmul.bf16.gmra.mxu0 %v855
      %v1008 = vpop.f32.mrf.mxu0
      %v1009 = vadd.f32 0.0, %v1008
      %v1010 = vpop.f32.mrf.mxu0
      %v1011 = vadd.f32 0.0, %v1010
      %1012 = vmatmul.bf16.gmra.mxu0 %v856
      %v1013 = vpop.f32.mrf.mxu0
      %v1014 = vadd.f32 0.0, %v1013
      %v1015 = vpop.f32.mrf.mxu0
      %v1016 = vadd.f32 0.0, %v1015
      %1017 = vmatmul.bf16.gmra.mxu0 %v857
      %v1018 = vpop.f32.mrf.mxu0
      %v1019 = vadd.f32 0.0, %v1018
      %v1020 = vpop.f32.mrf.mxu0
      %v1021 = vadd.f32 0.0, %v1020
      %1022 = vmatmul.bf16.gmra.mxu0 %v858
      %v1023 = vpop.f32.mrf.mxu0
      %v1024 = vadd.f32 0.0, %v1023
      %v1025 = vpop.f32.mrf.mxu0
      %v1026 = vadd.f32 0.0, %v1025
      %1027 = vmatmul.bf16.gmra.mxu0 %v859
      %v1028 = vpop.f32.mrf.mxu0
      %v1029 = vadd.f32 0.0, %v1028
      %v1030 = vpop.f32.mrf.mxu0
      %v1031 = vadd.f32 0.0, %v1030
      %1032 = vmatmul.bf16.gmra.mxu0 %v860
      %v1033 = vpop.f32.mrf.mxu0
      %v1034 = vadd.f32 0.0, %v1033
      %v1035 = vpop.f32.mrf.mxu0
      %v1036 = vadd.f32 0.0, %v1035
      %1037 = vmatmul.bf16.gmra.mxu0 %v861
      %v1038 = vpop.f32.mrf.mxu0
      %v1039 = vadd.f32 0.0, %v1038
      %v1040 = vpop.f32.mrf.mxu0
      %v1041 = vadd.f32 0.0, %v1040
      %1042 = vmatmul.bf16.gmra.mxu0 %v862
      %v1043 = vpop.f32.mrf.mxu0
      %v1044 = vadd.f32 0.0, %v1043
      %v1045 = vpop.f32.mrf.mxu0
      %v1046 = vadd.f32 0.0, %v1045
      %1047 = vmatmul.bf16.gmra.mxu0 %v863
      %v1048 = vpop.f32.mrf.mxu0
      %v1049 = vadd.f32 0.0, %v1048
      %v1050 = vpop.f32.mrf.mxu0
      %v1051 = vadd.f32 0.0, %v1050
      %1052 = vmatmul.bf16.gmra.mxu0 %v864
      %v1053 = vpop.f32.mrf.mxu0
      %v1054 = vadd.f32 0.0, %v1053
      %v1055 = vpop.f32.mrf.mxu0
      %v1056 = vadd.f32 0.0, %v1055
      %1057 = vmatmul.bf16.gmra.mxu0 %v865
      %v1058 = vpop.f32.mrf.mxu0
      %v1059 = vpop.f32.mrf.mxu0
      %1060 = vdwg.mxu0
      %v1061 = vadd.f32 %v674, %v944
      %v1062 = vadd.f32 %v676, %v946
      %v1063 = vadd.f32 %v679, %v949
      %v1064 = vadd.f32 %v681, %v951
      %v1065 = vadd.f32 %v684, %v954
      %v1066 = vadd.f32 %v686, %v956
      %v1067 = vadd.f32 %v689, %v959
      %v1068 = vadd.f32 %v691, %v961
      %v1069 = vadd.f32 %v694, %v964
      %v1070 = vadd.f32 %v696, %v966
      %v1071 = vadd.f32 %v699, %v969
      %v1072 = vadd.f32 %v701, %v971
      %v1073 = vadd.f32 %v704, %v974
      %v1074 = vadd.f32 %v706, %v976
      %v1075 = vadd.f32 %v709, %v979
      %v1076 = vadd.f32 %v711, %v981
      %v1077 = vadd.f32 %v714, %v984
      %v1078 = vadd.f32 %v716, %v986
      %v1079 = vadd.f32 %v719, %v989
      %v1080 = vadd.f32 %v721, %v991
      %v1081 = vadd.f32 %v724, %v994
      %v1082 = vadd.f32 %v726, %v996
      %v1083 = vadd.f32 %v729, %v999
      %v1084 = vadd.f32 %v731, %v1001
      %v1085 = vadd.f32 %v734, %v1004
      %v1086 = vadd.f32 %v736, %v1006
      %v1087 = vadd.f32 %v739, %v1009
      %v1088 = vadd.f32 %v741, %v1011
      %v1089 = vadd.f32 %v744, %v1014
      %v1090 = vadd.f32 %v746, %v1016
      %v1091 = vadd.f32 %v749, %v1019
      %v1092 = vadd.f32 %v751, %v1021
      %v1093 = vadd.f32 %v754, %v1024
      %v1094 = vadd.f32 %v756, %v1026
      %v1095 = vadd.f32 %v759, %v1029
      %v1096 = vadd.f32 %v761, %v1031
      %v1097 = vadd.f32 %v764, %v1034
      %v1098 = vadd.f32 %v766, %v1036
      %v1099 = vadd.f32 %v769, %v1039
      %v1100 = vadd.f32 %v771, %v1041
      %v1101 = vadd.f32 %v774, %v1044
      %v1102 = vadd.f32 %v776, %v1046
      %v1103 = vadd.f32 %v779, %v1049
      %v1104 = vadd.f32 %v781, %v1051
      %v1105 = vadd.f32 %v784, %v1054
      %v1106 = vadd.f32 %v786, %v1056
      %v1107 = vld [vmem:[%s246 + $0x27] sm:$0xff]
      %v1108 = vld [vmem:[%s246 + $0x2f] sm:$0xff]
      %v1109 = vld [vmem:[%s246 + $0x37] sm:$0xff]
      %v1110 = vld [vmem:[%s246 + $0x3f] sm:$0xff]
      %v1111 = vld [vmem:[%s246 + $0x47] sm:$0xff]
      %v1112 = vld [vmem:[%s246 + $0x4f] sm:$0xff]
      %v1113 = vld [vmem:[%s246 + $0x57] sm:$0xff]
      %v1114 = vld [vmem:[%s246 + $0x5f] sm:$0xff]
      %v1115 = vld [vmem:[%s246 + $0x67] sm:$0xff]
      %v1116 = vld [vmem:[%s246 + $0x6f] sm:$0xff]
      %v1117 = vld [vmem:[%s246 + $0x77] sm:$0xff]
      %v1118 = vld [vmem:[%s246 + $0x7f] sm:$0xff]
      %v1119 = vld [vmem:[%s246 + $0x87] sm:$0xff]
      %v1120 = vld [vmem:[%s246 + $0x8f] sm:$0xff]
      %v1121 = vld [vmem:[%s246 + $0x97] sm:$0xff]
      %v1122 = vld [vmem:[%s246 + $0x9f] sm:$0xff]
      %v1123 = vld [vmem:[%s246 + $0xa7] sm:$0xff]
      %v1124 = vld [vmem:[%s246 + $0xaf] sm:$0xff]
      %v1125 = vld [vmem:[%s246 + $0xb7] sm:$0xff]
      %v1126 = vld [vmem:[%s246 + $0xbf] sm:$0xff]
      %v1127 = vld [vmem:[%s246 + $0xc7] sm:$0xff]
      %v1128 = vld [vmem:[%s246 + $0xcf] sm:$0xff]
      %v1129 = vld [vmem:[%s246 + $0xd7] sm:$0xff]
      %v1130 = vld [vmem:[%s246 + $0xdf] sm:$0xff]
      %v1131 = vld [vmem:[%s246 + $0xe7] sm:$0xff]
      %v1132 = vld [vmem:[%s246 + $0xef] sm:$0xff]
      %v1133 = vld [vmem:[%s246 + $0xf7] sm:$0xff]
      %v1134 = vld [vmem:[%s246 + $0xff] sm:$0xff]
      %v1135 = vld [vmem:[%s246 + $0x107] sm:$0xff]
      %v1136 = vld [vmem:[%s246 + $0x10f] sm:$0xff]
      %v1137 = vld [vmem:[%s246 + $0x117] sm:$0xff]
      %v1138 = vld [vmem:[%s246 + $0x11f] sm:$0xff]
      %v1139 = vld [vmem:[%s246 + $0x127] sm:$0xff]
      %v1140 = vld [vmem:[%s246 + $0x12f] sm:$0xff]
      %v1141 = vld [vmem:[%s246 + $0x137] sm:$0xff]
      %v1142 = vld [vmem:[%s246 + $0x13f] sm:$0xff]
      %v1143 = vld [vmem:[%s246 + $0x147] sm:$0xff]
      %v1144 = vld [vmem:[%s246 + $0x14f] sm:$0xff]
      %v1145 = vld [vmem:[%s246 + $0x157] sm:$0xff]
      %v1146 = vld [vmem:[%s246 + $0x15f] sm:$0xff]
      %v1147 = vld [vmem:[%s246 + $0x167] sm:$0xff]
      %v1148 = vld [vmem:[%s246 + $0x16f] sm:$0xff]
      %v1149 = vld [vmem:[%s246 + $0x177] sm:$0xff]
      %v1150 = vld [vmem:[%s246 + $0x17f] sm:$0xff]
      %v1151 = vld [vmem:[%s246 + $0x187] sm:$0xff]
      %v1152 = vld [vmem:[%s246 + $0x18f] sm:$0xff]
      %v1153 = vld [vmem:[%s246 + $0x197] sm:$0xff]
      %v1154 = vld [vmem:[%s246 + $0x19f] sm:$0xff]
      %v1155 = vld [vmem:[%s246 + $0x1a7] sm:$0xff]
      %v1156 = vld [vmem:[%s246 + $0x1af] sm:$0xff]
      %v1157 = vpack.c.bf16 %v1108, %v1107
      %v1158 = vpack.c.bf16 %v1110, %v1109
      %v1159 = vpack.c.bf16 %v1112, %v1111
      %v1160 = vpack.c.bf16 %v1114, %v1113
      %v1161 = vpack.c.bf16 %v1116, %v1115
      %v1162 = vpack.c.bf16 %v1118, %v1117
      %v1163 = vpack.c.bf16 %v1120, %v1119
      %v1164 = vpack.c.bf16 %v1122, %v1121
      %v1165 = vpack.c.bf16 %v1124, %v1123
      %v1166 = vpack.c.bf16 %v1126, %v1125
      %v1167 = vpack.c.bf16 %v1128, %v1127
      %v1168 = vpack.c.bf16 %v1130, %v1129
      %v1169 = vpack.c.bf16 %v1132, %v1131
      %v1170 = vpack.c.bf16 %v1134, %v1133
      %v1171 = vpack.c.bf16 %v1136, %v1135
      %v1172 = vpack.c.bf16 %v1138, %v1137
      %v1173 = vpack.c.bf16 %v1140, %v1139
      %v1174 = vpack.c.bf16 %v1142, %v1141
      %v1175 = vpack.c.bf16 %v1144, %v1143
      %v1176 = vpack.c.bf16 %v1146, %v1145
      %v1177 = vpack.c.bf16 %v1148, %v1147
      %v1178 = vpack.c.bf16 %v1150, %v1149
      %v1179 = vpack.c.bf16 %v1152, %v1151
      %v1180 = vpack.c.bf16 %v1154, %v1153
      %v1181 = vpack.c.bf16 %v1156, %v1155
      %s1182 = scalar_lea.vmem %s1, 192
      %v1183 = vld [vmem:[%s1182] sm:$0xf]
      %v1184 = vld [vmem:[%s1182 + $0x4] sm:$0xf]
      %v1185 = vld [vmem:[%s1182 + $0x8] sm:$0xf]
      %v1186 = vld [vmem:[%s1182 + $0xc] sm:$0xf]
      %v1187 = vld [vmem:[%s1182 + $0x10] sm:$0xf]
      %v1188 = vld [vmem:[%s1182 + $0x14] sm:$0xf]
      %v1189 = vld [vmem:[%s1182 + $0x18] sm:$0xf]
      %v1190 = vld [vmem:[%s1182 + $0x1c] sm:$0xf]
      %v1191 = vld [vmem:[%s1182 + $0x20] sm:$0xf]
      %v1192 = vld [vmem:[%s1182 + $0x24] sm:$0xf]
      %v1193 = vld [vmem:[%s1182 + $0x28] sm:$0xf]
      %v1194 = vld [vmem:[%s1182 + $0x2c] sm:$0xf]
      %v1195 = vld [vmem:[%s1182 + $0x30] sm:$0xf]
      %v1196 = vld [vmem:[%s1182 + $0x34] sm:$0xf]
      %v1197 = vld [vmem:[%s1182 + $0x38] sm:$0xf]
      %v1198 = vld [vmem:[%s1182 + $0x3c] sm:$0xf]
      %v1215 = vunpack.c.l.b16 %v1183
      %v1216 = vunpack.c.l.b16 %v1184
      %v1217 = vunpack.c.l.b16 %v1185
      %v1218 = vunpack.c.l.b16 %v1186
      %v1219 = vunpack.c.l.b16 %v1187
      %v1220 = vunpack.c.l.b16 %v1188
      %v1221 = vunpack.c.l.b16 %v1189
      %v1222 = vunpack.c.l.b16 %v1190
      %v1223 = vunpack.c.l.b16 %v1191
      %v1224 = vunpack.c.l.b16 %v1192
      %v1225 = vunpack.c.l.b16 %v1193
      %v1226 = vunpack.c.l.b16 %v1194
      %v1227 = vunpack.c.l.b16 %v1195
      %v1228 = vunpack.c.l.b16 %v1196
      %v1229 = vunpack.c.l.b16 %v1197
      %v1230 = vunpack.c.l.b16 %v1198
      %v1231 = vpack.c.b16 %v1216, %v1215
      %v1232 = vpack.c.b16 %v1218, %v1217
      %v1233 = vpack.c.b16 %v1220, %v1219
      %v1234 = vpack.c.b16 %v1222, %v1221
      %v1235 = vpack.c.b16 %v1224, %v1223
      %v1236 = vpack.c.b16 %v1226, %v1225
      %v1237 = vpack.c.b16 %v1228, %v1227
      %v1238 = vpack.c.b16 %v1230, %v1229
      %1247 = vmatpush.bf16.msra.mxu0 %v1238
      %1248 = vmatpush.bf16.msra.mxu0 %v1237
      %1249 = vmatpush.bf16.msra.mxu0 %v1236
      %1250 = vmatpush.bf16.msra.mxu0 %v1235
      %1251 = vmatpush.bf16.msra.mxu0 %v1234
      %1252 = vmatpush.bf16.msra.mxu0 %v1233
      %1253 = vmatpush.bf16.msra.mxu0 %v1232
      %1254 = vmatpush.bf16.msra.mxu0 %v1231
      %1255 = vmatmul.bf16.gmra.mxu0 %v1157
      %v1256 = vpop.f32.mrf.mxu0
      %v1257 = vpop.f32.mrf.mxu0
      %1258 = vmatmul.bf16.gmra.mxu0 %v1158
      %v1259 = vpop.f32.mrf.mxu0
      %v1260 = vadd.f32 0.0, %v1259
      %v1261 = vpop.f32.mrf.mxu0
      %v1262 = vadd.f32 0.0, %v1261
      %1263 = vmatmul.bf16.gmra.mxu0 %v1159
      %v1264 = vpop.f32.mrf.mxu0
      %v1265 = vadd.f32 0.0, %v1264
      %v1266 = vpop.f32.mrf.mxu0
      %v1267 = vadd.f32 0.0, %v1266
      %1268 = vmatmul.bf16.gmra.mxu0 %v1160
      %v1269 = vpop.f32.mrf.mxu0
      %v1270 = vadd.f32 0.0, %v1269
      %v1271 = vpop.f32.mrf.mxu0
      %v1272 = vadd.f32 0.0, %v1271
      %1273 = vmatmul.bf16.gmra.mxu0 %v1161
      %v1274 = vpop.f32.mrf.mxu0
      %v1275 = vadd.f32 0.0, %v1274
      %v1276 = vpop.f32.mrf.mxu0
      %v1277 = vadd.f32 0.0, %v1276
      %1278 = vmatmul.bf16.gmra.mxu0 %v1162
      %v1279 = vpop.f32.mrf.mxu0
      %v1280 = vadd.f32 0.0, %v1279
      %v1281 = vpop.f32.mrf.mxu0
      %v1282 = vadd.f32 0.0, %v1281
      %1283 = vmatmul.bf16.gmra.mxu0 %v1163
      %v1284 = vpop.f32.mrf.mxu0
      %v1285 = vadd.f32 0.0, %v1284
      %v1286 = vpop.f32.mrf.mxu0
      %v1287 = vadd.f32 0.0, %v1286
      %1288 = vmatmul.bf16.gmra.mxu0 %v1164
      %v1289 = vpop.f32.mrf.mxu0
      %v1290 = vadd.f32 0.0, %v1289
      %v1291 = vpop.f32.mrf.mxu0
      %v1292 = vadd.f32 0.0, %v1291
      %1293 = vmatmul.bf16.gmra.mxu0 %v1165
      %v1294 = vpop.f32.mrf.mxu0
      %v1295 = vadd.f32 0.0, %v1294
      %v1296 = vpop.f32.mrf.mxu0
      %v1297 = vadd.f32 0.0, %v1296
      %1298 = vmatmul.bf16.gmra.mxu0 %v1166
      %v1299 = vpop.f32.mrf.mxu0
      %v1300 = vadd.f32 0.0, %v1299
      %v1301 = vpop.f32.mrf.mxu0
      %v1302 = vadd.f32 0.0, %v1301
      %1303 = vmatmul.bf16.gmra.mxu0 %v1167
      %v1304 = vpop.f32.mrf.mxu0
      %v1305 = vadd.f32 0.0, %v1304
      %v1306 = vpop.f32.mrf.mxu0
      %v1307 = vadd.f32 0.0, %v1306
      %1308 = vmatmul.bf16.gmra.mxu0 %v1168
      %v1309 = vpop.f32.mrf.mxu0
      %v1310 = vadd.f32 0.0, %v1309
      %v1311 = vpop.f32.mrf.mxu0
      %v1312 = vadd.f32 0.0, %v1311
      %1313 = vmatmul.bf16.gmra.mxu0 %v1169
      %v1314 = vpop.f32.mrf.mxu0
      %v1315 = vadd.f32 0.0, %v1314
      %v1316 = vpop.f32.mrf.mxu0
      %v1317 = vadd.f32 0.0, %v1316
      %1318 = vmatmul.bf16.gmra.mxu0 %v1170
      %v1319 = vpop.f32.mrf.mxu0
      %v1320 = vadd.f32 0.0, %v1319
      %v1321 = vpop.f32.mrf.mxu0
      %v1322 = vadd.f32 0.0, %v1321
      %1323 = vmatmul.bf16.gmra.mxu0 %v1171
      %v1324 = vpop.f32.mrf.mxu0
      %v1325 = vadd.f32 0.0, %v1324
      %v1326 = vpop.f32.mrf.mxu0
      %v1327 = vadd.f32 0.0, %v1326
      %1328 = vmatmul.bf16.gmra.mxu0 %v1172
      %v1329 = vpop.f32.mrf.mxu0
      %v1330 = vadd.f32 0.0, %v1329
      %v1331 = vpop.f32.mrf.mxu0
      %v1332 = vadd.f32 0.0, %v1331
      %1333 = vmatmul.bf16.gmra.mxu0 %v1173
      %v1334 = vpop.f32.mrf.mxu0
      %v1335 = vadd.f32 0.0, %v1334
      %v1336 = vpop.f32.mrf.mxu0
      %v1337 = vadd.f32 0.0, %v1336
      %1338 = vmatmul.bf16.gmra.mxu0 %v1174
      %v1339 = vpop.f32.mrf.mxu0
      %v1340 = vadd.f32 0.0, %v1339
      %v1341 = vpop.f32.mrf.mxu0
      %v1342 = vadd.f32 0.0, %v1341
      %1343 = vmatmul.bf16.gmra.mxu0 %v1175
      %v1344 = vpop.f32.mrf.mxu0
      %v1345 = vadd.f32 0.0, %v1344
      %v1346 = vpop.f32.mrf.mxu0
      %v1347 = vadd.f32 0.0, %v1346
      %1348 = vmatmul.bf16.gmra.mxu0 %v1176
      %v1349 = vpop.f32.mrf.mxu0
      %v1350 = vadd.f32 0.0, %v1349
      %v1351 = vpop.f32.mrf.mxu0
      %v1352 = vadd.f32 0.0, %v1351
      %1353 = vmatmul.bf16.gmra.mxu0 %v1177
      %v1354 = vpop.f32.mrf.mxu0
      %v1355 = vadd.f32 0.0, %v1354
      %v1356 = vpop.f32.mrf.mxu0
      %v1357 = vadd.f32 0.0, %v1356
      %1358 = vmatmul.bf16.gmra.mxu0 %v1178
      %v1359 = vpop.f32.mrf.mxu0
      %v1360 = vadd.f32 0.0, %v1359
      %v1361 = vpop.f32.mrf.mxu0
      %v1362 = vadd.f32 0.0, %v1361
      %1363 = vmatmul.bf16.gmra.mxu0 %v1179
      %v1364 = vpop.f32.mrf.mxu0
      %v1365 = vadd.f32 0.0, %v1364
      %v1366 = vpop.f32.mrf.mxu0
      %v1367 = vadd.f32 0.0, %v1366
      %1368 = vmatmul.bf16.gmra.mxu0 %v1180
      %v1369 = vpop.f32.mrf.mxu0
      %v1370 = vadd.f32 0.0, %v1369
      %v1371 = vpop.f32.mrf.mxu0
      %v1372 = vadd.f32 0.0, %v1371
      %1373 = vmatmul.bf16.gmra.mxu0 %v1181
      %v1374 = vpop.f32.mrf.mxu0
      %v1375 = vpop.f32.mrf.mxu0
      %1376 = vdwg.mxu0
      %v1377 = vadd.f32 %v1061, %v1260
      %v1378 = vadd.f32 %v1062, %v1262
      %v1379 = vadd.f32 %v1063, %v1265
      %v1380 = vadd.f32 %v1064, %v1267
      %v1381 = vadd.f32 %v1065, %v1270
      %v1382 = vadd.f32 %v1066, %v1272
      %v1383 = vadd.f32 %v1067, %v1275
      %v1384 = vadd.f32 %v1068, %v1277
      %v1385 = vadd.f32 %v1069, %v1280
      %v1386 = vadd.f32 %v1070, %v1282
      %v1387 = vadd.f32 %v1071, %v1285
      %v1388 = vadd.f32 %v1072, %v1287
      %v1389 = vadd.f32 %v1073, %v1290
      %v1390 = vadd.f32 %v1074, %v1292
      %v1391 = vadd.f32 %v1075, %v1295
      %v1392 = vadd.f32 %v1076, %v1297
      %v1393 = vadd.f32 %v1077, %v1300
      %v1394 = vadd.f32 %v1078, %v1302
      %v1395 = vadd.f32 %v1079, %v1305
      %v1396 = vadd.f32 %v1080, %v1307
      %v1397 = vadd.f32 %v1081, %v1310
      %v1398 = vadd.f32 %v1082, %v1312
      %v1399 = vadd.f32 %v1083, %v1315
      %v1400 = vadd.f32 %v1084, %v1317
      %v1401 = vadd.f32 %v1085, %v1320
      %v1402 = vadd.f32 %v1086, %v1322
      %v1403 = vadd.f32 %v1087, %v1325
      %v1404 = vadd.f32 %v1088, %v1327
      %v1405 = vadd.f32 %v1089, %v1330
      %v1406 = vadd.f32 %v1090, %v1332
      %v1407 = vadd.f32 %v1091, %v1335
      %v1408 = vadd.f32 %v1092, %v1337
      %v1409 = vadd.f32 %v1093, %v1340
      %v1410 = vadd.f32 %v1094, %v1342
      %v1411 = vadd.f32 %v1095, %v1345
      %v1412 = vadd.f32 %v1096, %v1347
      %v1413 = vadd.f32 %v1097, %v1350
      %v1414 = vadd.f32 %v1098, %v1352
      %v1415 = vadd.f32 %v1099, %v1355
      %v1416 = vadd.f32 %v1100, %v1357
      %v1417 = vadd.f32 %v1101, %v1360
      %v1418 = vadd.f32 %v1102, %v1362
      %v1419 = vadd.f32 %v1103, %v1365
      %v1420 = vadd.f32 %v1104, %v1367
      %v1421 = vadd.f32 %v1105, %v1370
      %v1422 = vadd.f32 %v1106, %v1372
      %v1423 = vld [vmem:[%s246 + $0x28] sm:$0xff]
      %v1424 = vld [vmem:[%s246 + $0x30] sm:$0xff]
      %v1425 = vld [vmem:[%s246 + $0x38] sm:$0xff]
      %v1426 = vld [vmem:[%s246 + $0x40] sm:$0xff]
      %v1427 = vld [vmem:[%s246 + $0x48] sm:$0xff]
      %v1428 = vld [vmem:[%s246 + $0x50] sm:$0xff]
      %v1429 = vld [vmem:[%s246 + $0x58] sm:$0xff]
      %v1430 = vld [vmem:[%s246 + $0x60] sm:$0xff]
      %v1431 = vld [vmem:[%s246 + $0x68] sm:$0xff]
      %v1432 = vld [vmem:[%s246 + $0x70] sm:$0xff]
      %v1433 = vld [vmem:[%s246 + $0x78] sm:$0xff]
      %v1434 = vld [vmem:[%s246 + $0x80] sm:$0xff]
      %v1435 = vld [vmem:[%s246 + $0x88] sm:$0xff]
      %v1436 = vld [vmem:[%s246 + $0x90] sm:$0xff]
      %v1437 = vld [vmem:[%s246 + $0x98] sm:$0xff]
      %v1438 = vld [vmem:[%s246 + $0xa0] sm:$0xff]
      %v1439 = vld [vmem:[%s246 + $0xa8] sm:$0xff]
      %v1440 = vld [vmem:[%s246 + $0xb0] sm:$0xff]
      %v1441 = vld [vmem:[%s246 + $0xb8] sm:$0xff]
      %v1442 = vld [vmem:[%s246 + $0xc0] sm:$0xff]
      %v1443 = vld [vmem:[%s246 + $0xc8] sm:$0xff]
      %v1444 = vld [vmem:[%s246 + $0xd0] sm:$0xff]
      %v1445 = vld [vmem:[%s246 + $0xd8] sm:$0xff]
      %v1446 = vld [vmem:[%s246 + $0xe0] sm:$0xff]
      %v1447 = vld [vmem:[%s246 + $0xe8] sm:$0xff]
      %v1448 = vld [vmem:[%s246 + $0xf0] sm:$0xff]
      %v1449 = vld [vmem:[%s246 + $0xf8] sm:$0xff]
      %v1450 = vld [vmem:[%s246 + $0x100] sm:$0xff]
      %v1451 = vld [vmem:[%s246 + $0x108] sm:$0xff]
      %v1452 = vld [vmem:[%s246 + $0x110] sm:$0xff]
      %v1453 = vld [vmem:[%s246 + $0x118] sm:$0xff]
      %v1454 = vld [vmem:[%s246 + $0x120] sm:$0xff]
      %v1455 = vld [vmem:[%s246 + $0x128] sm:$0xff]
      %v1456 = vld [vmem:[%s246 + $0x130] sm:$0xff]
      %v1457 = vld [vmem:[%s246 + $0x138] sm:$0xff]
      %v1458 = vld [vmem:[%s246 + $0x140] sm:$0xff]
      %v1459 = vld [vmem:[%s246 + $0x148] sm:$0xff]
      %v1460 = vld [vmem:[%s246 + $0x150] sm:$0xff]
      %v1461 = vld [vmem:[%s246 + $0x158] sm:$0xff]
      %v1462 = vld [vmem:[%s246 + $0x160] sm:$0xff]
      %v1463 = vld [vmem:[%s246 + $0x168] sm:$0xff]
      %v1464 = vld [vmem:[%s246 + $0x170] sm:$0xff]
      %v1465 = vld [vmem:[%s246 + $0x178] sm:$0xff]
      %v1466 = vld [vmem:[%s246 + $0x180] sm:$0xff]
      %v1467 = vld [vmem:[%s246 + $0x188] sm:$0xff]
      %v1468 = vld [vmem:[%s246 + $0x190] sm:$0xff]
      %v1469 = vld [vmem:[%s246 + $0x198] sm:$0xff]
      %v1470 = vld [vmem:[%s246 + $0x1a0] sm:$0xff]
      %v1471 = vld [vmem:[%s246 + $0x1a8] sm:$0xff]
      %v1472 = vld [vmem:[%s246 + $0x1b0] sm:$0xff]
      %v1473 = vpack.c.bf16 %v1424, %v1423
      %v1474 = vpack.c.bf16 %v1426, %v1425
      %v1475 = vpack.c.bf16 %v1428, %v1427
      %v1476 = vpack.c.bf16 %v1430, %v1429
      %v1477 = vpack.c.bf16 %v1432, %v1431
      %v1478 = vpack.c.bf16 %v1434, %v1433
      %v1479 = vpack.c.bf16 %v1436, %v1435
      %v1480 = vpack.c.bf16 %v1438, %v1437
      %v1481 = vpack.c.bf16 %v1440, %v1439
      %v1482 = vpack.c.bf16 %v1442, %v1441
      %v1483 = vpack.c.bf16 %v1444, %v1443
      %v1484 = vpack.c.bf16 %v1446, %v1445
      %v1485 = vpack.c.bf16 %v1448, %v1447
      %v1486 = vpack.c.bf16 %v1450, %v1449
      %v1487 = vpack.c.bf16 %v1452, %v1451
      %v1488 = vpack.c.bf16 %v1454, %v1453
      %v1489 = vpack.c.bf16 %v1456, %v1455
      %v1490 = vpack.c.bf16 %v1458, %v1457
      %v1491 = vpack.c.bf16 %v1460, %v1459
      %v1492 = vpack.c.bf16 %v1462, %v1461
      %v1493 = vpack.c.bf16 %v1464, %v1463
      %v1494 = vpack.c.bf16 %v1466, %v1465
      %v1495 = vpack.c.bf16 %v1468, %v1467
      %v1496 = vpack.c.bf16 %v1470, %v1469
      %v1497 = vpack.c.bf16 %v1472, %v1471
      %s1498 = scalar_lea.vmem %s1, 256
      %v1499 = vld [vmem:[%s1498] sm:$0xf]
      %v1500 = vld [vmem:[%s1498 + $0x4] sm:$0xf]
      %v1501 = vld [vmem:[%s1498 + $0x8] sm:$0xf]
      %v1502 = vld [vmem:[%s1498 + $0xc] sm:$0xf]
      %v1503 = vld [vmem:[%s1498 + $0x10] sm:$0xf]
      %v1504 = vld [vmem:[%s1498 + $0x14] sm:$0xf]
      %v1505 = vld [vmem:[%s1498 + $0x18] sm:$0xf]
      %v1506 = vld [vmem:[%s1498 + $0x1c] sm:$0xf]
      %v1507 = vld [vmem:[%s1498 + $0x20] sm:$0xf]
      %v1508 = vld [vmem:[%s1498 + $0x24] sm:$0xf]
      %v1509 = vld [vmem:[%s1498 + $0x28] sm:$0xf]
      %v1510 = vld [vmem:[%s1498 + $0x2c] sm:$0xf]
      %v1511 = vld [vmem:[%s1498 + $0x30] sm:$0xf]
      %v1512 = vld [vmem:[%s1498 + $0x34] sm:$0xf]
      %v1513 = vld [vmem:[%s1498 + $0x38] sm:$0xf]
      %v1514 = vld [vmem:[%s1498 + $0x3c] sm:$0xf]
      %v1531 = vunpack.c.l.b16 %v1499
      %v1532 = vunpack.c.l.b16 %v1500
      %v1533 = vunpack.c.l.b16 %v1501
      %v1534 = vunpack.c.l.b16 %v1502
      %v1535 = vunpack.c.l.b16 %v1503
      %v1536 = vunpack.c.l.b16 %v1504
      %v1537 = vunpack.c.l.b16 %v1505
      %v1538 = vunpack.c.l.b16 %v1506
      %v1539 = vunpack.c.l.b16 %v1507
      %v1540 = vunpack.c.l.b16 %v1508
      %v1541 = vunpack.c.l.b16 %v1509
      %v1542 = vunpack.c.l.b16 %v1510
      %v1543 = vunpack.c.l.b16 %v1511
      %v1544 = vunpack.c.l.b16 %v1512
      %v1545 = vunpack.c.l.b16 %v1513
      %v1546 = vunpack.c.l.b16 %v1514
      %v1547 = vpack.c.b16 %v1532, %v1531
      %v1548 = vpack.c.b16 %v1534, %v1533
      %v1549 = vpack.c.b16 %v1536, %v1535
      %v1550 = vpack.c.b16 %v1538, %v1537
      %v1551 = vpack.c.b16 %v1540, %v1539
      %v1552 = vpack.c.b16 %v1542, %v1541
      %v1553 = vpack.c.b16 %v1544, %v1543
      %v1554 = vpack.c.b16 %v1546, %v1545
      %1563 = vmatpush.bf16.msra.mxu0 %v1554
      %1564 = vmatpush.bf16.msra.mxu0 %v1553
      %1565 = vmatpush.bf16.msra.mxu0 %v1552
      %1566 = vmatpush.bf16.msra.mxu0 %v1551
      %1567 = vmatpush.bf16.msra.mxu0 %v1550
      %1568 = vmatpush.bf16.msra.mxu0 %v1549
      %1569 = vmatpush.bf16.msra.mxu0 %v1548
      %1570 = vmatpush.bf16.msra.mxu0 %v1547
      %1571 = vmatmul.bf16.gmra.mxu0 %v1473
      %v1572 = vpop.f32.mrf.mxu0
      %v1573 = vpop.f32.mrf.mxu0
      %1574 = vmatmul.bf16.gmra.mxu0 %v1474
      %v1575 = vpop.f32.mrf.mxu0
      %v1576 = vadd.f32 0.0, %v1575
      %v1577 = vpop.f32.mrf.mxu0
      %v1578 = vadd.f32 0.0, %v1577
      %1579 = vmatmul.bf16.gmra.mxu0 %v1475
      %v1580 = vpop.f32.mrf.mxu0
      %v1581 = vadd.f32 0.0, %v1580
      %v1582 = vpop.f32.mrf.mxu0
      %v1583 = vadd.f32 0.0, %v1582
      %1584 = vmatmul.bf16.gmra.mxu0 %v1476
      %v1585 = vpop.f32.mrf.mxu0
      %v1586 = vadd.f32 0.0, %v1585
      %v1587 = vpop.f32.mrf.mxu0
      %v1588 = vadd.f32 0.0, %v1587
      %1589 = vmatmul.bf16.gmra.mxu0 %v1477
      %v1590 = vpop.f32.mrf.mxu0
      %v1591 = vadd.f32 0.0, %v1590
      %v1592 = vpop.f32.mrf.mxu0
      %v1593 = vadd.f32 0.0, %v1592
      %1594 = vmatmul.bf16.gmra.mxu0 %v1478
      %v1595 = vpop.f32.mrf.mxu0
      %v1596 = vadd.f32 0.0, %v1595
      %v1597 = vpop.f32.mrf.mxu0
      %v1598 = vadd.f32 0.0, %v1597
      %1599 = vmatmul.bf16.gmra.mxu0 %v1479
      %v1600 = vpop.f32.mrf.mxu0
      %v1601 = vadd.f32 0.0, %v1600
      %v1602 = vpop.f32.mrf.mxu0
      %v1603 = vadd.f32 0.0, %v1602
      %1604 = vmatmul.bf16.gmra.mxu0 %v1480
      %v1605 = vpop.f32.mrf.mxu0
      %v1606 = vadd.f32 0.0, %v1605
      %v1607 = vpop.f32.mrf.mxu0
      %v1608 = vadd.f32 0.0, %v1607
      %1609 = vmatmul.bf16.gmra.mxu0 %v1481
      %v1610 = vpop.f32.mrf.mxu0
      %v1611 = vadd.f32 0.0, %v1610
      %v1612 = vpop.f32.mrf.mxu0
      %v1613 = vadd.f32 0.0, %v1612
      %1614 = vmatmul.bf16.gmra.mxu0 %v1482
      %v1615 = vpop.f32.mrf.mxu0
      %v1616 = vadd.f32 0.0, %v1615
      %v1617 = vpop.f32.mrf.mxu0
      %v1618 = vadd.f32 0.0, %v1617
      %1619 = vmatmul.bf16.gmra.mxu0 %v1483
      %v1620 = vpop.f32.mrf.mxu0
      %v1621 = vadd.f32 0.0, %v1620
      %v1622 = vpop.f32.mrf.mxu0
      %v1623 = vadd.f32 0.0, %v1622
      %1624 = vmatmul.bf16.gmra.mxu0 %v1484
      %v1625 = vpop.f32.mrf.mxu0
      %v1626 = vadd.f32 0.0, %v1625
      %v1627 = vpop.f32.mrf.mxu0
      %v1628 = vadd.f32 0.0, %v1627
      %1629 = vmatmul.bf16.gmra.mxu0 %v1485
      %v1630 = vpop.f32.mrf.mxu0
      %v1631 = vadd.f32 0.0, %v1630
      %v1632 = vpop.f32.mrf.mxu0
      %v1633 = vadd.f32 0.0, %v1632
      %1634 = vmatmul.bf16.gmra.mxu0 %v1486
      %v1635 = vpop.f32.mrf.mxu0
      %v1636 = vadd.f32 0.0, %v1635
      %v1637 = vpop.f32.mrf.mxu0
      %v1638 = vadd.f32 0.0, %v1637
      %1639 = vmatmul.bf16.gmra.mxu0 %v1487
      %v1640 = vpop.f32.mrf.mxu0
      %v1641 = vadd.f32 0.0, %v1640
      %v1642 = vpop.f32.mrf.mxu0
      %v1643 = vadd.f32 0.0, %v1642
      %1644 = vmatmul.bf16.gmra.mxu0 %v1488
      %v1645 = vpop.f32.mrf.mxu0
      %v1646 = vadd.f32 0.0, %v1645
      %v1647 = vpop.f32.mrf.mxu0
      %v1648 = vadd.f32 0.0, %v1647
      %1649 = vmatmul.bf16.gmra.mxu0 %v1489
      %v1650 = vpop.f32.mrf.mxu0
      %v1651 = vadd.f32 0.0, %v1650
      %v1652 = vpop.f32.mrf.mxu0
      %v1653 = vadd.f32 0.0, %v1652
      %1654 = vmatmul.bf16.gmra.mxu0 %v1490
      %v1655 = vpop.f32.mrf.mxu0
      %v1656 = vadd.f32 0.0, %v1655
      %v1657 = vpop.f32.mrf.mxu0
      %v1658 = vadd.f32 0.0, %v1657
      %1659 = vmatmul.bf16.gmra.mxu0 %v1491
      %v1660 = vpop.f32.mrf.mxu0
      %v1661 = vadd.f32 0.0, %v1660
      %v1662 = vpop.f32.mrf.mxu0
      %v1663 = vadd.f32 0.0, %v1662
      %1664 = vmatmul.bf16.gmra.mxu0 %v1492
      %v1665 = vpop.f32.mrf.mxu0
      %v1666 = vadd.f32 0.0, %v1665
      %v1667 = vpop.f32.mrf.mxu0
      %v1668 = vadd.f32 0.0, %v1667
      %1669 = vmatmul.bf16.gmra.mxu0 %v1493
      %v1670 = vpop.f32.mrf.mxu0
      %v1671 = vadd.f32 0.0, %v1670
      %v1672 = vpop.f32.mrf.mxu0
      %v1673 = vadd.f32 0.0, %v1672
      %1674 = vmatmul.bf16.gmra.mxu0 %v1494
      %v1675 = vpop.f32.mrf.mxu0
      %v1676 = vadd.f32 0.0, %v1675
      %v1677 = vpop.f32.mrf.mxu0
      %v1678 = vadd.f32 0.0, %v1677
      %1679 = vmatmul.bf16.gmra.mxu0 %v1495
      %v1680 = vpop.f32.mrf.mxu0
      %v1681 = vadd.f32 0.0, %v1680
      %v1682 = vpop.f32.mrf.mxu0
      %v1683 = vadd.f32 0.0, %v1682
      %1684 = vmatmul.bf16.gmra.mxu0 %v1496
      %v1685 = vpop.f32.mrf.mxu0
      %v1686 = vadd.f32 0.0, %v1685
      %v1687 = vpop.f32.mrf.mxu0
      %v1688 = vadd.f32 0.0, %v1687
      %1689 = vmatmul.bf16.gmra.mxu0 %v1497
      %v1690 = vpop.f32.mrf.mxu0
      %v1691 = vpop.f32.mrf.mxu0
      %1692 = vdwg.mxu0
      %v1693 = vadd.f32 %v1377, %v1576
      %v1694 = vadd.f32 %v1378, %v1578
      %v1695 = vadd.f32 %v1379, %v1581
      %v1696 = vadd.f32 %v1380, %v1583
      %v1697 = vadd.f32 %v1381, %v1586
      %v1698 = vadd.f32 %v1382, %v1588
      %v1699 = vadd.f32 %v1383, %v1591
      %v1700 = vadd.f32 %v1384, %v1593
      %v1701 = vadd.f32 %v1385, %v1596
      %v1702 = vadd.f32 %v1386, %v1598
      %v1703 = vadd.f32 %v1387, %v1601
      %v1704 = vadd.f32 %v1388, %v1603
      %v1705 = vadd.f32 %v1389, %v1606
      %v1706 = vadd.f32 %v1390, %v1608
      %v1707 = vadd.f32 %v1391, %v1611
      %v1708 = vadd.f32 %v1392, %v1613
      %v1709 = vadd.f32 %v1393, %v1616
      %v1710 = vadd.f32 %v1394, %v1618
      %v1711 = vadd.f32 %v1395, %v1621
      %v1712 = vadd.f32 %v1396, %v1623
      %v1713 = vadd.f32 %v1397, %v1626
      %v1714 = vadd.f32 %v1398, %v1628
      %v1715 = vadd.f32 %v1399, %v1631
      %v1716 = vadd.f32 %v1400, %v1633
      %v1717 = vadd.f32 %v1401, %v1636
      %v1718 = vadd.f32 %v1402, %v1638
      %v1719 = vadd.f32 %v1403, %v1641
      %v1720 = vadd.f32 %v1404, %v1643
      %v1721 = vadd.f32 %v1405, %v1646
      %v1722 = vadd.f32 %v1406, %v1648
      %v1723 = vadd.f32 %v1407, %v1651
      %v1724 = vadd.f32 %v1408, %v1653
      %v1725 = vadd.f32 %v1409, %v1656
      %v1726 = vadd.f32 %v1410, %v1658
      %v1727 = vadd.f32 %v1411, %v1661
      %v1728 = vadd.f32 %v1412, %v1663
      %v1729 = vadd.f32 %v1413, %v1666
      %v1730 = vadd.f32 %v1414, %v1668
      %v1731 = vadd.f32 %v1415, %v1671
      %v1732 = vadd.f32 %v1416, %v1673
      %v1733 = vadd.f32 %v1417, %v1676
      %v1734 = vadd.f32 %v1418, %v1678
      %v1735 = vadd.f32 %v1419, %v1681
      %v1736 = vadd.f32 %v1420, %v1683
      %v1737 = vadd.f32 %v1421, %v1686
      %v1738 = vadd.f32 %v1422, %v1688
      %v1739 = vld [vmem:[%s246 + $0x29] sm:$0xff]
      %v1740 = vld [vmem:[%s246 + $0x31] sm:$0xff]
      %v1741 = vld [vmem:[%s246 + $0x39] sm:$0xff]
      %v1742 = vld [vmem:[%s246 + $0x41] sm:$0xff]
      %v1743 = vld [vmem:[%s246 + $0x49] sm:$0xff]
      %v1744 = vld [vmem:[%s246 + $0x51] sm:$0xff]
      %v1745 = vld [vmem:[%s246 + $0x59] sm:$0xff]
      %v1746 = vld [vmem:[%s246 + $0x61] sm:$0xff]
      %v1747 = vld [vmem:[%s246 + $0x69] sm:$0xff]
      %v1748 = vld [vmem:[%s246 + $0x71] sm:$0xff]
      %v1749 = vld [vmem:[%s246 + $0x79] sm:$0xff]
      %v1750 = vld [vmem:[%s246 + $0x81] sm:$0xff]
      %v1751 = vld [vmem:[%s246 + $0x89] sm:$0xff]
      %v1752 = vld [vmem:[%s246 + $0x91] sm:$0xff]
      %v1753 = vld [vmem:[%s246 + $0x99] sm:$0xff]
      %v1754 = vld [vmem:[%s246 + $0xa1] sm:$0xff]
      %v1755 = vld [vmem:[%s246 + $0xa9] sm:$0xff]
      %v1756 = vld [vmem:[%s246 + $0xb1] sm:$0xff]
      %v1757 = vld [vmem:[%s246 + $0xb9] sm:$0xff]
      %v1758 = vld [vmem:[%s246 + $0xc1] sm:$0xff]
      %v1759 = vld [vmem:[%s246 + $0xc9] sm:$0xff]
      %v1760 = vld [vmem:[%s246 + $0xd1] sm:$0xff]
      %v1761 = vld [vmem:[%s246 + $0xd9] sm:$0xff]
      %v1762 = vld [vmem:[%s246 + $0xe1] sm:$0xff]
      %v1763 = vld [vmem:[%s246 + $0xe9] sm:$0xff]
      %v1764 = vld [vmem:[%s246 + $0xf1] sm:$0xff]
      %v1765 = vld [vmem:[%s246 + $0xf9] sm:$0xff]
      %v1766 = vld [vmem:[%s246 + $0x101] sm:$0xff]
      %v1767 = vld [vmem:[%s246 + $0x109] sm:$0xff]
      %v1768 = vld [vmem:[%s246 + $0x111] sm:$0xff]
      %v1769 = vld [vmem:[%s246 + $0x119] sm:$0xff]
      %v1770 = vld [vmem:[%s246 + $0x121] sm:$0xff]
      %v1771 = vld [vmem:[%s246 + $0x129] sm:$0xff]
      %v1772 = vld [vmem:[%s246 + $0x131] sm:$0xff]
      %v1773 = vld [vmem:[%s246 + $0x139] sm:$0xff]
      %v1774 = vld [vmem:[%s246 + $0x141] sm:$0xff]
      %v1775 = vld [vmem:[%s246 + $0x149] sm:$0xff]
      %v1776 = vld [vmem:[%s246 + $0x151] sm:$0xff]
      %v1777 = vld [vmem:[%s246 + $0x159] sm:$0xff]
      %v1778 = vld [vmem:[%s246 + $0x161] sm:$0xff]
      %v1779 = vld [vmem:[%s246 + $0x169] sm:$0xff]
      %v1780 = vld [vmem:[%s246 + $0x171] sm:$0xff]
      %v1781 = vld [vmem:[%s246 + $0x179] sm:$0xff]
      %v1782 = vld [vmem:[%s246 + $0x181] sm:$0xff]
      %v1783 = vld [vmem:[%s246 + $0x189] sm:$0xff]
      %v1784 = vld [vmem:[%s246 + $0x191] sm:$0xff]
      %v1785 = vld [vmem:[%s246 + $0x199] sm:$0xff]
      %v1786 = vld [vmem:[%s246 + $0x1a1] sm:$0xff]
      %v1787 = vld [vmem:[%s246 + $0x1a9] sm:$0xff]
      %v1788 = vld [vmem:[%s246 + $0x1b1] sm:$0xff]
      %v1789 = vpack.c.bf16 %v1740, %v1739
      %v1790 = vpack.c.bf16 %v1742, %v1741
      %v1791 = vpack.c.bf16 %v1744, %v1743
      %v1792 = vpack.c.bf16 %v1746, %v1745
      %v1793 = vpack.c.bf16 %v1748, %v1747
      %v1794 = vpack.c.bf16 %v1750, %v1749
      %v1795 = vpack.c.bf16 %v1752, %v1751
      %v1796 = vpack.c.bf16 %v1754, %v1753
      %v1797 = vpack.c.bf16 %v1756, %v1755
      %v1798 = vpack.c.bf16 %v1758, %v1757
      %v1799 = vpack.c.bf16 %v1760, %v1759
      %v1800 = vpack.c.bf16 %v1762, %v1761
      %v1801 = vpack.c.bf16 %v1764, %v1763
      %v1802 = vpack.c.bf16 %v1766, %v1765
      %v1803 = vpack.c.bf16 %v1768, %v1767
      %v1804 = vpack.c.bf16 %v1770, %v1769
      %v1805 = vpack.c.bf16 %v1772, %v1771
      %v1806 = vpack.c.bf16 %v1774, %v1773
      %v1807 = vpack.c.bf16 %v1776, %v1775
      %v1808 = vpack.c.bf16 %v1778, %v1777
      %v1809 = vpack.c.bf16 %v1780, %v1779
      %v1810 = vpack.c.bf16 %v1782, %v1781
      %v1811 = vpack.c.bf16 %v1784, %v1783
      %v1812 = vpack.c.bf16 %v1786, %v1785
      %v1813 = vpack.c.bf16 %v1788, %v1787
      %s1814 = scalar_lea.vmem %s1, 320
      %v1815 = vld [vmem:[%s1814] sm:$0xf]
      %v1816 = vld [vmem:[%s1814 + $0x4] sm:$0xf]
      %v1817 = vld [vmem:[%s1814 + $0x8] sm:$0xf]
      %v1818 = vld [vmem:[%s1814 + $0xc] sm:$0xf]
      %v1819 = vld [vmem:[%s1814 + $0x10] sm:$0xf]
      %v1820 = vld [vmem:[%s1814 + $0x14] sm:$0xf]
      %v1821 = vld [vmem:[%s1814 + $0x18] sm:$0xf]
      %v1822 = vld [vmem:[%s1814 + $0x1c] sm:$0xf]
      %v1823 = vld [vmem:[%s1814 + $0x20] sm:$0xf]
      %v1824 = vld [vmem:[%s1814 + $0x24] sm:$0xf]
      %v1825 = vld [vmem:[%s1814 + $0x28] sm:$0xf]
      %v1826 = vld [vmem:[%s1814 + $0x2c] sm:$0xf]
      %v1827 = vld [vmem:[%s1814 + $0x30] sm:$0xf]
      %v1828 = vld [vmem:[%s1814 + $0x34] sm:$0xf]
      %v1829 = vld [vmem:[%s1814 + $0x38] sm:$0xf]
      %v1830 = vld [vmem:[%s1814 + $0x3c] sm:$0xf]
      %v1847 = vunpack.c.l.b16 %v1815
      %v1848 = vunpack.c.l.b16 %v1816
      %v1849 = vunpack.c.l.b16 %v1817
      %v1850 = vunpack.c.l.b16 %v1818
      %v1851 = vunpack.c.l.b16 %v1819
      %v1852 = vunpack.c.l.b16 %v1820
      %v1853 = vunpack.c.l.b16 %v1821
      %v1854 = vunpack.c.l.b16 %v1822
      %v1855 = vunpack.c.l.b16 %v1823
      %v1856 = vunpack.c.l.b16 %v1824
      %v1857 = vunpack.c.l.b16 %v1825
      %v1858 = vunpack.c.l.b16 %v1826
      %v1859 = vunpack.c.l.b16 %v1827
      %v1860 = vunpack.c.l.b16 %v1828
      %v1861 = vunpack.c.l.b16 %v1829
      %v1862 = vunpack.c.l.b16 %v1830
      %v1863 = vpack.c.b16 %v1848, %v1847
      %v1864 = vpack.c.b16 %v1850, %v1849
      %v1865 = vpack.c.b16 %v1852, %v1851
      %v1866 = vpack.c.b16 %v1854, %v1853
      %v1867 = vpack.c.b16 %v1856, %v1855
      %v1868 = vpack.c.b16 %v1858, %v1857
      %v1869 = vpack.c.b16 %v1860, %v1859
      %v1870 = vpack.c.b16 %v1862, %v1861
      %1879 = vmatpush.bf16.msra.mxu0 %v1870
      %1880 = vmatpush.bf16.msra.mxu0 %v1869
      %1881 = vmatpush.bf16.msra.mxu0 %v1868
      %1882 = vmatpush.bf16.msra.mxu0 %v1867
      %1883 = vmatpush.bf16.msra.mxu0 %v1866
      %1884 = vmatpush.bf16.msra.mxu0 %v1865
      %1885 = vmatpush.bf16.msra.mxu0 %v1864
      %1886 = vmatpush.bf16.msra.mxu0 %v1863
      %1887 = vmatmul.bf16.gmra.mxu0 %v1789
      %v1888 = vpop.f32.mrf.mxu0
      %v1889 = vpop.f32.mrf.mxu0
      %1890 = vmatmul.bf16.gmra.mxu0 %v1790
      %v1891 = vpop.f32.mrf.mxu0
      %v1892 = vadd.f32 0.0, %v1891
      %v1893 = vpop.f32.mrf.mxu0
      %v1894 = vadd.f32 0.0, %v1893
      %1895 = vmatmul.bf16.gmra.mxu0 %v1791
      %v1896 = vpop.f32.mrf.mxu0
      %v1897 = vadd.f32 0.0, %v1896
      %v1898 = vpop.f32.mrf.mxu0
      %v1899 = vadd.f32 0.0, %v1898
      %1900 = vmatmul.bf16.gmra.mxu0 %v1792
      %v1901 = vpop.f32.mrf.mxu0
      %v1902 = vadd.f32 0.0, %v1901
      %v1903 = vpop.f32.mrf.mxu0
      %v1904 = vadd.f32 0.0, %v1903
      %1905 = vmatmul.bf16.gmra.mxu0 %v1793
      %v1906 = vpop.f32.mrf.mxu0
      %v1907 = vadd.f32 0.0, %v1906
      %v1908 = vpop.f32.mrf.mxu0
      %v1909 = vadd.f32 0.0, %v1908
      %1910 = vmatmul.bf16.gmra.mxu0 %v1794
      %v1911 = vpop.f32.mrf.mxu0
      %v1912 = vadd.f32 0.0, %v1911
      %v1913 = vpop.f32.mrf.mxu0
      %v1914 = vadd.f32 0.0, %v1913
      %1915 = vmatmul.bf16.gmra.mxu0 %v1795
      %v1916 = vpop.f32.mrf.mxu0
      %v1917 = vadd.f32 0.0, %v1916
      %v1918 = vpop.f32.mrf.mxu0
      %v1919 = vadd.f32 0.0, %v1918
      %1920 = vmatmul.bf16.gmra.mxu0 %v1796
      %v1921 = vpop.f32.mrf.mxu0
      %v1922 = vadd.f32 0.0, %v1921
      %v1923 = vpop.f32.mrf.mxu0
      %v1924 = vadd.f32 0.0, %v1923
      %1925 = vmatmul.bf16.gmra.mxu0 %v1797
      %v1926 = vpop.f32.mrf.mxu0
      %v1927 = vadd.f32 0.0, %v1926
      %v1928 = vpop.f32.mrf.mxu0
      %v1929 = vadd.f32 0.0, %v1928
      %1930 = vmatmul.bf16.gmra.mxu0 %v1798
      %v1931 = vpop.f32.mrf.mxu0
      %v1932 = vadd.f32 0.0, %v1931
      %v1933 = vpop.f32.mrf.mxu0
      %v1934 = vadd.f32 0.0, %v1933
      %1935 = vmatmul.bf16.gmra.mxu0 %v1799
      %v1936 = vpop.f32.mrf.mxu0
      %v1937 = vadd.f32 0.0, %v1936
      %v1938 = vpop.f32.mrf.mxu0
      %v1939 = vadd.f32 0.0, %v1938
      %1940 = vmatmul.bf16.gmra.mxu0 %v1800
      %v1941 = vpop.f32.mrf.mxu0
      %v1942 = vadd.f32 0.0, %v1941
      %v1943 = vpop.f32.mrf.mxu0
      %v1944 = vadd.f32 0.0, %v1943
      %1945 = vmatmul.bf16.gmra.mxu0 %v1801
      %v1946 = vpop.f32.mrf.mxu0
      %v1947 = vadd.f32 0.0, %v1946
      %v1948 = vpop.f32.mrf.mxu0
      %v1949 = vadd.f32 0.0, %v1948
      %1950 = vmatmul.bf16.gmra.mxu0 %v1802
      %v1951 = vpop.f32.mrf.mxu0
      %v1952 = vadd.f32 0.0, %v1951
      %v1953 = vpop.f32.mrf.mxu0
      %v1954 = vadd.f32 0.0, %v1953
      %1955 = vmatmul.bf16.gmra.mxu0 %v1803
      %v1956 = vpop.f32.mrf.mxu0
      %v1957 = vadd.f32 0.0, %v1956
      %v1958 = vpop.f32.mrf.mxu0
      %v1959 = vadd.f32 0.0, %v1958
      %1960 = vmatmul.bf16.gmra.mxu0 %v1804
      %v1961 = vpop.f32.mrf.mxu0
      %v1962 = vadd.f32 0.0, %v1961
      %v1963 = vpop.f32.mrf.mxu0
      %v1964 = vadd.f32 0.0, %v1963
      %1965 = vmatmul.bf16.gmra.mxu0 %v1805
      %v1966 = vpop.f32.mrf.mxu0
      %v1967 = vadd.f32 0.0, %v1966
      %v1968 = vpop.f32.mrf.mxu0
      %v1969 = vadd.f32 0.0, %v1968
      %1970 = vmatmul.bf16.gmra.mxu0 %v1806
      %v1971 = vpop.f32.mrf.mxu0
      %v1972 = vadd.f32 0.0, %v1971
      %v1973 = vpop.f32.mrf.mxu0
      %v1974 = vadd.f32 0.0, %v1973
      %1975 = vmatmul.bf16.gmra.mxu0 %v1807
      %v1976 = vpop.f32.mrf.mxu0
      %v1977 = vadd.f32 0.0, %v1976
      %v1978 = vpop.f32.mrf.mxu0
      %v1979 = vadd.f32 0.0, %v1978
      %1980 = vmatmul.bf16.gmra.mxu0 %v1808
      %v1981 = vpop.f32.mrf.mxu0
      %v1982 = vadd.f32 0.0, %v1981
      %v1983 = vpop.f32.mrf.mxu0
      %v1984 = vadd.f32 0.0, %v1983
      %1985 = vmatmul.bf16.gmra.mxu0 %v1809
      %v1986 = vpop.f32.mrf.mxu0
      %v1987 = vadd.f32 0.0, %v1986
      %v1988 = vpop.f32.mrf.mxu0
      %v1989 = vadd.f32 0.0, %v1988
      %1990 = vmatmul.bf16.gmra.mxu0 %v1810
      %v1991 = vpop.f32.mrf.mxu0
      %v1992 = vadd.f32 0.0, %v1991
      %v1993 = vpop.f32.mrf.mxu0
      %v1994 = vadd.f32 0.0, %v1993
      %1995 = vmatmul.bf16.gmra.mxu0 %v1811
      %v1996 = vpop.f32.mrf.mxu0
      %v1997 = vadd.f32 0.0, %v1996
      %v1998 = vpop.f32.mrf.mxu0
      %v1999 = vadd.f32 0.0, %v1998
      %2000 = vmatmul.bf16.gmra.mxu0 %v1812
      %v2001 = vpop.f32.mrf.mxu0
      %v2002 = vadd.f32 0.0, %v2001
      %v2003 = vpop.f32.mrf.mxu0
      %v2004 = vadd.f32 0.0, %v2003
      %2005 = vmatmul.bf16.gmra.mxu0 %v1813
      %v2006 = vpop.f32.mrf.mxu0
      %v2007 = vpop.f32.mrf.mxu0
      %2008 = vdwg.mxu0
      %v2009 = vadd.f32 %v1693, %v1892
      %v2010 = vadd.f32 %v1694, %v1894
      %v2011 = vadd.f32 %v1695, %v1897
      %v2012 = vadd.f32 %v1696, %v1899
      %v2013 = vadd.f32 %v1697, %v1902
      %v2014 = vadd.f32 %v1698, %v1904
      %v2015 = vadd.f32 %v1699, %v1907
      %v2016 = vadd.f32 %v1700, %v1909
      %v2017 = vadd.f32 %v1701, %v1912
      %v2018 = vadd.f32 %v1702, %v1914
      %v2019 = vadd.f32 %v1703, %v1917
      %v2020 = vadd.f32 %v1704, %v1919
      %v2021 = vadd.f32 %v1705, %v1922
      %v2022 = vadd.f32 %v1706, %v1924
      %v2023 = vadd.f32 %v1707, %v1927
      %v2024 = vadd.f32 %v1708, %v1929
      %v2025 = vadd.f32 %v1709, %v1932
      %v2026 = vadd.f32 %v1710, %v1934
      %v2027 = vadd.f32 %v1711, %v1937
      %v2028 = vadd.f32 %v1712, %v1939
      %v2029 = vadd.f32 %v1713, %v1942
      %v2030 = vadd.f32 %v1714, %v1944
      %v2031 = vadd.f32 %v1715, %v1947
      %v2032 = vadd.f32 %v1716, %v1949
      %v2033 = vadd.f32 %v1717, %v1952
      %v2034 = vadd.f32 %v1718, %v1954
      %v2035 = vadd.f32 %v1719, %v1957
      %v2036 = vadd.f32 %v1720, %v1959
      %v2037 = vadd.f32 %v1721, %v1962
      %v2038 = vadd.f32 %v1722, %v1964
      %v2039 = vadd.f32 %v1723, %v1967
      %v2040 = vadd.f32 %v1724, %v1969
      %v2041 = vadd.f32 %v1725, %v1972
      %v2042 = vadd.f32 %v1726, %v1974
      %v2043 = vadd.f32 %v1727, %v1977
      %v2044 = vadd.f32 %v1728, %v1979
      %v2045 = vadd.f32 %v1729, %v1982
      %v2046 = vadd.f32 %v1730, %v1984
      %v2047 = vadd.f32 %v1731, %v1987
      %v2048 = vadd.f32 %v1732, %v1989
      %v2049 = vadd.f32 %v1733, %v1992
      %v2050 = vadd.f32 %v1734, %v1994
      %v2051 = vadd.f32 %v1735, %v1997
      %v2052 = vadd.f32 %v1736, %v1999
      %v2053 = vadd.f32 %v1737, %v2002
      %v2054 = vadd.f32 %v1738, %v2004
      %v2055 = vld [vmem:[%s246 + $0x3b] sm:$0xff]
      %v2056 = vld [vmem:[%s246 + $0x43] sm:$0xff]
      %v2057 = vld [vmem:[%s246 + $0x4b] sm:$0xff]
      %v2058 = vld [vmem:[%s246 + $0x53] sm:$0xff]
      %v2059 = vld [vmem:[%s246 + $0x5b] sm:$0xff]
      %v2060 = vld [vmem:[%s246 + $0x63] sm:$0xff]
      %v2061 = vld [vmem:[%s246 + $0x6b] sm:$0xff]
      %v2062 = vld [vmem:[%s246 + $0x73] sm:$0xff]
      %v2063 = vld [vmem:[%s246 + $0x7b] sm:$0xff]
      %v2064 = vld [vmem:[%s246 + $0x83] sm:$0xff]
      %v2065 = vld [vmem:[%s246 + $0x8b] sm:$0xff]
      %v2066 = vld [vmem:[%s246 + $0x93] sm:$0xff]
      %v2067 = vld [vmem:[%s246 + $0x9b] sm:$0xff]
      %v2068 = vld [vmem:[%s246 + $0xa3] sm:$0xff]
      %v2069 = vld [vmem:[%s246 + $0xab] sm:$0xff]
      %v2070 = vld [vmem:[%s246 + $0xb3] sm:$0xff]
      %v2071 = vld [vmem:[%s246 + $0xbb] sm:$0xff]
      %v2072 = vld [vmem:[%s246 + $0xc3] sm:$0xff]
      %v2073 = vld [vmem:[%s246 + $0xcb] sm:$0xff]
      %v2074 = vld [vmem:[%s246 + $0xd3] sm:$0xff]
      %v2075 = vld [vmem:[%s246 + $0xdb] sm:$0xff]
      %v2076 = vld [vmem:[%s246 + $0xe3] sm:$0xff]
      %v2077 = vld [vmem:[%s246 + $0xeb] sm:$0xff]
      %v2078 = vld [vmem:[%s246 + $0xf3] sm:$0xff]
      %v2079 = vld [vmem:[%s246 + $0xfb] sm:$0xff]
      %v2080 = vld [vmem:[%s246 + $0x103] sm:$0xff]
      %v2081 = vld [vmem:[%s246 + $0x10b] sm:$0xff]
      %v2082 = vld [vmem:[%s246 + $0x113] sm:$0xff]
      %v2083 = vld [vmem:[%s246 + $0x11b] sm:$0xff]
      %v2084 = vld [vmem:[%s246 + $0x123] sm:$0xff]
      %v2085 = vld [vmem:[%s246 + $0x12b] sm:$0xff]
      %v2086 = vld [vmem:[%s246 + $0x133] sm:$0xff]
      %v2087 = vld [vmem:[%s246 + $0x13b] sm:$0xff]
      %v2088 = vld [vmem:[%s246 + $0x143] sm:$0xff]
      %v2089 = vld [vmem:[%s246 + $0x14b] sm:$0xff]
      %v2090 = vld [vmem:[%s246 + $0x153] sm:$0xff]
      %v2091 = vld [vmem:[%s246 + $0x15b] sm:$0xff]
      %v2092 = vld [vmem:[%s246 + $0x163] sm:$0xff]
      %v2093 = vld [vmem:[%s246 + $0x16b] sm:$0xff]
      %v2094 = vld [vmem:[%s246 + $0x173] sm:$0xff]
      %v2095 = vld [vmem:[%s246 + $0x17b] sm:$0xff]
      %v2096 = vld [vmem:[%s246 + $0x183] sm:$0xff]
      %v2097 = vld [vmem:[%s246 + $0x18b] sm:$0xff]
      %v2098 = vld [vmem:[%s246 + $0x193] sm:$0xff]
      %v2099 = vld [vmem:[%s246 + $0x19b] sm:$0xff]
      %v2100 = vld [vmem:[%s246 + $0x1a3] sm:$0xff]
      %v2101 = vld [vmem:[%s246 + $0x1ab] sm:$0xff]
      %v2102 = vld [vmem:[%s246 + $0x1b3] sm:$0xff]
      %v2103 = vld [vmem:[%s246 + $0x1bb] sm:$0xff]
      %v2104 = vld [vmem:[%s246 + $0x1c3] sm:$0xff]
      %v2105 = vpack.c.bf16 %v2056, %v2055
      %v2106 = vpack.c.bf16 %v2058, %v2057
      %v2107 = vpack.c.bf16 %v2060, %v2059
      %v2108 = vpack.c.bf16 %v2062, %v2061
      %v2109 = vpack.c.bf16 %v2064, %v2063
      %v2110 = vpack.c.bf16 %v2066, %v2065
      %v2111 = vpack.c.bf16 %v2068, %v2067
      %v2112 = vpack.c.bf16 %v2070, %v2069
      %v2113 = vpack.c.bf16 %v2072, %v2071
      %v2114 = vpack.c.bf16 %v2074, %v2073
      %v2115 = vpack.c.bf16 %v2076, %v2075
      %v2116 = vpack.c.bf16 %v2078, %v2077
      %v2117 = vpack.c.bf16 %v2080, %v2079
      %v2118 = vpack.c.bf16 %v2082, %v2081
      %v2119 = vpack.c.bf16 %v2084, %v2083
      %v2120 = vpack.c.bf16 %v2086, %v2085
      %v2121 = vpack.c.bf16 %v2088, %v2087
      %v2122 = vpack.c.bf16 %v2090, %v2089
      %v2123 = vpack.c.bf16 %v2092, %v2091
      %v2124 = vpack.c.bf16 %v2094, %v2093
      %v2125 = vpack.c.bf16 %v2096, %v2095
      %v2126 = vpack.c.bf16 %v2098, %v2097
      %v2127 = vpack.c.bf16 %v2100, %v2099
      %v2128 = vpack.c.bf16 %v2102, %v2101
      %v2129 = vpack.c.bf16 %v2104, %v2103
      %s2130 = scalar_lea.vmem %s1, 384
      %v2131 = vld [vmem:[%s2130] sm:$0xf]
      %v2132 = vld [vmem:[%s2130 + $0x4] sm:$0xf]
      %v2133 = vld [vmem:[%s2130 + $0x8] sm:$0xf]
      %v2134 = vld [vmem:[%s2130 + $0xc] sm:$0xf]
      %v2135 = vld [vmem:[%s2130 + $0x10] sm:$0xf]
      %v2136 = vld [vmem:[%s2130 + $0x14] sm:$0xf]
      %v2137 = vld [vmem:[%s2130 + $0x18] sm:$0xf]
      %v2138 = vld [vmem:[%s2130 + $0x1c] sm:$0xf]
      %v2139 = vld [vmem:[%s2130 + $0x20] sm:$0xf]
      %v2140 = vld [vmem:[%s2130 + $0x24] sm:$0xf]
      %v2141 = vld [vmem:[%s2130 + $0x28] sm:$0xf]
      %v2142 = vld [vmem:[%s2130 + $0x2c] sm:$0xf]
      %v2143 = vld [vmem:[%s2130 + $0x30] sm:$0xf]
      %v2144 = vld [vmem:[%s2130 + $0x34] sm:$0xf]
      %v2145 = vld [vmem:[%s2130 + $0x38] sm:$0xf]
      %v2146 = vld [vmem:[%s2130 + $0x3c] sm:$0xf]
      %v2163 = vunpack.c.l.b16 %v2131
      %v2164 = vunpack.c.l.b16 %v2132
      %v2165 = vunpack.c.l.b16 %v2133
      %v2166 = vunpack.c.l.b16 %v2134
      %v2167 = vunpack.c.l.b16 %v2135
      %v2168 = vunpack.c.l.b16 %v2136
      %v2169 = vunpack.c.l.b16 %v2137
      %v2170 = vunpack.c.l.b16 %v2138
      %v2171 = vunpack.c.l.b16 %v2139
      %v2172 = vunpack.c.l.b16 %v2140
      %v2173 = vunpack.c.l.b16 %v2141
      %v2174 = vunpack.c.l.b16 %v2142
      %v2175 = vunpack.c.l.b16 %v2143
      %v2176 = vunpack.c.l.b16 %v2144
      %v2177 = vunpack.c.l.b16 %v2145
      %v2178 = vunpack.c.l.b16 %v2146
      %v2179 = vpack.c.b16 %v2164, %v2163
      %v2180 = vpack.c.b16 %v2166, %v2165
      %v2181 = vpack.c.b16 %v2168, %v2167
      %v2182 = vpack.c.b16 %v2170, %v2169
      %v2183 = vpack.c.b16 %v2172, %v2171
      %v2184 = vpack.c.b16 %v2174, %v2173
      %v2185 = vpack.c.b16 %v2176, %v2175
      %v2186 = vpack.c.b16 %v2178, %v2177
      %2195 = vmatpush.bf16.msra.mxu0 %v2186
      %2196 = vmatpush.bf16.msra.mxu0 %v2185
      %2197 = vmatpush.bf16.msra.mxu0 %v2184
      %2198 = vmatpush.bf16.msra.mxu0 %v2183
      %2199 = vmatpush.bf16.msra.mxu0 %v2182
      %2200 = vmatpush.bf16.msra.mxu0 %v2181
      %2201 = vmatpush.bf16.msra.mxu0 %v2180
      %2202 = vmatpush.bf16.msra.mxu0 %v2179
      %2203 = vmatmul.bf16.gmra.mxu0 %v2105
      %v2204 = vpop.f32.mrf.mxu0
      %v2205 = vpop.f32.mrf.mxu0
      %2206 = vmatmul.bf16.gmra.mxu0 %v2106
      %v2207 = vpop.f32.mrf.mxu0
      %v2208 = vadd.f32 0.0, %v2207
      %v2209 = vpop.f32.mrf.mxu0
      %v2210 = vadd.f32 0.0, %v2209
      %2211 = vmatmul.bf16.gmra.mxu0 %v2107
      %v2212 = vpop.f32.mrf.mxu0
      %v2213 = vadd.f32 0.0, %v2212
      %v2214 = vpop.f32.mrf.mxu0
      %v2215 = vadd.f32 0.0, %v2214
      %2216 = vmatmul.bf16.gmra.mxu0 %v2108
      %v2217 = vpop.f32.mrf.mxu0
      %v2218 = vadd.f32 0.0, %v2217
      %v2219 = vpop.f32.mrf.mxu0
      %v2220 = vadd.f32 0.0, %v2219
      %2221 = vmatmul.bf16.gmra.mxu0 %v2109
      %v2222 = vpop.f32.mrf.mxu0
      %v2223 = vadd.f32 0.0, %v2222
      %v2224 = vpop.f32.mrf.mxu0
      %v2225 = vadd.f32 0.0, %v2224
      %2226 = vmatmul.bf16.gmra.mxu0 %v2110
      %v2227 = vpop.f32.mrf.mxu0
      %v2228 = vadd.f32 0.0, %v2227
      %v2229 = vpop.f32.mrf.mxu0
      %v2230 = vadd.f32 0.0, %v2229
      %2231 = vmatmul.bf16.gmra.mxu0 %v2111
      %v2232 = vpop.f32.mrf.mxu0
      %v2233 = vadd.f32 0.0, %v2232
      %v2234 = vpop.f32.mrf.mxu0
      %v2235 = vadd.f32 0.0, %v2234
      %2236 = vmatmul.bf16.gmra.mxu0 %v2112
      %v2237 = vpop.f32.mrf.mxu0
      %v2238 = vadd.f32 0.0, %v2237
      %v2239 = vpop.f32.mrf.mxu0
      %v2240 = vadd.f32 0.0, %v2239
      %2241 = vmatmul.bf16.gmra.mxu0 %v2113
      %v2242 = vpop.f32.mrf.mxu0
      %v2243 = vadd.f32 0.0, %v2242
      %v2244 = vpop.f32.mrf.mxu0
      %v2245 = vadd.f32 0.0, %v2244
      %2246 = vmatmul.bf16.gmra.mxu0 %v2114
      %v2247 = vpop.f32.mrf.mxu0
      %v2248 = vadd.f32 0.0, %v2247
      %v2249 = vpop.f32.mrf.mxu0
      %v2250 = vadd.f32 0.0, %v2249
      %2251 = vmatmul.bf16.gmra.mxu0 %v2115
      %v2252 = vpop.f32.mrf.mxu0
      %v2253 = vadd.f32 0.0, %v2252
      %v2254 = vpop.f32.mrf.mxu0
      %v2255 = vadd.f32 0.0, %v2254
      %2256 = vmatmul.bf16.gmra.mxu0 %v2116
      %v2257 = vpop.f32.mrf.mxu0
      %v2258 = vadd.f32 0.0, %v2257
      %v2259 = vpop.f32.mrf.mxu0
      %v2260 = vadd.f32 0.0, %v2259
      %2261 = vmatmul.bf16.gmra.mxu0 %v2117
      %v2262 = vpop.f32.mrf.mxu0
      %v2263 = vadd.f32 0.0, %v2262
      %v2264 = vpop.f32.mrf.mxu0
      %v2265 = vadd.f32 0.0, %v2264
      %2266 = vmatmul.bf16.gmra.mxu0 %v2118
      %v2267 = vpop.f32.mrf.mxu0
      %v2268 = vadd.f32 0.0, %v2267
      %v2269 = vpop.f32.mrf.mxu0
      %v2270 = vadd.f32 0.0, %v2269
      %2271 = vmatmul.bf16.gmra.mxu0 %v2119
      %v2272 = vpop.f32.mrf.mxu0
      %v2273 = vadd.f32 0.0, %v2272
      %v2274 = vpop.f32.mrf.mxu0
      %v2275 = vadd.f32 0.0, %v2274
      %2276 = vmatmul.bf16.gmra.mxu0 %v2120
      %v2277 = vpop.f32.mrf.mxu0
      %v2278 = vadd.f32 0.0, %v2277
      %v2279 = vpop.f32.mrf.mxu0
      %v2280 = vadd.f32 0.0, %v2279
      %2281 = vmatmul.bf16.gmra.mxu0 %v2121
      %v2282 = vpop.f32.mrf.mxu0
      %v2283 = vadd.f32 0.0, %v2282
      %v2284 = vpop.f32.mrf.mxu0
      %v2285 = vadd.f32 0.0, %v2284
      %2286 = vmatmul.bf16.gmra.mxu0 %v2122
      %v2287 = vpop.f32.mrf.mxu0
      %v2288 = vadd.f32 0.0, %v2287
      %v2289 = vpop.f32.mrf.mxu0
      %v2290 = vadd.f32 0.0, %v2289
      %2291 = vmatmul.bf16.gmra.mxu0 %v2123
      %v2292 = vpop.f32.mrf.mxu0
      %v2293 = vadd.f32 0.0, %v2292
      %v2294 = vpop.f32.mrf.mxu0
      %v2295 = vadd.f32 0.0, %v2294
      %2296 = vmatmul.bf16.gmra.mxu0 %v2124
      %v2297 = vpop.f32.mrf.mxu0
      %v2298 = vadd.f32 0.0, %v2297
      %v2299 = vpop.f32.mrf.mxu0
      %v2300 = vadd.f32 0.0, %v2299
      %2301 = vmatmul.bf16.gmra.mxu0 %v2125
      %v2302 = vpop.f32.mrf.mxu0
      %v2303 = vadd.f32 0.0, %v2302
      %v2304 = vpop.f32.mrf.mxu0
      %v2305 = vadd.f32 0.0, %v2304
      %2306 = vmatmul.bf16.gmra.mxu0 %v2126
      %v2307 = vpop.f32.mrf.mxu0
      %v2308 = vadd.f32 0.0, %v2307
      %v2309 = vpop.f32.mrf.mxu0
      %v2310 = vadd.f32 0.0, %v2309
      %2311 = vmatmul.bf16.gmra.mxu0 %v2127
      %v2312 = vpop.f32.mrf.mxu0
      %v2313 = vadd.f32 0.0, %v2312
      %v2314 = vpop.f32.mrf.mxu0
      %v2315 = vadd.f32 0.0, %v2314
      %2316 = vmatmul.bf16.gmra.mxu0 %v2128
      %v2317 = vpop.f32.mrf.mxu0
      %v2318 = vadd.f32 0.0, %v2317
      %v2319 = vpop.f32.mrf.mxu0
      %v2320 = vadd.f32 0.0, %v2319
      %2321 = vmatmul.bf16.gmra.mxu0 %v2129
      %v2322 = vpop.f32.mrf.mxu0
      %v2323 = vpop.f32.mrf.mxu0
      %2324 = vdwg.mxu0
      %v2325 = vadd.f32 %v2009, %v2208
      %v2326 = vadd.f32 %v2010, %v2210
      %v2327 = vadd.f32 %v2011, %v2213
      %v2328 = vadd.f32 %v2012, %v2215
      %v2329 = vadd.f32 %v2013, %v2218
      %v2330 = vadd.f32 %v2014, %v2220
      %v2331 = vadd.f32 %v2015, %v2223
      %v2332 = vadd.f32 %v2016, %v2225
      %v2333 = vadd.f32 %v2017, %v2228
      %v2334 = vadd.f32 %v2018, %v2230
      %v2335 = vadd.f32 %v2019, %v2233
      %v2336 = vadd.f32 %v2020, %v2235
      %v2337 = vadd.f32 %v2021, %v2238
      %v2338 = vadd.f32 %v2022, %v2240
      %v2339 = vadd.f32 %v2023, %v2243
      %v2340 = vadd.f32 %v2024, %v2245
      %v2341 = vadd.f32 %v2025, %v2248
      %v2342 = vadd.f32 %v2026, %v2250
      %v2343 = vadd.f32 %v2027, %v2253
      %v2344 = vadd.f32 %v2028, %v2255
      %v2345 = vadd.f32 %v2029, %v2258
      %v2346 = vadd.f32 %v2030, %v2260
      %v2347 = vadd.f32 %v2031, %v2263
      %v2348 = vadd.f32 %v2032, %v2265
      %v2349 = vadd.f32 %v2033, %v2268
      %v2350 = vadd.f32 %v2034, %v2270
      %v2351 = vadd.f32 %v2035, %v2273
      %v2352 = vadd.f32 %v2036, %v2275
      %v2353 = vadd.f32 %v2037, %v2278
      %v2354 = vadd.f32 %v2038, %v2280
      %v2355 = vadd.f32 %v2039, %v2283
      %v2356 = vadd.f32 %v2040, %v2285
      %v2357 = vadd.f32 %v2041, %v2288
      %v2358 = vadd.f32 %v2042, %v2290
      %v2359 = vadd.f32 %v2043, %v2293
      %v2360 = vadd.f32 %v2044, %v2295
      %v2361 = vadd.f32 %v2045, %v2298
      %v2362 = vadd.f32 %v2046, %v2300
      %v2363 = vadd.f32 %v2047, %v2303
      %v2364 = vadd.f32 %v2048, %v2305
      %v2365 = vadd.f32 %v2049, %v2308
      %v2366 = vadd.f32 %v2050, %v2310
      %v2367 = vadd.f32 %v2051, %v2313
      %v2368 = vadd.f32 %v2052, %v2315
      %v2369 = vadd.f32 %v2053, %v2318
      %v2370 = vadd.f32 %v2054, %v2320
      %v2371 = vld [vmem:[%s246 + $0x3c] sm:$0xff]
      %v2372 = vld [vmem:[%s246 + $0x44] sm:$0xff]
      %v2373 = vld [vmem:[%s246 + $0x4c] sm:$0xff]
      %v2374 = vld [vmem:[%s246 + $0x54] sm:$0xff]
      %v2375 = vld [vmem:[%s246 + $0x5c] sm:$0xff]
      %v2376 = vld [vmem:[%s246 + $0x64] sm:$0xff]
      %v2377 = vld [vmem:[%s246 + $0x6c] sm:$0xff]
      %v2378 = vld [vmem:[%s246 + $0x74] sm:$0xff]
      %v2379 = vld [vmem:[%s246 + $0x7c] sm:$0xff]
      %v2380 = vld [vmem:[%s246 + $0x84] sm:$0xff]
      %v2381 = vld [vmem:[%s246 + $0x8c] sm:$0xff]
      %v2382 = vld [vmem:[%s246 + $0x94] sm:$0xff]
      %v2383 = vld [vmem:[%s246 + $0x9c] sm:$0xff]
      %v2384 = vld [vmem:[%s246 + $0xa4] sm:$0xff]
      %v2385 = vld [vmem:[%s246 + $0xac] sm:$0xff]
      %v2386 = vld [vmem:[%s246 + $0xb4] sm:$0xff]
      %v2387 = vld [vmem:[%s246 + $0xbc] sm:$0xff]
      %v2388 = vld [vmem:[%s246 + $0xc4] sm:$0xff]
      %v2389 = vld [vmem:[%s246 + $0xcc] sm:$0xff]
      %v2390 = vld [vmem:[%s246 + $0xd4] sm:$0xff]
      %v2391 = vld [vmem:[%s246 + $0xdc] sm:$0xff]
      %v2392 = vld [vmem:[%s246 + $0xe4] sm:$0xff]
      %v2393 = vld [vmem:[%s246 + $0xec] sm:$0xff]
      %v2394 = vld [vmem:[%s246 + $0xf4] sm:$0xff]
      %v2395 = vld [vmem:[%s246 + $0xfc] sm:$0xff]
      %v2396 = vld [vmem:[%s246 + $0x104] sm:$0xff]
      %v2397 = vld [vmem:[%s246 + $0x10c] sm:$0xff]
      %v2398 = vld [vmem:[%s246 + $0x114] sm:$0xff]
      %v2399 = vld [vmem:[%s246 + $0x11c] sm:$0xff]
      %v2400 = vld [vmem:[%s246 + $0x124] sm:$0xff]
      %v2401 = vld [vmem:[%s246 + $0x12c] sm:$0xff]
      %v2402 = vld [vmem:[%s246 + $0x134] sm:$0xff]
      %v2403 = vld [vmem:[%s246 + $0x13c] sm:$0xff]
      %v2404 = vld [vmem:[%s246 + $0x144] sm:$0xff]
      %v2405 = vld [vmem:[%s246 + $0x14c] sm:$0xff]
      %v2406 = vld [vmem:[%s246 + $0x154] sm:$0xff]
      %v2407 = vld [vmem:[%s246 + $0x15c] sm:$0xff]
      %v2408 = vld [vmem:[%s246 + $0x164] sm:$0xff]
      %v2409 = vld [vmem:[%s246 + $0x16c] sm:$0xff]
      %v2410 = vld [vmem:[%s246 + $0x174] sm:$0xff]
      %v2411 = vld [vmem:[%s246 + $0x17c] sm:$0xff]
      %v2412 = vld [vmem:[%s246 + $0x184] sm:$0xff]
      %v2413 = vld [vmem:[%s246 + $0x18c] sm:$0xff]
      %v2414 = vld [vmem:[%s246 + $0x194] sm:$0xff]
      %v2415 = vld [vmem:[%s246 + $0x19c] sm:$0xff]
      %v2416 = vld [vmem:[%s246 + $0x1a4] sm:$0xff]
      %v2417 = vld [vmem:[%s246 + $0x1ac] sm:$0xff]
      %v2418 = vld [vmem:[%s246 + $0x1b4] sm:$0xff]
      %v2419 = vld [vmem:[%s246 + $0x1bc] sm:$0xff]
      %v2420 = vld [vmem:[%s246 + $0x1c4] sm:$0xff]
      %v2421 = vpack.c.bf16 %v2372, %v2371
      %v2422 = vpack.c.bf16 %v2374, %v2373
      %v2423 = vpack.c.bf16 %v2376, %v2375
      %v2424 = vpack.c.bf16 %v2378, %v2377
      %v2425 = vpack.c.bf16 %v2380, %v2379
      %v2426 = vpack.c.bf16 %v2382, %v2381
      %v2427 = vpack.c.bf16 %v2384, %v2383
      %v2428 = vpack.c.bf16 %v2386, %v2385
      %v2429 = vpack.c.bf16 %v2388, %v2387
      %v2430 = vpack.c.bf16 %v2390, %v2389
      %v2431 = vpack.c.bf16 %v2392, %v2391
      %v2432 = vpack.c.bf16 %v2394, %v2393
      %v2433 = vpack.c.bf16 %v2396, %v2395
      %v2434 = vpack.c.bf16 %v2398, %v2397
      %v2435 = vpack.c.bf16 %v2400, %v2399
      %v2436 = vpack.c.bf16 %v2402, %v2401
      %v2437 = vpack.c.bf16 %v2404, %v2403
      %v2438 = vpack.c.bf16 %v2406, %v2405
      %v2439 = vpack.c.bf16 %v2408, %v2407
      %v2440 = vpack.c.bf16 %v2410, %v2409
      %v2441 = vpack.c.bf16 %v2412, %v2411
      %v2442 = vpack.c.bf16 %v2414, %v2413
      %v2443 = vpack.c.bf16 %v2416, %v2415
      %v2444 = vpack.c.bf16 %v2418, %v2417
      %v2445 = vpack.c.bf16 %v2420, %v2419
      %s2446 = scalar_lea.vmem %s1, 448
      %v2447 = vld [vmem:[%s2446] sm:$0xf]
      %v2448 = vld [vmem:[%s2446 + $0x4] sm:$0xf]
      %v2449 = vld [vmem:[%s2446 + $0x8] sm:$0xf]
      %v2450 = vld [vmem:[%s2446 + $0xc] sm:$0xf]
      %v2451 = vld [vmem:[%s2446 + $0x10] sm:$0xf]
      %v2452 = vld [vmem:[%s2446 + $0x14] sm:$0xf]
      %v2453 = vld [vmem:[%s2446 + $0x18] sm:$0xf]
      %v2454 = vld [vmem:[%s2446 + $0x1c] sm:$0xf]
      %v2455 = vld [vmem:[%s2446 + $0x20] sm:$0xf]
      %v2456 = vld [vmem:[%s2446 + $0x24] sm:$0xf]
      %v2457 = vld [vmem:[%s2446 + $0x28] sm:$0xf]
      %v2458 = vld [vmem:[%s2446 + $0x2c] sm:$0xf]
      %v2459 = vld [vmem:[%s2446 + $0x30] sm:$0xf]
      %v2460 = vld [vmem:[%s2446 + $0x34] sm:$0xf]
      %v2461 = vld [vmem:[%s2446 + $0x38] sm:$0xf]
      %v2462 = vld [vmem:[%s2446 + $0x3c] sm:$0xf]
      %v2479 = vunpack.c.l.b16 %v2447
      %v2480 = vunpack.c.l.b16 %v2448
      %v2481 = vunpack.c.l.b16 %v2449
      %v2482 = vunpack.c.l.b16 %v2450
      %v2483 = vunpack.c.l.b16 %v2451
      %v2484 = vunpack.c.l.b16 %v2452
      %v2485 = vunpack.c.l.b16 %v2453
      %v2486 = vunpack.c.l.b16 %v2454
      %v2487 = vunpack.c.l.b16 %v2455
      %v2488 = vunpack.c.l.b16 %v2456
      %v2489 = vunpack.c.l.b16 %v2457
      %v2490 = vunpack.c.l.b16 %v2458
      %v2491 = vunpack.c.l.b16 %v2459
      %v2492 = vunpack.c.l.b16 %v2460
      %v2493 = vunpack.c.l.b16 %v2461
      %v2494 = vunpack.c.l.b16 %v2462
      %v2495 = vpack.c.b16 %v2480, %v2479
      %v2496 = vpack.c.b16 %v2482, %v2481
      %v2497 = vpack.c.b16 %v2484, %v2483
      %v2498 = vpack.c.b16 %v2486, %v2485
      %v2499 = vpack.c.b16 %v2488, %v2487
      %v2500 = vpack.c.b16 %v2490, %v2489
      %v2501 = vpack.c.b16 %v2492, %v2491
      %v2502 = vpack.c.b16 %v2494, %v2493
      %2511 = vmatpush.bf16.msra.mxu0 %v2502
      %2512 = vmatpush.bf16.msra.mxu0 %v2501
      %2513 = vmatpush.bf16.msra.mxu0 %v2500
      %2514 = vmatpush.bf16.msra.mxu0 %v2499
      %2515 = vmatpush.bf16.msra.mxu0 %v2498
      %2516 = vmatpush.bf16.msra.mxu0 %v2497
      %2517 = vmatpush.bf16.msra.mxu0 %v2496
      %2518 = vmatpush.bf16.msra.mxu0 %v2495
      %2519 = vmatmul.bf16.gmra.mxu0 %v2421
      %v2520 = vpop.f32.mrf.mxu0
      %v2521 = vpop.f32.mrf.mxu0
      %2522 = vmatmul.bf16.gmra.mxu0 %v2422
      %v2523 = vpop.f32.mrf.mxu0
      %v2524 = vadd.f32 0.0, %v2523
      %v2525 = vpop.f32.mrf.mxu0
      %v2526 = vadd.f32 0.0, %v2525
      %2527 = vmatmul.bf16.gmra.mxu0 %v2423
      %v2528 = vpop.f32.mrf.mxu0
      %v2529 = vadd.f32 0.0, %v2528
      %v2530 = vpop.f32.mrf.mxu0
      %v2531 = vadd.f32 0.0, %v2530
      %2532 = vmatmul.bf16.gmra.mxu0 %v2424
      %v2533 = vpop.f32.mrf.mxu0
      %v2534 = vadd.f32 0.0, %v2533
      %v2535 = vpop.f32.mrf.mxu0
      %v2536 = vadd.f32 0.0, %v2535
      %2537 = vmatmul.bf16.gmra.mxu0 %v2425
      %v2538 = vpop.f32.mrf.mxu0
      %v2539 = vadd.f32 0.0, %v2538
      %v2540 = vpop.f32.mrf.mxu0
      %v2541 = vadd.f32 0.0, %v2540
      %2542 = vmatmul.bf16.gmra.mxu0 %v2426
      %v2543 = vpop.f32.mrf.mxu0
      %v2544 = vadd.f32 0.0, %v2543
      %v2545 = vpop.f32.mrf.mxu0
      %v2546 = vadd.f32 0.0, %v2545
      %2547 = vmatmul.bf16.gmra.mxu0 %v2427
      %v2548 = vpop.f32.mrf.mxu0
      %v2549 = vadd.f32 0.0, %v2548
      %v2550 = vpop.f32.mrf.mxu0
      %v2551 = vadd.f32 0.0, %v2550
      %2552 = vmatmul.bf16.gmra.mxu0 %v2428
      %v2553 = vpop.f32.mrf.mxu0
      %v2554 = vadd.f32 0.0, %v2553
      %v2555 = vpop.f32.mrf.mxu0
      %v2556 = vadd.f32 0.0, %v2555
      %2557 = vmatmul.bf16.gmra.mxu0 %v2429
      %v2558 = vpop.f32.mrf.mxu0
      %v2559 = vadd.f32 0.0, %v2558
      %v2560 = vpop.f32.mrf.mxu0
      %v2561 = vadd.f32 0.0, %v2560
      %2562 = vmatmul.bf16.gmra.mxu0 %v2430
      %v2563 = vpop.f32.mrf.mxu0
      %v2564 = vadd.f32 0.0, %v2563
      %v2565 = vpop.f32.mrf.mxu0
      %v2566 = vadd.f32 0.0, %v2565
      %2567 = vmatmul.bf16.gmra.mxu0 %v2431
      %v2568 = vpop.f32.mrf.mxu0
      %v2569 = vadd.f32 0.0, %v2568
      %v2570 = vpop.f32.mrf.mxu0
      %v2571 = vadd.f32 0.0, %v2570
      %2572 = vmatmul.bf16.gmra.mxu0 %v2432
      %v2573 = vpop.f32.mrf.mxu0
      %v2574 = vadd.f32 0.0, %v2573
      %v2575 = vpop.f32.mrf.mxu0
      %v2576 = vadd.f32 0.0, %v2575
      %2577 = vmatmul.bf16.gmra.mxu0 %v2433
      %v2578 = vpop.f32.mrf.mxu0
      %v2579 = vadd.f32 0.0, %v2578
      %v2580 = vpop.f32.mrf.mxu0
      %v2581 = vadd.f32 0.0, %v2580
      %2582 = vmatmul.bf16.gmra.mxu0 %v2434
      %v2583 = vpop.f32.mrf.mxu0
      %v2584 = vadd.f32 0.0, %v2583
      %v2585 = vpop.f32.mrf.mxu0
      %v2586 = vadd.f32 0.0, %v2585
      %2587 = vmatmul.bf16.gmra.mxu0 %v2435
      %v2588 = vpop.f32.mrf.mxu0
      %v2589 = vadd.f32 0.0, %v2588
      %v2590 = vpop.f32.mrf.mxu0
      %v2591 = vadd.f32 0.0, %v2590
      %2592 = vmatmul.bf16.gmra.mxu0 %v2436
      %v2593 = vpop.f32.mrf.mxu0
      %v2594 = vadd.f32 0.0, %v2593
      %v2595 = vpop.f32.mrf.mxu0
      %v2596 = vadd.f32 0.0, %v2595
      %2597 = vmatmul.bf16.gmra.mxu0 %v2437
      %v2598 = vpop.f32.mrf.mxu0
      %v2599 = vadd.f32 0.0, %v2598
      %v2600 = vpop.f32.mrf.mxu0
      %v2601 = vadd.f32 0.0, %v2600
      %2602 = vmatmul.bf16.gmra.mxu0 %v2438
      %v2603 = vpop.f32.mrf.mxu0
      %v2604 = vadd.f32 0.0, %v2603
      %v2605 = vpop.f32.mrf.mxu0
      %v2606 = vadd.f32 0.0, %v2605
      %2607 = vmatmul.bf16.gmra.mxu0 %v2439
      %v2608 = vpop.f32.mrf.mxu0
      %v2609 = vadd.f32 0.0, %v2608
      %v2610 = vpop.f32.mrf.mxu0
      %v2611 = vadd.f32 0.0, %v2610
      %2612 = vmatmul.bf16.gmra.mxu0 %v2440
      %v2613 = vpop.f32.mrf.mxu0
      %v2614 = vadd.f32 0.0, %v2613
      %v2615 = vpop.f32.mrf.mxu0
      %v2616 = vadd.f32 0.0, %v2615
      %2617 = vmatmul.bf16.gmra.mxu0 %v2441
      %v2618 = vpop.f32.mrf.mxu0
      %v2619 = vadd.f32 0.0, %v2618
      %v2620 = vpop.f32.mrf.mxu0
      %v2621 = vadd.f32 0.0, %v2620
      %2622 = vmatmul.bf16.gmra.mxu0 %v2442
      %v2623 = vpop.f32.mrf.mxu0
      %v2624 = vadd.f32 0.0, %v2623
      %v2625 = vpop.f32.mrf.mxu0
      %v2626 = vadd.f32 0.0, %v2625
      %2627 = vmatmul.bf16.gmra.mxu0 %v2443
      %v2628 = vpop.f32.mrf.mxu0
      %v2629 = vadd.f32 0.0, %v2628
      %v2630 = vpop.f32.mrf.mxu0
      %v2631 = vadd.f32 0.0, %v2630
      %2632 = vmatmul.bf16.gmra.mxu0 %v2444
      %v2633 = vpop.f32.mrf.mxu0
      %v2634 = vadd.f32 0.0, %v2633
      %v2635 = vpop.f32.mrf.mxu0
      %v2636 = vadd.f32 0.0, %v2635
      %2637 = vmatmul.bf16.gmra.mxu0 %v2445
      %v2638 = vpop.f32.mrf.mxu0
      %v2639 = vpop.f32.mrf.mxu0
      %2640 = vdwg.mxu0
      %v2641 = vadd.f32 %v2325, %v2524
      %v2642 = vadd.f32 %v2326, %v2526
      %v2643 = vadd.f32 %v2327, %v2529
      %v2644 = vadd.f32 %v2328, %v2531
      %v2645 = vadd.f32 %v2329, %v2534
      %v2646 = vadd.f32 %v2330, %v2536
      %v2647 = vadd.f32 %v2331, %v2539
      %v2648 = vadd.f32 %v2332, %v2541
      %v2649 = vadd.f32 %v2333, %v2544
      %v2650 = vadd.f32 %v2334, %v2546
      %v2651 = vadd.f32 %v2335, %v2549
      %v2652 = vadd.f32 %v2336, %v2551
      %v2653 = vadd.f32 %v2337, %v2554
      %v2654 = vadd.f32 %v2338, %v2556
      %v2655 = vadd.f32 %v2339, %v2559
      %v2656 = vadd.f32 %v2340, %v2561
      %v2657 = vadd.f32 %v2341, %v2564
      %v2658 = vadd.f32 %v2342, %v2566
      %v2659 = vadd.f32 %v2343, %v2569
      %v2660 = vadd.f32 %v2344, %v2571
      %v2661 = vadd.f32 %v2345, %v2574
      %v2662 = vadd.f32 %v2346, %v2576
      %v2663 = vadd.f32 %v2347, %v2579
      %v2664 = vadd.f32 %v2348, %v2581
      %v2665 = vadd.f32 %v2349, %v2584
      %v2666 = vadd.f32 %v2350, %v2586
      %v2667 = vadd.f32 %v2351, %v2589
      %v2668 = vadd.f32 %v2352, %v2591
      %v2669 = vadd.f32 %v2353, %v2594
      %v2670 = vadd.f32 %v2354, %v2596
      %v2671 = vadd.f32 %v2355, %v2599
      %v2672 = vadd.f32 %v2356, %v2601
      %v2673 = vadd.f32 %v2357, %v2604
      %v2674 = vadd.f32 %v2358, %v2606
      %v2675 = vadd.f32 %v2359, %v2609
      %v2676 = vadd.f32 %v2360, %v2611
      %v2677 = vadd.f32 %v2361, %v2614
      %v2678 = vadd.f32 %v2362, %v2616
      %v2679 = vadd.f32 %v2363, %v2619
      %v2680 = vadd.f32 %v2364, %v2621
      %v2681 = vadd.f32 %v2365, %v2624
      %v2682 = vadd.f32 %v2366, %v2626
      %v2683 = vadd.f32 %v2367, %v2629
      %v2684 = vadd.f32 %v2368, %v2631
      %v2685 = vadd.f32 %v2369, %v2634
      %v2686 = vadd.f32 %v2370, %v2636
      %v2687 = vld [vmem:[%s246 + $0x3d] sm:$0xff]
      %v2688 = vld [vmem:[%s246 + $0x45] sm:$0xff]
      %v2689 = vld [vmem:[%s246 + $0x4d] sm:$0xff]
      %v2690 = vld [vmem:[%s246 + $0x55] sm:$0xff]
      %v2691 = vld [vmem:[%s246 + $0x5d] sm:$0xff]
      %v2692 = vld [vmem:[%s246 + $0x65] sm:$0xff]
      %v2693 = vld [vmem:[%s246 + $0x6d] sm:$0xff]
      %v2694 = vld [vmem:[%s246 + $0x75] sm:$0xff]
      %v2695 = vld [vmem:[%s246 + $0x7d] sm:$0xff]
      %v2696 = vld [vmem:[%s246 + $0x85] sm:$0xff]
      %v2697 = vld [vmem:[%s246 + $0x8d] sm:$0xff]
      %v2698 = vld [vmem:[%s246 + $0x95] sm:$0xff]
      %v2699 = vld [vmem:[%s246 + $0x9d] sm:$0xff]
      %v2700 = vld [vmem:[%s246 + $0xa5] sm:$0xff]
      %v2701 = vld [vmem:[%s246 + $0xad] sm:$0xff]
      %v2702 = vld [vmem:[%s246 + $0xb5] sm:$0xff]
      %v2703 = vld [vmem:[%s246 + $0xbd] sm:$0xff]
      %v2704 = vld [vmem:[%s246 + $0xc5] sm:$0xff]
      %v2705 = vld [vmem:[%s246 + $0xcd] sm:$0xff]
      %v2706 = vld [vmem:[%s246 + $0xd5] sm:$0xff]
      %v2707 = vld [vmem:[%s246 + $0xdd] sm:$0xff]
      %v2708 = vld [vmem:[%s246 + $0xe5] sm:$0xff]
      %v2709 = vld [vmem:[%s246 + $0xed] sm:$0xff]
      %v2710 = vld [vmem:[%s246 + $0xf5] sm:$0xff]
      %v2711 = vld [vmem:[%s246 + $0xfd] sm:$0xff]
      %v2712 = vld [vmem:[%s246 + $0x105] sm:$0xff]
      %v2713 = vld [vmem:[%s246 + $0x10d] sm:$0xff]
      %v2714 = vld [vmem:[%s246 + $0x115] sm:$0xff]
      %v2715 = vld [vmem:[%s246 + $0x11d] sm:$0xff]
      %v2716 = vld [vmem:[%s246 + $0x125] sm:$0xff]
      %v2717 = vld [vmem:[%s246 + $0x12d] sm:$0xff]
      %v2718 = vld [vmem:[%s246 + $0x135] sm:$0xff]
      %v2719 = vld [vmem:[%s246 + $0x13d] sm:$0xff]
      %v2720 = vld [vmem:[%s246 + $0x145] sm:$0xff]
      %v2721 = vld [vmem:[%s246 + $0x14d] sm:$0xff]
      %v2722 = vld [vmem:[%s246 + $0x155] sm:$0xff]
      %v2723 = vld [vmem:[%s246 + $0x15d] sm:$0xff]
      %v2724 = vld [vmem:[%s246 + $0x165] sm:$0xff]
      %v2725 = vld [vmem:[%s246 + $0x16d] sm:$0xff]
      %v2726 = vld [vmem:[%s246 + $0x175] sm:$0xff]
      %v2727 = vld [vmem:[%s246 + $0x17d] sm:$0xff]
      %v2728 = vld [vmem:[%s246 + $0x185] sm:$0xff]
      %v2729 = vld [vmem:[%s246 + $0x18d] sm:$0xff]
      %v2730 = vld [vmem:[%s246 + $0x195] sm:$0xff]
      %v2731 = vld [vmem:[%s246 + $0x19d] sm:$0xff]
      %v2732 = vld [vmem:[%s246 + $0x1a5] sm:$0xff]
      %v2733 = vld [vmem:[%s246 + $0x1ad] sm:$0xff]
      %v2734 = vld [vmem:[%s246 + $0x1b5] sm:$0xff]
      %v2735 = vld [vmem:[%s246 + $0x1bd] sm:$0xff]
      %v2736 = vld [vmem:[%s246 + $0x1c5] sm:$0xff]
      %v2737 = vpack.c.bf16 %v2688, %v2687
      %v2738 = vpack.c.bf16 %v2690, %v2689
      %v2739 = vpack.c.bf16 %v2692, %v2691
      %v2740 = vpack.c.bf16 %v2694, %v2693
      %v2741 = vpack.c.bf16 %v2696, %v2695
      %v2742 = vpack.c.bf16 %v2698, %v2697
      %v2743 = vpack.c.bf16 %v2700, %v2699
      %v2744 = vpack.c.bf16 %v2702, %v2701
      %v2745 = vpack.c.bf16 %v2704, %v2703
      %v2746 = vpack.c.bf16 %v2706, %v2705
      %v2747 = vpack.c.bf16 %v2708, %v2707
      %v2748 = vpack.c.bf16 %v2710, %v2709
      %v2749 = vpack.c.bf16 %v2712, %v2711
      %v2750 = vpack.c.bf16 %v2714, %v2713
      %v2751 = vpack.c.bf16 %v2716, %v2715
      %v2752 = vpack.c.bf16 %v2718, %v2717
      %v2753 = vpack.c.bf16 %v2720, %v2719
      %v2754 = vpack.c.bf16 %v2722, %v2721
      %v2755 = vpack.c.bf16 %v2724, %v2723
      %v2756 = vpack.c.bf16 %v2726, %v2725
      %v2757 = vpack.c.bf16 %v2728, %v2727
      %v2758 = vpack.c.bf16 %v2730, %v2729
      %v2759 = vpack.c.bf16 %v2732, %v2731
      %v2760 = vpack.c.bf16 %v2734, %v2733
      %v2761 = vpack.c.bf16 %v2736, %v2735
      %s2762 = scalar_lea.vmem %s1, 512
      %v2763 = vld [vmem:[%s2762] sm:$0xf]
      %v2764 = vld [vmem:[%s2762 + $0x4] sm:$0xf]
      %v2765 = vld [vmem:[%s2762 + $0x8] sm:$0xf]
      %v2766 = vld [vmem:[%s2762 + $0xc] sm:$0xf]
      %v2767 = vld [vmem:[%s2762 + $0x10] sm:$0xf]
      %v2768 = vld [vmem:[%s2762 + $0x14] sm:$0xf]
      %v2769 = vld [vmem:[%s2762 + $0x18] sm:$0xf]
      %v2770 = vld [vmem:[%s2762 + $0x1c] sm:$0xf]
      %v2771 = vld [vmem:[%s2762 + $0x20] sm:$0xf]
      %v2772 = vld [vmem:[%s2762 + $0x24] sm:$0xf]
      %v2773 = vld [vmem:[%s2762 + $0x28] sm:$0xf]
      %v2774 = vld [vmem:[%s2762 + $0x2c] sm:$0xf]
      %v2775 = vld [vmem:[%s2762 + $0x30] sm:$0xf]
      %v2776 = vld [vmem:[%s2762 + $0x34] sm:$0xf]
      %v2777 = vld [vmem:[%s2762 + $0x38] sm:$0xf]
      %v2778 = vld [vmem:[%s2762 + $0x3c] sm:$0xf]
      %v2795 = vunpack.c.l.b16 %v2763
      %v2796 = vunpack.c.l.b16 %v2764
      %v2797 = vunpack.c.l.b16 %v2765
      %v2798 = vunpack.c.l.b16 %v2766
      %v2799 = vunpack.c.l.b16 %v2767
      %v2800 = vunpack.c.l.b16 %v2768
      %v2801 = vunpack.c.l.b16 %v2769
      %v2802 = vunpack.c.l.b16 %v2770
      %v2803 = vunpack.c.l.b16 %v2771
      %v2804 = vunpack.c.l.b16 %v2772
      %v2805 = vunpack.c.l.b16 %v2773
      %v2806 = vunpack.c.l.b16 %v2774
      %v2807 = vunpack.c.l.b16 %v2775
      %v2808 = vunpack.c.l.b16 %v2776
      %v2809 = vunpack.c.l.b16 %v2777
      %v2810 = vunpack.c.l.b16 %v2778
      %v2811 = vpack.c.b16 %v2796, %v2795
      %v2812 = vpack.c.b16 %v2798, %v2797
      %v2813 = vpack.c.b16 %v2800, %v2799
      %v2814 = vpack.c.b16 %v2802, %v2801
      %v2815 = vpack.c.b16 %v2804, %v2803
      %v2816 = vpack.c.b16 %v2806, %v2805
      %v2817 = vpack.c.b16 %v2808, %v2807
      %v2818 = vpack.c.b16 %v2810, %v2809
      %2827 = vmatpush.bf16.msra.mxu0 %v2818
      %2828 = vmatpush.bf16.msra.mxu0 %v2817
      %2829 = vmatpush.bf16.msra.mxu0 %v2816
      %2830 = vmatpush.bf16.msra.mxu0 %v2815
      %2831 = vmatpush.bf16.msra.mxu0 %v2814
      %2832 = vmatpush.bf16.msra.mxu0 %v2813
      %2833 = vmatpush.bf16.msra.mxu0 %v2812
      %2834 = vmatpush.bf16.msra.mxu0 %v2811
      %2835 = vmatmul.bf16.gmra.mxu0 %v2737
      %v2836 = vpop.f32.mrf.mxu0
      %v2837 = vpop.f32.mrf.mxu0
      %2838 = vmatmul.bf16.gmra.mxu0 %v2738
      %v2839 = vpop.f32.mrf.mxu0
      %v2840 = vadd.f32 0.0, %v2839
      %v2841 = vpop.f32.mrf.mxu0
      %v2842 = vadd.f32 0.0, %v2841
      %2843 = vmatmul.bf16.gmra.mxu0 %v2739
      %v2844 = vpop.f32.mrf.mxu0
      %v2845 = vadd.f32 0.0, %v2844
      %v2846 = vpop.f32.mrf.mxu0
      %v2847 = vadd.f32 0.0, %v2846
      %2848 = vmatmul.bf16.gmra.mxu0 %v2740
      %v2849 = vpop.f32.mrf.mxu0
      %v2850 = vadd.f32 0.0, %v2849
      %v2851 = vpop.f32.mrf.mxu0
      %v2852 = vadd.f32 0.0, %v2851
      %2853 = vmatmul.bf16.gmra.mxu0 %v2741
      %v2854 = vpop.f32.mrf.mxu0
      %v2855 = vadd.f32 0.0, %v2854
      %v2856 = vpop.f32.mrf.mxu0
      %v2857 = vadd.f32 0.0, %v2856
      %2858 = vmatmul.bf16.gmra.mxu0 %v2742
      %v2859 = vpop.f32.mrf.mxu0
      %v2860 = vadd.f32 0.0, %v2859
      %v2861 = vpop.f32.mrf.mxu0
      %v2862 = vadd.f32 0.0, %v2861
      %2863 = vmatmul.bf16.gmra.mxu0 %v2743
      %v2864 = vpop.f32.mrf.mxu0
      %v2865 = vadd.f32 0.0, %v2864
      %v2866 = vpop.f32.mrf.mxu0
      %v2867 = vadd.f32 0.0, %v2866
      %2868 = vmatmul.bf16.gmra.mxu0 %v2744
      %v2869 = vpop.f32.mrf.mxu0
      %v2870 = vadd.f32 0.0, %v2869
      %v2871 = vpop.f32.mrf.mxu0
      %v2872 = vadd.f32 0.0, %v2871
      %2873 = vmatmul.bf16.gmra.mxu0 %v2745
      %v2874 = vpop.f32.mrf.mxu0
      %v2875 = vadd.f32 0.0, %v2874
      %v2876 = vpop.f32.mrf.mxu0
      %v2877 = vadd.f32 0.0, %v2876
      %2878 = vmatmul.bf16.gmra.mxu0 %v2746
      %v2879 = vpop.f32.mrf.mxu0
      %v2880 = vadd.f32 0.0, %v2879
      %v2881 = vpop.f32.mrf.mxu0
      %v2882 = vadd.f32 0.0, %v2881
      %2883 = vmatmul.bf16.gmra.mxu0 %v2747
      %v2884 = vpop.f32.mrf.mxu0
      %v2885 = vadd.f32 0.0, %v2884
      %v2886 = vpop.f32.mrf.mxu0
      %v2887 = vadd.f32 0.0, %v2886
      %2888 = vmatmul.bf16.gmra.mxu0 %v2748
      %v2889 = vpop.f32.mrf.mxu0
      %v2890 = vadd.f32 0.0, %v2889
      %v2891 = vpop.f32.mrf.mxu0
      %v2892 = vadd.f32 0.0, %v2891
      %2893 = vmatmul.bf16.gmra.mxu0 %v2749
      %v2894 = vpop.f32.mrf.mxu0
      %v2895 = vadd.f32 0.0, %v2894
      %v2896 = vpop.f32.mrf.mxu0
      %v2897 = vadd.f32 0.0, %v2896
      %2898 = vmatmul.bf16.gmra.mxu0 %v2750
      %v2899 = vpop.f32.mrf.mxu0
      %v2900 = vadd.f32 0.0, %v2899
      %v2901 = vpop.f32.mrf.mxu0
      %v2902 = vadd.f32 0.0, %v2901
      %2903 = vmatmul.bf16.gmra.mxu0 %v2751
      %v2904 = vpop.f32.mrf.mxu0
      %v2905 = vadd.f32 0.0, %v2904
      %v2906 = vpop.f32.mrf.mxu0
      %v2907 = vadd.f32 0.0, %v2906
      %2908 = vmatmul.bf16.gmra.mxu0 %v2752
      %v2909 = vpop.f32.mrf.mxu0
      %v2910 = vadd.f32 0.0, %v2909
      %v2911 = vpop.f32.mrf.mxu0
      %v2912 = vadd.f32 0.0, %v2911
      %2913 = vmatmul.bf16.gmra.mxu0 %v2753
      %v2914 = vpop.f32.mrf.mxu0
      %v2915 = vadd.f32 0.0, %v2914
      %v2916 = vpop.f32.mrf.mxu0
      %v2917 = vadd.f32 0.0, %v2916
      %2918 = vmatmul.bf16.gmra.mxu0 %v2754
      %v2919 = vpop.f32.mrf.mxu0
      %v2920 = vadd.f32 0.0, %v2919
      %v2921 = vpop.f32.mrf.mxu0
      %v2922 = vadd.f32 0.0, %v2921
      %2923 = vmatmul.bf16.gmra.mxu0 %v2755
      %v2924 = vpop.f32.mrf.mxu0
      %v2925 = vadd.f32 0.0, %v2924
      %v2926 = vpop.f32.mrf.mxu0
      %v2927 = vadd.f32 0.0, %v2926
      %2928 = vmatmul.bf16.gmra.mxu0 %v2756
      %v2929 = vpop.f32.mrf.mxu0
      %v2930 = vadd.f32 0.0, %v2929
      %v2931 = vpop.f32.mrf.mxu0
      %v2932 = vadd.f32 0.0, %v2931
      %2933 = vmatmul.bf16.gmra.mxu0 %v2757
      %v2934 = vpop.f32.mrf.mxu0
      %v2935 = vadd.f32 0.0, %v2934
      %v2936 = vpop.f32.mrf.mxu0
      %v2937 = vadd.f32 0.0, %v2936
      %2938 = vmatmul.bf16.gmra.mxu0 %v2758
      %v2939 = vpop.f32.mrf.mxu0
      %v2940 = vadd.f32 0.0, %v2939
      %v2941 = vpop.f32.mrf.mxu0
      %v2942 = vadd.f32 0.0, %v2941
      %2943 = vmatmul.bf16.gmra.mxu0 %v2759
      %v2944 = vpop.f32.mrf.mxu0
      %v2945 = vadd.f32 0.0, %v2944
      %v2946 = vpop.f32.mrf.mxu0
      %v2947 = vadd.f32 0.0, %v2946
      %2948 = vmatmul.bf16.gmra.mxu0 %v2760
      %v2949 = vpop.f32.mrf.mxu0
      %v2950 = vadd.f32 0.0, %v2949
      %v2951 = vpop.f32.mrf.mxu0
      %v2952 = vadd.f32 0.0, %v2951
      %2953 = vmatmul.bf16.gmra.mxu0 %v2761
      %v2954 = vpop.f32.mrf.mxu0
      %v2955 = vpop.f32.mrf.mxu0
      %2956 = vdwg.mxu0
      %v2957 = vadd.f32 %v2641, %v2840
      %v2958 = vadd.f32 %v2642, %v2842
      %v2959 = vadd.f32 %v2643, %v2845
      %v2960 = vadd.f32 %v2644, %v2847
      %v2961 = vadd.f32 %v2645, %v2850
      %v2962 = vadd.f32 %v2646, %v2852
      %v2963 = vadd.f32 %v2647, %v2855
      %v2964 = vadd.f32 %v2648, %v2857
      %v2965 = vadd.f32 %v2649, %v2860
      %v2966 = vadd.f32 %v2650, %v2862
      %v2967 = vadd.f32 %v2651, %v2865
      %v2968 = vadd.f32 %v2652, %v2867
      %v2969 = vadd.f32 %v2653, %v2870
      %v2970 = vadd.f32 %v2654, %v2872
      %v2971 = vadd.f32 %v2655, %v2875
      %v2972 = vadd.f32 %v2656, %v2877
      %v2973 = vadd.f32 %v2657, %v2880
      %v2974 = vadd.f32 %v2658, %v2882
      %v2975 = vadd.f32 %v2659, %v2885
      %v2976 = vadd.f32 %v2660, %v2887
      %v2977 = vadd.f32 %v2661, %v2890
      %v2978 = vadd.f32 %v2662, %v2892
      %v2979 = vadd.f32 %v2663, %v2895
      %v2980 = vadd.f32 %v2664, %v2897
      %v2981 = vadd.f32 %v2665, %v2900
      %v2982 = vadd.f32 %v2666, %v2902
      %v2983 = vadd.f32 %v2667, %v2905
      %v2984 = vadd.f32 %v2668, %v2907
      %v2985 = vadd.f32 %v2669, %v2910
      %v2986 = vadd.f32 %v2670, %v2912
      %v2987 = vadd.f32 %v2671, %v2915
      %v2988 = vadd.f32 %v2672, %v2917
      %v2989 = vadd.f32 %v2673, %v2920
      %v2990 = vadd.f32 %v2674, %v2922
      %v2991 = vadd.f32 %v2675, %v2925
      %v2992 = vadd.f32 %v2676, %v2927
      %v2993 = vadd.f32 %v2677, %v2930
      %v2994 = vadd.f32 %v2678, %v2932
      %v2995 = vadd.f32 %v2679, %v2935
      %v2996 = vadd.f32 %v2680, %v2937
      %v2997 = vadd.f32 %v2681, %v2940
      %v2998 = vadd.f32 %v2682, %v2942
      %v2999 = vadd.f32 %v2683, %v2945
      %v3000 = vadd.f32 %v2684, %v2947
      %v3001 = vadd.f32 %v2685, %v2950
      %v3002 = vadd.f32 %v2686, %v2952
      %v3003 = vld [vmem:[%s2] sm:$0x1]
      %v3005 = vperm.slane %v3003, 0
      %v3007 = vadd.f32 %v2957, %v3005
      %v3008 = vadd.f32 %v2958, %v3005
      %v3009 = vadd.f32 %v2959, %v3005
      %v3010 = vadd.f32 %v2960, %v3005
      %v3011 = vadd.f32 %v2961, %v3005
      %v3012 = vadd.f32 %v2962, %v3005
      %v3013 = vadd.f32 %v2963, %v3005
      %v3014 = vadd.f32 %v2964, %v3005
      %v3015 = vadd.f32 %v2965, %v3005
      %v3016 = vadd.f32 %v2966, %v3005
      %v3017 = vadd.f32 %v2967, %v3005
      %v3018 = vadd.f32 %v2968, %v3005
      %v3019 = vadd.f32 %v2969, %v3005
      %v3020 = vadd.f32 %v2970, %v3005
      %v3021 = vadd.f32 %v2971, %v3005
      %v3022 = vadd.f32 %v2972, %v3005
      %v3023 = vadd.f32 %v2973, %v3005
      %v3024 = vadd.f32 %v2974, %v3005
      %v3025 = vadd.f32 %v2975, %v3005
      %v3026 = vadd.f32 %v2976, %v3005
      %v3027 = vadd.f32 %v2977, %v3005
      %v3028 = vadd.f32 %v2978, %v3005
      %v3029 = vadd.f32 %v2979, %v3005
      %v3030 = vadd.f32 %v2980, %v3005
      %v3031 = vadd.f32 %v2981, %v3005
      %v3032 = vadd.f32 %v2982, %v3005
      %v3033 = vadd.f32 %v2983, %v3005
      %v3034 = vadd.f32 %v2984, %v3005
      %v3035 = vadd.f32 %v2985, %v3005
      %v3036 = vadd.f32 %v2986, %v3005
      %v3037 = vadd.f32 %v2987, %v3005
      %v3038 = vadd.f32 %v2988, %v3005
      %v3039 = vadd.f32 %v2989, %v3005
      %v3040 = vadd.f32 %v2990, %v3005
      %v3041 = vadd.f32 %v2991, %v3005
      %v3042 = vadd.f32 %v2992, %v3005
      %v3043 = vadd.f32 %v2993, %v3005
      %v3044 = vadd.f32 %v2994, %v3005
      %v3045 = vadd.f32 %v2995, %v3005
      %v3046 = vadd.f32 %v2996, %v3005
      %v3047 = vadd.f32 %v2997, %v3005
      %v3048 = vadd.f32 %v2998, %v3005
      %v3049 = vadd.f32 %v2999, %v3005
      %v3050 = vadd.f32 %v3000, %v3005
      %v3051 = vadd.f32 %v3001, %v3005
      %v3052 = vadd.f32 %v3002, %v3005
      %v3053 = vmax.f32 %v3007, 0.0
      %v3054 = vmax.f32 %v3008, 0.0
      %v3055 = vmax.f32 %v3009, 0.0
      %v3056 = vmax.f32 %v3010, 0.0
      %v3057 = vmax.f32 %v3011, 0.0
      %v3058 = vmax.f32 %v3012, 0.0
      %v3059 = vmax.f32 %v3013, 0.0
      %v3060 = vmax.f32 %v3014, 0.0
      %v3061 = vmax.f32 %v3015, 0.0
      %v3062 = vmax.f32 %v3016, 0.0
      %v3063 = vmax.f32 %v3017, 0.0
      %v3064 = vmax.f32 %v3018, 0.0
      %v3065 = vmax.f32 %v3019, 0.0
      %v3066 = vmax.f32 %v3020, 0.0
      %v3067 = vmax.f32 %v3021, 0.0
      %v3068 = vmax.f32 %v3022, 0.0
      %v3069 = vmax.f32 %v3023, 0.0
      %v3070 = vmax.f32 %v3024, 0.0
      %v3071 = vmax.f32 %v3025, 0.0
      %v3072 = vmax.f32 %v3026, 0.0
      %v3073 = vmax.f32 %v3027, 0.0
      %v3074 = vmax.f32 %v3028, 0.0
      %v3075 = vmax.f32 %v3029, 0.0
      %v3076 = vmax.f32 %v3030, 0.0
      %v3077 = vmax.f32 %v3031, 0.0
      %v3078 = vmax.f32 %v3032, 0.0
      %v3079 = vmax.f32 %v3033, 0.0
      %v3080 = vmax.f32 %v3034, 0.0
      %v3081 = vmax.f32 %v3035, 0.0
      %v3082 = vmax.f32 %v3036, 0.0
      %v3083 = vmax.f32 %v3037, 0.0
      %v3084 = vmax.f32 %v3038, 0.0
      %v3085 = vmax.f32 %v3039, 0.0
      %v3086 = vmax.f32 %v3040, 0.0
      %v3087 = vmax.f32 %v3041, 0.0
      %v3088 = vmax.f32 %v3042, 0.0
      %v3089 = vmax.f32 %v3043, 0.0
      %v3090 = vmax.f32 %v3044, 0.0
      %v3091 = vmax.f32 %v3045, 0.0
      %v3092 = vmax.f32 %v3046, 0.0
      %v3093 = vmax.f32 %v3047, 0.0
      %v3094 = vmax.f32 %v3048, 0.0
      %v3095 = vmax.f32 %v3049, 0.0
      %v3096 = vmax.f32 %v3050, 0.0
      %v3097 = vmax.f32 %v3051, 0.0
      %v3098 = vmax.f32 %v3052, 0.0
      %v3099 = vld [vmem:[%s5 + $0x10] sm:$0xff]
      %v3100 = vld [vmem:[%s5 + $0x18] sm:$0xff]
      %v3101 = vld [vmem:[%s5 + $0x20] sm:$0xff]
      %v3102 = vld [vmem:[%s5 + $0x28] sm:$0xff]
      %v3103 = vld [vmem:[%s5 + $0x30] sm:$0xff]
      %v3104 = vld [vmem:[%s5 + $0x38] sm:$0xff]
      %v3105 = vld [vmem:[%s5 + $0x40] sm:$0xff]
      %v3106 = vld [vmem:[%s5 + $0x48] sm:$0xff]
      %v3107 = vld [vmem:[%s5 + $0x50] sm:$0xff]
      %v3108 = vld [vmem:[%s5 + $0x58] sm:$0xff]
      %v3109 = vld [vmem:[%s5 + $0x60] sm:$0xff]
      %v3110 = vld [vmem:[%s5 + $0x68] sm:$0xff]
      %v3111 = vld [vmem:[%s5 + $0x70] sm:$0xff]
      %v3112 = vld [vmem:[%s5 + $0x78] sm:$0xff]
      %v3113 = vld [vmem:[%s5 + $0x80] sm:$0xff]
      %v3114 = vld [vmem:[%s5 + $0x88] sm:$0xff]
      %v3115 = vld [vmem:[%s5 + $0x90] sm:$0xff]
      %v3116 = vld [vmem:[%s5 + $0x98] sm:$0xff]
      %v3117 = vld [vmem:[%s5 + $0xa0] sm:$0xff]
      %v3118 = vld [vmem:[%s5 + $0xa8] sm:$0xff]
      %v3119 = vld [vmem:[%s5 + $0xb0] sm:$0xff]
      %v3120 = vld [vmem:[%s5 + $0xb8] sm:$0xff]
      %v3121 = vld [vmem:[%s5 + $0xc0] sm:$0xff]
      %v3122 = vld [vmem:[%s5 + $0xc8] sm:$0xff]
      %v3123 = vld [vmem:[%s5 + $0xd0] sm:$0xff]
      %v3124 = vld [vmem:[%s5 + $0xd8] sm:$0xff]
      %v3125 = vld [vmem:[%s5 + $0xe0] sm:$0xff]
      %v3126 = vld [vmem:[%s5 + $0xe8] sm:$0xff]
      %v3127 = vld [vmem:[%s5 + $0xf0] sm:$0xff]
      %v3128 = vld [vmem:[%s5 + $0xf8] sm:$0xff]
      %v3129 = vld [vmem:[%s5 + $0x100] sm:$0xff]
      %v3130 = vld [vmem:[%s5 + $0x108] sm:$0xff]
      %v3131 = vld [vmem:[%s5 + $0x110] sm:$0xff]
      %v3132 = vld [vmem:[%s5 + $0x118] sm:$0xff]
      %v3133 = vld [vmem:[%s5 + $0x120] sm:$0xff]
      %v3134 = vld [vmem:[%s5 + $0x128] sm:$0xff]
      %v3135 = vld [vmem:[%s5 + $0x130] sm:$0xff]
      %v3136 = vld [vmem:[%s5 + $0x138] sm:$0xff]
      %v3137 = vld [vmem:[%s5 + $0x140] sm:$0xff]
      %v3138 = vld [vmem:[%s5 + $0x148] sm:$0xff]
      %v3139 = vld [vmem:[%s5 + $0x150] sm:$0xff]
      %v3140 = vld [vmem:[%s5 + $0x158] sm:$0xff]
      %v3141 = vld [vmem:[%s5 + $0x160] sm:$0xff]
      %v3142 = vld [vmem:[%s5 + $0x168] sm:$0xff]
      %v3143 = vld [vmem:[%s5 + $0x170] sm:$0xff]
      %v3144 = vld [vmem:[%s5 + $0x178] sm:$0xff]
      %3146 = vset.pattern.permute.xlu0 0
      %3147 = vperm.xlu0 %3146, %v3099
      %v3148 = vpop.permute.xlu0 %3147
      %3151 = vset.pattern.permute.xlu0 0
      %3152 = vperm.xlu0 %3151, %v3100
      %v3153 = vpop.permute.xlu0 %3152
      %3156 = vset.pattern.permute.xlu0 0
      %3157 = vperm.xlu0 %3156, %v3101
      %v3158 = vpop.permute.xlu0 %3157
      %3161 = vset.pattern.permute.xlu0 0
      %3162 = vperm.xlu0 %3161, %v3102
      %v3163 = vpop.permute.xlu0 %3162
      %3166 = vset.pattern.permute.xlu0 0
      %3167 = vperm.xlu0 %3166, %v3103
      %v3168 = vpop.permute.xlu0 %3167
      %3171 = vset.pattern.permute.xlu0 0
      %3172 = vperm.xlu0 %3171, %v3104
      %v3173 = vpop.permute.xlu0 %3172
      %3176 = vset.pattern.permute.xlu0 0
      %3177 = vperm.xlu0 %3176, %v3105
      %v3178 = vpop.permute.xlu0 %3177
      %3181 = vset.pattern.permute.xlu0 0
      %3182 = vperm.xlu0 %3181, %v3106
      %v3183 = vpop.permute.xlu0 %3182
      %3186 = vset.pattern.permute.xlu0 0
      %3187 = vperm.xlu0 %3186, %v3107
      %v3188 = vpop.permute.xlu0 %3187
      %3191 = vset.pattern.permute.xlu0 0
      %3192 = vperm.xlu0 %3191, %v3108
      %v3193 = vpop.permute.xlu0 %3192
      %3196 = vset.pattern.permute.xlu0 0
      %3197 = vperm.xlu0 %3196, %v3109
      %v3198 = vpop.permute.xlu0 %3197
      %3201 = vset.pattern.permute.xlu0 0
      %3202 = vperm.xlu0 %3201, %v3110
      %v3203 = vpop.permute.xlu0 %3202
      %3206 = vset.pattern.permute.xlu0 0
      %3207 = vperm.xlu0 %3206, %v3111
      %v3208 = vpop.permute.xlu0 %3207
      %3211 = vset.pattern.permute.xlu0 0
      %3212 = vperm.xlu0 %3211, %v3112
      %v3213 = vpop.permute.xlu0 %3212
      %3216 = vset.pattern.permute.xlu0 0
      %3217 = vperm.xlu0 %3216, %v3113
      %v3218 = vpop.permute.xlu0 %3217
      %3221 = vset.pattern.permute.xlu0 0
      %3222 = vperm.xlu0 %3221, %v3114
      %v3223 = vpop.permute.xlu0 %3222
      %3226 = vset.pattern.permute.xlu0 0
      %3227 = vperm.xlu0 %3226, %v3115
      %v3228 = vpop.permute.xlu0 %3227
      %3231 = vset.pattern.permute.xlu0 0
      %3232 = vperm.xlu0 %3231, %v3116
      %v3233 = vpop.permute.xlu0 %3232
      %3236 = vset.pattern.permute.xlu0 0
      %3237 = vperm.xlu0 %3236, %v3117
      %v3238 = vpop.permute.xlu0 %3237
      %3241 = vset.pattern.permute.xlu0 0
      %3242 = vperm.xlu0 %3241, %v3118
      %v3243 = vpop.permute.xlu0 %3242
      %3246 = vset.pattern.permute.xlu0 0
      %3247 = vperm.xlu0 %3246, %v3119
      %v3248 = vpop.permute.xlu0 %3247
      %3251 = vset.pattern.permute.xlu0 0
      %3252 = vperm.xlu0 %3251, %v3120
      %v3253 = vpop.permute.xlu0 %3252
      %3256 = vset.pattern.permute.xlu0 0
      %3257 = vperm.xlu0 %3256, %v3121
      %v3258 = vpop.permute.xlu0 %3257
      %3261 = vset.pattern.permute.xlu0 0
      %3262 = vperm.xlu0 %3261, %v3122
      %v3263 = vpop.permute.xlu0 %3262
      %3266 = vset.pattern.permute.xlu0 0
      %3267 = vperm.xlu0 %3266, %v3123
      %v3268 = vpop.permute.xlu0 %3267
      %3271 = vset.pattern.permute.xlu0 0
      %3272 = vperm.xlu0 %3271, %v3124
      %v3273 = vpop.permute.xlu0 %3272
      %3276 = vset.pattern.permute.xlu0 0
      %3277 = vperm.xlu0 %3276, %v3125
      %v3278 = vpop.permute.xlu0 %3277
      %3281 = vset.pattern.permute.xlu0 0
      %3282 = vperm.xlu0 %3281, %v3126
      %v3283 = vpop.permute.xlu0 %3282
      %3286 = vset.pattern.permute.xlu0 0
      %3287 = vperm.xlu0 %3286, %v3127
      %v3288 = vpop.permute.xlu0 %3287
      %3291 = vset.pattern.permute.xlu0 0
      %3292 = vperm.xlu0 %3291, %v3128
      %v3293 = vpop.permute.xlu0 %3292
      %3296 = vset.pattern.permute.xlu0 0
      %3297 = vperm.xlu0 %3296, %v3129
      %v3298 = vpop.permute.xlu0 %3297
      %3301 = vset.pattern.permute.xlu0 0
      %3302 = vperm.xlu0 %3301, %v3130
      %v3303 = vpop.permute.xlu0 %3302
      %3306 = vset.pattern.permute.xlu0 0
      %3307 = vperm.xlu0 %3306, %v3131
      %v3308 = vpop.permute.xlu0 %3307
      %3311 = vset.pattern.permute.xlu0 0
      %3312 = vperm.xlu0 %3311, %v3132
      %v3313 = vpop.permute.xlu0 %3312
      %3316 = vset.pattern.permute.xlu0 0
      %3317 = vperm.xlu0 %3316, %v3133
      %v3318 = vpop.permute.xlu0 %3317
      %3321 = vset.pattern.permute.xlu0 0
      %3322 = vperm.xlu0 %3321, %v3134
      %v3323 = vpop.permute.xlu0 %3322
      %3326 = vset.pattern.permute.xlu0 0
      %3327 = vperm.xlu0 %3326, %v3135
      %v3328 = vpop.permute.xlu0 %3327
      %3331 = vset.pattern.permute.xlu0 0
      %3332 = vperm.xlu0 %3331, %v3136
      %v3333 = vpop.permute.xlu0 %3332
      %3336 = vset.pattern.permute.xlu0 0
      %3337 = vperm.xlu0 %3336, %v3137
      %v3338 = vpop.permute.xlu0 %3337
      %3341 = vset.pattern.permute.xlu0 0
      %3342 = vperm.xlu0 %3341, %v3138
      %v3343 = vpop.permute.xlu0 %3342
      %3346 = vset.pattern.permute.xlu0 0
      %3347 = vperm.xlu0 %3346, %v3139
      %v3348 = vpop.permute.xlu0 %3347
      %3351 = vset.pattern.permute.xlu0 0
      %3352 = vperm.xlu0 %3351, %v3140
      %v3353 = vpop.permute.xlu0 %3352
      %3356 = vset.pattern.permute.xlu0 0
      %3357 = vperm.xlu0 %3356, %v3141
      %v3358 = vpop.permute.xlu0 %3357
      %3361 = vset.pattern.permute.xlu0 0
      %3362 = vperm.xlu0 %3361, %v3142
      %v3363 = vpop.permute.xlu0 %3362
      %3366 = vset.pattern.permute.xlu0 0
      %3367 = vperm.xlu0 %3366, %v3143
      %v3368 = vpop.permute.xlu0 %3367
      %3371 = vset.pattern.permute.xlu0 0
      %3372 = vperm.xlu0 %3371, %v3144
      %v3373 = vpop.permute.xlu0 %3372
      %v3375 = vmul.f32 %v3053, %v3148
      %v3376 = vmul.f32 %v3054, %v3153
      %v3377 = vmul.f32 %v3055, %v3158
      %v3378 = vmul.f32 %v3056, %v3163
      %v3379 = vmul.f32 %v3057, %v3168
      %v3380 = vmul.f32 %v3058, %v3173
      %v3381 = vmul.f32 %v3059, %v3178
      %v3382 = vmul.f32 %v3060, %v3183
      %v3383 = vmul.f32 %v3061, %v3188
      %v3384 = vmul.f32 %v3062, %v3193
      %v3385 = vmul.f32 %v3063, %v3198
      %v3386 = vmul.f32 %v3064, %v3203
      %v3387 = vmul.f32 %v3065, %v3208
      %v3388 = vmul.f32 %v3066, %v3213
      %v3389 = vmul.f32 %v3067, %v3218
      %v3390 = vmul.f32 %v3068, %v3223
      %v3391 = vmul.f32 %v3069, %v3228
      %v3392 = vmul.f32 %v3070, %v3233
      %v3393 = vmul.f32 %v3071, %v3238
      %v3394 = vmul.f32 %v3072, %v3243
      %v3395 = vmul.f32 %v3073, %v3248
      %v3396 = vmul.f32 %v3074, %v3253
      %v3397 = vmul.f32 %v3075, %v3258
      %v3398 = vmul.f32 %v3076, %v3263
      %v3399 = vmul.f32 %v3077, %v3268
      %v3400 = vmul.f32 %v3078, %v3273
      %v3401 = vmul.f32 %v3079, %v3278
      %v3402 = vmul.f32 %v3080, %v3283
      %v3403 = vmul.f32 %v3081, %v3288
      %v3404 = vmul.f32 %v3082, %v3293
      %v3405 = vmul.f32 %v3083, %v3298
      %v3406 = vmul.f32 %v3084, %v3303
      %v3407 = vmul.f32 %v3085, %v3308
      %v3408 = vmul.f32 %v3086, %v3313
      %v3409 = vmul.f32 %v3087, %v3318
      %v3410 = vmul.f32 %v3088, %v3323
      %v3411 = vmul.f32 %v3089, %v3328
      %v3412 = vmul.f32 %v3090, %v3333
      %v3413 = vmul.f32 %v3091, %v3338
      %v3414 = vmul.f32 %v3092, %v3343
      %v3415 = vmul.f32 %v3093, %v3348
      %v3416 = vmul.f32 %v3094, %v3353
      %v3417 = vmul.f32 %v3095, %v3358
      %v3418 = vmul.f32 %v3096, %v3363
      %v3419 = vmul.f32 %v3097, %v3368
      %v3420 = vmul.f32 %v3098, %v3373
      %v3421 = vpack.c.bf16 %v3376, %v3375
      %v3422 = vpack.c.bf16 %v3378, %v3377
      %v3423 = vpack.c.bf16 %v3380, %v3379
      %v3424 = vpack.c.bf16 %v3382, %v3381
      %v3425 = vpack.c.bf16 %v3384, %v3383
      %v3426 = vpack.c.bf16 %v3386, %v3385
      %v3427 = vpack.c.bf16 %v3388, %v3387
      %v3428 = vpack.c.bf16 %v3390, %v3389
      %v3429 = vpack.c.bf16 %v3392, %v3391
      %v3430 = vpack.c.bf16 %v3394, %v3393
      %v3431 = vpack.c.bf16 %v3396, %v3395
      %v3432 = vpack.c.bf16 %v3398, %v3397
      %v3433 = vpack.c.bf16 %v3400, %v3399
      %v3434 = vpack.c.bf16 %v3402, %v3401
      %v3435 = vpack.c.bf16 %v3404, %v3403
      %v3436 = vpack.c.bf16 %v3406, %v3405
      %v3437 = vpack.c.bf16 %v3408, %v3407
      %v3438 = vpack.c.bf16 %v3410, %v3409
      %v3439 = vpack.c.bf16 %v3412, %v3411
      %v3440 = vpack.c.bf16 %v3414, %v3413
      %v3441 = vpack.c.bf16 %v3415, %v3415
      %v3442 = vld [vmem:[%s3] sm:$0xf]
      %v3443 = vld [vmem:[%s3 + $0x4] sm:$0xf]
      %v3444 = vld [vmem:[%s3 + $0x8] sm:$0xf]
      %v3445 = vld [vmem:[%s3 + $0xc] sm:$0xf]
      %v3446 = vld [vmem:[%s3 + $0x10] sm:$0xf]
      %v3447 = vld [vmem:[%s3 + $0x14] sm:$0xf]
      %v3448 = vld [vmem:[%s3 + $0x18] sm:$0xf]
      %v3449 = vld [vmem:[%s3 + $0x1c] sm:$0xf]
      %v3450 = vld [vmem:[%s3 + $0x20] sm:$0xf]
      %v3451 = vld [vmem:[%s3 + $0x24] sm:$0xf]
      %v3452 = vld [vmem:[%s3 + $0x28] sm:$0xf]
      %v3453 = vld [vmem:[%s3 + $0x2c] sm:$0xf]
      %v3454 = vld [vmem:[%s3 + $0x30] sm:$0xf]
      %v3455 = vld [vmem:[%s3 + $0x34] sm:$0xf]
      %v3456 = vld [vmem:[%s3 + $0x38] sm:$0xf]
      %v3457 = vld [vmem:[%s3 + $0x3c] sm:$0xf]
      %s3458 = scalar_lea.vmem %s3, 64
      %v3459 = vld [vmem:[%s3458] sm:$0xf]
      %v3460 = vld [vmem:[%s3458 + $0x4] sm:$0xf]
      %v3461 = vld [vmem:[%s3458 + $0x8] sm:$0xf]
      %v3462 = vld [vmem:[%s3458 + $0xc] sm:$0xf]
      %v3463 = vld [vmem:[%s3458 + $0x10] sm:$0xf]
      %v3464 = vld [vmem:[%s3458 + $0x14] sm:$0xf]
      %v3465 = vld [vmem:[%s3458 + $0x18] sm:$0xf]
      %v3466 = vld [vmem:[%s3458 + $0x1c] sm:$0xf]
      %v3467 = vld [vmem:[%s3458 + $0x20] sm:$0xf]
      %v3468 = vld [vmem:[%s3458 + $0x24] sm:$0xf]
      %v3469 = vld [vmem:[%s3458 + $0x28] sm:$0xf]
      %v3470 = vld [vmem:[%s3458 + $0x2c] sm:$0xf]
      %v3471 = vld [vmem:[%s3458 + $0x30] sm:$0xf]
      %v3472 = vld [vmem:[%s3458 + $0x34] sm:$0xf]
      %v3473 = vld [vmem:[%s3458 + $0x38] sm:$0xf]
      %v3474 = vld [vmem:[%s3458 + $0x3c] sm:$0xf]
      %vm3496 = vcmask 1045504
      %v3497 = vrot.slane %v3421, 2
      %v3498 = vrot.slane %v3422, 2
      %v3499 = vsel %vm3496, %v3497, %v3498
      %v3500 = vrot.slane %v3423, 2
      %v3501 = vsel %vm3496, %v3498, %v3500
      %v3502 = vrot.slane %v3424, 2
      %v3503 = vsel %vm3496, %v3500, %v3502
      %v3504 = vrot.slane %v3425, 2
      %v3505 = vsel %vm3496, %v3502, %v3504
      %v3506 = vrot.slane %v3426, 2
      %v3507 = vsel %vm3496, %v3504, %v3506
      %v3508 = vrot.slane %v3427, 2
      %v3509 = vsel %vm3496, %v3506, %v3508
      %v3510 = vrot.slane %v3428, 2
      %v3511 = vsel %vm3496, %v3508, %v3510
      %v3512 = vrot.slane %v3429, 2
      %v3513 = vsel %vm3496, %v3510, %v3512
      %v3514 = vrot.slane %v3430, 2
      %v3515 = vsel %vm3496, %v3512, %v3514
      %v3516 = vrot.slane %v3431, 2
      %v3517 = vsel %vm3496, %v3514, %v3516
      %v3518 = vrot.slane %v3432, 2
      %v3519 = vsel %vm3496, %v3516, %v3518
      %v3520 = vrot.slane %v3433, 2
      %v3521 = vsel %vm3496, %v3518, %v3520
      %v3522 = vrot.slane %v3434, 2
      %v3523 = vsel %vm3496, %v3520, %v3522
      %v3524 = vrot.slane %v3435, 2
      %v3525 = vsel %vm3496, %v3522, %v3524
      %v3526 = vrot.slane %v3436, 2
      %v3527 = vsel %vm3496, %v3524, %v3526
      %v3528 = vrot.slane %v3437, 2
      %v3529 = vsel %vm3496, %v3526, %v3528
      %v3530 = vrot.slane %v3438, 2
      %v3531 = vsel %vm3496, %v3528, %v3530
      %v3532 = vrot.slane %v3439, 2
      %v3533 = vsel %vm3496, %v3530, %v3532
      %v3534 = vrot.slane %v3440, 2
      %v3535 = vsel %vm3496, %v3532, %v3534
      %v3536 = vrot.slane %v3441, 2
      %v3537 = vsel %vm3496, %v3534, %v3536
      %v3574 = vunpack.c.l.b16 %v3459
      %v3575 = vunpack.c.l.b16 %v3460
      %v3576 = vunpack.c.l.b16 %v3461
      %v3577 = vunpack.c.l.b16 %v3462
      %v3578 = vunpack.c.l.b16 %v3463
      %v3579 = vunpack.c.l.b16 %v3464
      %v3580 = vunpack.c.l.b16 %v3465
      %v3581 = vunpack.c.l.b16 %v3466
      %v3582 = vunpack.c.l.b16 %v3467
      %v3583 = vunpack.c.l.b16 %v3468
      %v3584 = vunpack.c.l.b16 %v3469
      %v3585 = vunpack.c.l.b16 %v3470
      %v3586 = vunpack.c.l.b16 %v3471
      %v3587 = vunpack.c.l.b16 %v3472
      %v3588 = vunpack.c.l.b16 %v3473
      %v3589 = vunpack.c.l.b16 %v3474
      %v3590 = vpack.c.b16 %v3575, %v3574
      %v3591 = vpack.c.b16 %v3577, %v3576
      %v3592 = vpack.c.b16 %v3579, %v3578
      %v3593 = vpack.c.b16 %v3581, %v3580
      %v3594 = vpack.c.b16 %v3583, %v3582
      %v3595 = vpack.c.b16 %v3585, %v3584
      %v3596 = vpack.c.b16 %v3587, %v3586
      %v3597 = vpack.c.b16 %v3589, %v3588
      %3606 = vmatpush.bf16.msra.mxu0 %v3597
      %3607 = vmatpush.bf16.msra.mxu0 %v3596
      %3608 = vmatpush.bf16.msra.mxu0 %v3595
      %3609 = vmatpush.bf16.msra.mxu0 %v3594
      %3610 = vmatpush.bf16.msra.mxu0 %v3593
      %3611 = vmatpush.bf16.msra.mxu0 %v3592
      %3612 = vmatpush.bf16.msra.mxu0 %v3591
      %3613 = vmatpush.bf16.msra.mxu0 %v3590
      %3614 = vmatmul.bf16.gmra.mxu0 %v3499
      %v3615 = vpop.f32.mrf.mxu0
      %v3616 = vadd.f32 0.0, %v3615
      %v3617 = vpop.f32.mrf.mxu0
      %v3618 = vadd.f32 0.0, %v3617
      %3619 = vmatmul.bf16.gmra.mxu0 %v3501
      %v3620 = vpop.f32.mrf.mxu0
      %v3621 = vadd.f32 0.0, %v3620
      %v3622 = vpop.f32.mrf.mxu0
      %v3623 = vadd.f32 0.0, %v3622
      %3624 = vmatmul.bf16.gmra.mxu0 %v3503
      %v3625 = vpop.f32.mrf.mxu0
      %v3626 = vadd.f32 0.0, %v3625
      %v3627 = vpop.f32.mrf.mxu0
      %v3628 = vadd.f32 0.0, %v3627
      %3629 = vmatmul.bf16.gmra.mxu0 %v3505
      %v3630 = vpop.f32.mrf.mxu0
      %v3631 = vadd.f32 0.0, %v3630
      %v3632 = vpop.f32.mrf.mxu0
      %v3633 = vadd.f32 0.0, %v3632
      %3634 = vmatmul.bf16.gmra.mxu0 %v3507
      %v3635 = vpop.f32.mrf.mxu0
      %v3636 = vadd.f32 0.0, %v3635
      %v3637 = vpop.f32.mrf.mxu0
      %v3638 = vadd.f32 0.0, %v3637
      %3639 = vmatmul.bf16.gmra.mxu0 %v3509
      %v3640 = vpop.f32.mrf.mxu0
      %v3641 = vadd.f32 0.0, %v3640
      %v3642 = vpop.f32.mrf.mxu0
      %v3643 = vadd.f32 0.0, %v3642
      %3644 = vmatmul.bf16.gmra.mxu0 %v3511
      %v3645 = vpop.f32.mrf.mxu0
      %v3646 = vadd.f32 0.0, %v3645
      %v3647 = vpop.f32.mrf.mxu0
      %v3648 = vadd.f32 0.0, %v3647
      %3649 = vmatmul.bf16.gmra.mxu0 %v3513
      %v3650 = vpop.f32.mrf.mxu0
      %v3651 = vadd.f32 0.0, %v3650
      %v3652 = vpop.f32.mrf.mxu0
      %v3653 = vadd.f32 0.0, %v3652
      %3654 = vmatmul.bf16.gmra.mxu0 %v3515
      %v3655 = vpop.f32.mrf.mxu0
      %v3656 = vadd.f32 0.0, %v3655
      %v3657 = vpop.f32.mrf.mxu0
      %v3658 = vadd.f32 0.0, %v3657
      %3659 = vmatmul.bf16.gmra.mxu0 %v3517
      %v3660 = vpop.f32.mrf.mxu0
      %v3661 = vadd.f32 0.0, %v3660
      %v3662 = vpop.f32.mrf.mxu0
      %v3663 = vadd.f32 0.0, %v3662
      %3664 = vmatmul.bf16.gmra.mxu0 %v3519
      %v3665 = vpop.f32.mrf.mxu0
      %v3666 = vadd.f32 0.0, %v3665
      %v3667 = vpop.f32.mrf.mxu0
      %v3668 = vadd.f32 0.0, %v3667
      %3669 = vmatmul.bf16.gmra.mxu0 %v3521
      %v3670 = vpop.f32.mrf.mxu0
      %v3671 = vadd.f32 0.0, %v3670
      %v3672 = vpop.f32.mrf.mxu0
      %v3673 = vadd.f32 0.0, %v3672
      %3674 = vmatmul.bf16.gmra.mxu0 %v3523
      %v3675 = vpop.f32.mrf.mxu0
      %v3676 = vadd.f32 0.0, %v3675
      %v3677 = vpop.f32.mrf.mxu0
      %v3678 = vadd.f32 0.0, %v3677
      %3679 = vmatmul.bf16.gmra.mxu0 %v3525
      %v3680 = vpop.f32.mrf.mxu0
      %v3681 = vadd.f32 0.0, %v3680
      %v3682 = vpop.f32.mrf.mxu0
      %v3683 = vadd.f32 0.0, %v3682
      %3684 = vmatmul.bf16.gmra.mxu0 %v3527
      %v3685 = vpop.f32.mrf.mxu0
      %v3686 = vadd.f32 0.0, %v3685
      %v3687 = vpop.f32.mrf.mxu0
      %v3688 = vadd.f32 0.0, %v3687
      %3689 = vmatmul.bf16.gmra.mxu0 %v3529
      %v3690 = vpop.f32.mrf.mxu0
      %v3691 = vadd.f32 0.0, %v3690
      %v3692 = vpop.f32.mrf.mxu0
      %v3693 = vadd.f32 0.0, %v3692
      %3694 = vmatmul.bf16.gmra.mxu0 %v3531
      %v3695 = vpop.f32.mrf.mxu0
      %v3696 = vadd.f32 0.0, %v3695
      %v3697 = vpop.f32.mrf.mxu0
      %v3698 = vadd.f32 0.0, %v3697
      %3699 = vmatmul.bf16.gmra.mxu0 %v3533
      %v3700 = vpop.f32.mrf.mxu0
      %v3701 = vadd.f32 0.0, %v3700
      %v3702 = vpop.f32.mrf.mxu0
      %v3703 = vadd.f32 0.0, %v3702
      %3704 = vmatmul.bf16.gmra.mxu0 %v3535
      %v3705 = vpop.f32.mrf.mxu0
      %v3706 = vadd.f32 0.0, %v3705
      %v3707 = vpop.f32.mrf.mxu0
      %v3708 = vadd.f32 0.0, %v3707
      %3709 = vmatmul.bf16.gmra.mxu0 %v3537
      %v3710 = vpop.f32.mrf.mxu0
      %v3711 = vadd.f32 0.0, %v3710
      %v3712 = vpop.f32.mrf.mxu0
      %v3713 = vadd.f32 0.0, %v3712
      %3714 = vdwg.mxu0
      %vm3715 = vsmask.f32 6400
      %v3717 = vshrl.u32 %v3421, 16
      %v3719 = vrot.slane %v3717, 1
      %v3720 = vshll.u32 %v3421, 16
      %v3722 = vrot.slane %v3720, 2
      %v3723 = vor.u32 %v3719, %v3722
      %v3725 = vshrl.u32 %v3422, 16
      %v3727 = vrot.slane %v3725, 1
      %v3728 = vshll.u32 %v3422, 16
      %v3730 = vrot.slane %v3728, 2
      %v3731 = vor.u32 %v3727, %v3730
      %v3732 = vsel %vm3715, %v3723, %v3731
      %v3734 = vshrl.u32 %v3423, 16
      %v3736 = vrot.slane %v3734, 1
      %v3737 = vshll.u32 %v3423, 16
      %v3739 = vrot.slane %v3737, 2
      %v3740 = vor.u32 %v3736, %v3739
      %v3741 = vsel %vm3715, %v3731, %v3740
      %v3743 = vshrl.u32 %v3424, 16
      %v3745 = vrot.slane %v3743, 1
      %v3746 = vshll.u32 %v3424, 16
      %v3748 = vrot.slane %v3746, 2
      %v3749 = vor.u32 %v3745, %v3748
      %v3750 = vsel %vm3715, %v3740, %v3749
      %v3752 = vshrl.u32 %v3425, 16
      %v3754 = vrot.slane %v3752, 1
      %v3755 = vshll.u32 %v3425, 16
      %v3757 = vrot.slane %v3755, 2
      %v3758 = vor.u32 %v3754, %v3757
      %v3759 = vsel %vm3715, %v3749, %v3758
      %v3761 = vshrl.u32 %v3426, 16
      %v3763 = vrot.slane %v3761, 1
      %v3764 = vshll.u32 %v3426, 16
      %v3766 = vrot.slane %v3764, 2
      %v3767 = vor.u32 %v3763, %v3766
      %v3768 = vsel %vm3715, %v3758, %v3767
      %v3770 = vshrl.u32 %v3427, 16
      %v3772 = vrot.slane %v3770, 1
      %v3773 = vshll.u32 %v3427, 16
      %v3775 = vrot.slane %v3773, 2
      %v3776 = vor.u32 %v3772, %v3775
      %v3777 = vsel %vm3715, %v3767, %v3776
      %v3779 = vshrl.u32 %v3428, 16
      %v3781 = vrot.slane %v3779, 1
      %v3782 = vshll.u32 %v3428, 16
      %v3784 = vrot.slane %v3782, 2
      %v3785 = vor.u32 %v3781, %v3784
      %v3786 = vsel %vm3715, %v3776, %v3785
      %v3788 = vshrl.u32 %v3429, 16
      %v3790 = vrot.slane %v3788, 1
      %v3791 = vshll.u32 %v3429, 16
      %v3793 = vrot.slane %v3791, 2
      %v3794 = vor.u32 %v3790, %v3793
      %v3795 = vsel %vm3715, %v3785, %v3794
      %v3797 = vshrl.u32 %v3430, 16
      %v3799 = vrot.slane %v3797, 1
      %v3800 = vshll.u32 %v3430, 16
      %v3802 = vrot.slane %v3800, 2
      %v3803 = vor.u32 %v3799, %v3802
      %v3804 = vsel %vm3715, %v3794, %v3803
      %v3806 = vshrl.u32 %v3431, 16
      %v3808 = vrot.slane %v3806, 1
      %v3809 = vshll.u32 %v3431, 16
      %v3811 = vrot.slane %v3809, 2
      %v3812 = vor.u32 %v3808, %v3811
      %v3813 = vsel %vm3715, %v3803, %v3812
      %v3815 = vshrl.u32 %v3432, 16
      %v3817 = vrot.slane %v3815, 1
      %v3818 = vshll.u32 %v3432, 16
      %v3820 = vrot.slane %v3818, 2
      %v3821 = vor.u32 %v3817, %v3820
      %v3822 = vsel %vm3715, %v3812, %v3821
      %v3824 = vshrl.u32 %v3433, 16
      %v3826 = vrot.slane %v3824, 1
      %v3827 = vshll.u32 %v3433, 16
      %v3829 = vrot.slane %v3827, 2
      %v3830 = vor.u32 %v3826, %v3829
      %v3831 = vsel %vm3715, %v3821, %v3830
      %v3833 = vshrl.u32 %v3434, 16
      %v3835 = vrot.slane %v3833, 1
      %v3836 = vshll.u32 %v3434, 16
      %v3838 = vrot.slane %v3836, 2
      %v3839 = vor.u32 %v3835, %v3838
      %v3840 = vsel %vm3715, %v3830, %v3839
      %v3842 = vshrl.u32 %v3435, 16
      %v3844 = vrot.slane %v3842, 1
      %v3845 = vshll.u32 %v3435, 16
      %v3847 = vrot.slane %v3845, 2
      %v3848 = vor.u32 %v3844, %v3847
      %v3849 = vsel %vm3715, %v3839, %v3848
      %v3851 = vshrl.u32 %v3436, 16
      %v3853 = vrot.slane %v3851, 1
      %v3854 = vshll.u32 %v3436, 16
      %v3856 = vrot.slane %v3854, 2
      %v3857 = vor.u32 %v3853, %v3856
      %v3858 = vsel %vm3715, %v3848, %v3857
      %v3860 = vshrl.u32 %v3437, 16
      %v3862 = vrot.slane %v3860, 1
      %v3863 = vshll.u32 %v3437, 16
      %v3865 = vrot.slane %v3863, 2
      %v3866 = vor.u32 %v3862, %v3865
      %v3867 = vsel %vm3715, %v3857, %v3866
      %v3869 = vshrl.u32 %v3438, 16
      %v3871 = vrot.slane %v3869, 1
      %v3872 = vshll.u32 %v3438, 16
      %v3874 = vrot.slane %v3872, 2
      %v3875 = vor.u32 %v3871, %v3874
      %v3876 = vsel %vm3715, %v3866, %v3875
      %v3878 = vshrl.u32 %v3439, 16
      %v3880 = vrot.slane %v3878, 1
      %v3881 = vshll.u32 %v3439, 16
      %v3883 = vrot.slane %v3881, 2
      %v3884 = vor.u32 %v3880, %v3883
      %v3885 = vsel %vm3715, %v3875, %v3884
      %v3887 = vshrl.u32 %v3440, 16
      %v3889 = vrot.slane %v3887, 1
      %v3890 = vshll.u32 %v3440, 16
      %v3892 = vrot.slane %v3890, 2
      %v3893 = vor.u32 %v3889, %v3892
      %v3894 = vsel %vm3715, %v3884, %v3893
      %v3896 = vshrl.u32 %v3441, 16
      %v3898 = vrot.slane %v3896, 1
      %v3899 = vshll.u32 %v3441, 16
      %v3901 = vrot.slane %v3899, 2
      %v3902 = vor.u32 %v3898, %v3901
      %v3903 = vsel %vm3715, %v3893, %v3902
      %v3940 = vunpack.c.l.b16 %v3442
      %v3941 = vunpack.c.l.b16 %v3443
      %v3942 = vunpack.c.l.b16 %v3444
      %v3943 = vunpack.c.l.b16 %v3445
      %v3944 = vunpack.c.l.b16 %v3446
      %v3945 = vunpack.c.l.b16 %v3447
      %v3946 = vunpack.c.l.b16 %v3448
      %v3947 = vunpack.c.l.b16 %v3449
      %v3948 = vunpack.c.l.b16 %v3450
      %v3949 = vunpack.c.l.b16 %v3451
      %v3950 = vunpack.c.l.b16 %v3452
      %v3951 = vunpack.c.l.b16 %v3453
      %v3952 = vunpack.c.l.b16 %v3454
      %v3953 = vunpack.c.l.b16 %v3455
      %v3954 = vunpack.c.l.b16 %v3456
      %v3955 = vunpack.c.l.b16 %v3457
      %v3956 = vpack.c.b16 %v3941, %v3940
      %v3957 = vpack.c.b16 %v3943, %v3942
      %v3958 = vpack.c.b16 %v3945, %v3944
      %v3959 = vpack.c.b16 %v3947, %v3946
      %v3960 = vpack.c.b16 %v3949, %v3948
      %v3961 = vpack.c.b16 %v3951, %v3950
      %v3962 = vpack.c.b16 %v3953, %v3952
      %v3963 = vpack.c.b16 %v3955, %v3954
      %3972 = vmatpush.bf16.msra.mxu0 %v3963
      %3973 = vmatpush.bf16.msra.mxu0 %v3962
      %3974 = vmatpush.bf16.msra.mxu0 %v3961
      %3975 = vmatpush.bf16.msra.mxu0 %v3960
      %3976 = vmatpush.bf16.msra.mxu0 %v3959
      %3977 = vmatpush.bf16.msra.mxu0 %v3958
      %3978 = vmatpush.bf16.msra.mxu0 %v3957
      %3979 = vmatpush.bf16.msra.mxu0 %v3956
      %3980 = vmatmul.bf16.gmra.mxu0 %v3732
      %v3981 = vpop.f32.mrf.mxu0
      %v3982 = vadd.f32 %v3616, %v3981
      %v3983 = vpop.f32.mrf.mxu0
      %v3984 = vadd.f32 %v3618, %v3983
      %3985 = vmatmul.bf16.gmra.mxu0 %v3741
      %v3986 = vpop.f32.mrf.mxu0
      %v3987 = vadd.f32 %v3621, %v3986
      %v3988 = vpop.f32.mrf.mxu0
      %v3989 = vadd.f32 %v3623, %v3988
      %3990 = vmatmul.bf16.gmra.mxu0 %v3750
      %v3991 = vpop.f32.mrf.mxu0
      %v3992 = vadd.f32 %v3626, %v3991
      %v3993 = vpop.f32.mrf.mxu0
      %v3994 = vadd.f32 %v3628, %v3993
      %3995 = vmatmul.bf16.gmra.mxu0 %v3759
      %v3996 = vpop.f32.mrf.mxu0
      %v3997 = vadd.f32 %v3631, %v3996
      %v3998 = vpop.f32.mrf.mxu0
      %v3999 = vadd.f32 %v3633, %v3998
      %4000 = vmatmul.bf16.gmra.mxu0 %v3768
      %v4001 = vpop.f32.mrf.mxu0
      %v4002 = vadd.f32 %v3636, %v4001
      %v4003 = vpop.f32.mrf.mxu0
      %v4004 = vadd.f32 %v3638, %v4003
      %4005 = vmatmul.bf16.gmra.mxu0 %v3777
      %v4006 = vpop.f32.mrf.mxu0
      %v4007 = vadd.f32 %v3641, %v4006
      %v4008 = vpop.f32.mrf.mxu0
      %v4009 = vadd.f32 %v3643, %v4008
      %4010 = vmatmul.bf16.gmra.mxu0 %v3786
      %v4011 = vpop.f32.mrf.mxu0
      %v4012 = vadd.f32 %v3646, %v4011
      %v4013 = vpop.f32.mrf.mxu0
      %v4014 = vadd.f32 %v3648, %v4013
      %4015 = vmatmul.bf16.gmra.mxu0 %v3795
      %v4016 = vpop.f32.mrf.mxu0
      %v4017 = vadd.f32 %v3651, %v4016
      %v4018 = vpop.f32.mrf.mxu0
      %v4019 = vadd.f32 %v3653, %v4018
      %4020 = vmatmul.bf16.gmra.mxu0 %v3804
      %v4021 = vpop.f32.mrf.mxu0
      %v4022 = vadd.f32 %v3656, %v4021
      %v4023 = vpop.f32.mrf.mxu0
      %v4024 = vadd.f32 %v3658, %v4023
      %4025 = vmatmul.bf16.gmra.mxu0 %v3813
      %v4026 = vpop.f32.mrf.mxu0
      %v4027 = vadd.f32 %v3661, %v4026
      %v4028 = vpop.f32.mrf.mxu0
      %v4029 = vadd.f32 %v3663, %v4028
      %4030 = vmatmul.bf16.gmra.mxu0 %v3822
      %v4031 = vpop.f32.mrf.mxu0
      %v4032 = vadd.f32 %v3666, %v4031
      %v4033 = vpop.f32.mrf.mxu0
      %v4034 = vadd.f32 %v3668, %v4033
      %4035 = vmatmul.bf16.gmra.mxu0 %v3831
      %v4036 = vpop.f32.mrf.mxu0
      %v4037 = vadd.f32 %v3671, %v4036
      %v4038 = vpop.f32.mrf.mxu0
      %v4039 = vadd.f32 %v3673, %v4038
      %4040 = vmatmul.bf16.gmra.mxu0 %v3840
      %v4041 = vpop.f32.mrf.mxu0
      %v4042 = vadd.f32 %v3676, %v4041
      %v4043 = vpop.f32.mrf.mxu0
      %v4044 = vadd.f32 %v3678, %v4043
      %4045 = vmatmul.bf16.gmra.mxu0 %v3849
      %v4046 = vpop.f32.mrf.mxu0
      %v4047 = vadd.f32 %v3681, %v4046
      %v4048 = vpop.f32.mrf.mxu0
      %v4049 = vadd.f32 %v3683, %v4048
      %4050 = vmatmul.bf16.gmra.mxu0 %v3858
      %v4051 = vpop.f32.mrf.mxu0
      %v4052 = vadd.f32 %v3686, %v4051
      %v4053 = vpop.f32.mrf.mxu0
      %v4054 = vadd.f32 %v3688, %v4053
      %4055 = vmatmul.bf16.gmra.mxu0 %v3867
      %v4056 = vpop.f32.mrf.mxu0
      %v4057 = vadd.f32 %v3691, %v4056
      %v4058 = vpop.f32.mrf.mxu0
      %v4059 = vadd.f32 %v3693, %v4058
      %4060 = vmatmul.bf16.gmra.mxu0 %v3876
      %v4061 = vpop.f32.mrf.mxu0
      %v4062 = vadd.f32 %v3696, %v4061
      %v4063 = vpop.f32.mrf.mxu0
      %v4064 = vadd.f32 %v3698, %v4063
      %4065 = vmatmul.bf16.gmra.mxu0 %v3885
      %v4066 = vpop.f32.mrf.mxu0
      %v4067 = vadd.f32 %v3701, %v4066
      %v4068 = vpop.f32.mrf.mxu0
      %v4069 = vadd.f32 %v3703, %v4068
      %4070 = vmatmul.bf16.gmra.mxu0 %v3894
      %v4071 = vpop.f32.mrf.mxu0
      %v4072 = vadd.f32 %v3706, %v4071
      %v4073 = vpop.f32.mrf.mxu0
      %v4074 = vadd.f32 %v3708, %v4073
      %4075 = vmatmul.bf16.gmra.mxu0 %v3903
      %v4076 = vpop.f32.mrf.mxu0
      %v4077 = vadd.f32 %v3711, %v4076
      %v4078 = vpop.f32.mrf.mxu0
      %v4079 = vadd.f32 %v3713, %v4078
      %4080 = vdwg.mxu0
      %s4081 = scalar_lea.vmem %s3, 128
      %v4082 = vld [vmem:[%s4081] sm:$0xf]
      %v4083 = vld [vmem:[%s4081 + $0x4] sm:$0xf]
      %v4084 = vld [vmem:[%s4081 + $0x8] sm:$0xf]
      %v4085 = vld [vmem:[%s4081 + $0xc] sm:$0xf]
      %v4086 = vld [vmem:[%s4081 + $0x10] sm:$0xf]
      %v4087 = vld [vmem:[%s4081 + $0x14] sm:$0xf]
      %v4088 = vld [vmem:[%s4081 + $0x18] sm:$0xf]
      %v4089 = vld [vmem:[%s4081 + $0x1c] sm:$0xf]
      %v4090 = vld [vmem:[%s4081 + $0x20] sm:$0xf]
      %v4091 = vld [vmem:[%s4081 + $0x24] sm:$0xf]
      %v4092 = vld [vmem:[%s4081 + $0x28] sm:$0xf]
      %v4093 = vld [vmem:[%s4081 + $0x2c] sm:$0xf]
      %v4094 = vld [vmem:[%s4081 + $0x30] sm:$0xf]
      %v4095 = vld [vmem:[%s4081 + $0x34] sm:$0xf]
      %v4096 = vld [vmem:[%s4081 + $0x38] sm:$0xf]
      %v4097 = vld [vmem:[%s4081 + $0x3c] sm:$0xf]
      %vm4098 = vsmask.f32 5376
      %v4099 = vrot.slane %v3717, 2
      %v4100 = vrot.slane %v3720, 3
      %v4101 = vor.u32 %v4099, %v4100
      %v4102 = vrot.slane %v3725, 2
      %v4103 = vrot.slane %v3728, 3
      %v4104 = vor.u32 %v4102, %v4103
      %v4105 = vsel %vm4098, %v4101, %v4104
      %v4106 = vrot.slane %v3734, 2
      %v4107 = vrot.slane %v3737, 3
      %v4108 = vor.u32 %v4106, %v4107
      %v4109 = vsel %vm4098, %v4104, %v4108
      %v4110 = vrot.slane %v3743, 2
      %v4111 = vrot.slane %v3746, 3
      %v4112 = vor.u32 %v4110, %v4111
      %v4113 = vsel %vm4098, %v4108, %v4112
      %v4114 = vrot.slane %v3752, 2
      %v4115 = vrot.slane %v3755, 3
      %v4116 = vor.u32 %v4114, %v4115
      %v4117 = vsel %vm4098, %v4112, %v4116
      %v4118 = vrot.slane %v3761, 2
      %v4119 = vrot.slane %v3764, 3
      %v4120 = vor.u32 %v4118, %v4119
      %v4121 = vsel %vm4098, %v4116, %v4120
      %v4122 = vrot.slane %v3770, 2
      %v4123 = vrot.slane %v3773, 3
      %v4124 = vor.u32 %v4122, %v4123
      %v4125 = vsel %vm4098, %v4120, %v4124
      %v4126 = vrot.slane %v3779, 2
      %v4127 = vrot.slane %v3782, 3
      %v4128 = vor.u32 %v4126, %v4127
      %v4129 = vsel %vm4098, %v4124, %v4128
      %v4130 = vrot.slane %v3788, 2
      %v4131 = vrot.slane %v3791, 3
      %v4132 = vor.u32 %v4130, %v4131
      %v4133 = vsel %vm4098, %v4128, %v4132
      %v4134 = vrot.slane %v3797, 2
      %v4135 = vrot.slane %v3800, 3
      %v4136 = vor.u32 %v4134, %v4135
      %v4137 = vsel %vm4098, %v4132, %v4136
      %v4138 = vrot.slane %v3806, 2
      %v4139 = vrot.slane %v3809, 3
      %v4140 = vor.u32 %v4138, %v4139
      %v4141 = vsel %vm4098, %v4136, %v4140
      %v4142 = vrot.slane %v3815, 2
      %v4143 = vrot.slane %v3818, 3
      %v4144 = vor.u32 %v4142, %v4143
      %v4145 = vsel %vm4098, %v4140, %v4144
      %v4146 = vrot.slane %v3824, 2
      %v4147 = vrot.slane %v3827, 3
      %v4148 = vor.u32 %v4146, %v4147
      %v4149 = vsel %vm4098, %v4144, %v4148
      %v4150 = vrot.slane %v3833, 2
      %v4151 = vrot.slane %v3836, 3
      %v4152 = vor.u32 %v4150, %v4151
      %v4153 = vsel %vm4098, %v4148, %v4152
      %v4154 = vrot.slane %v3842, 2
      %v4155 = vrot.slane %v3845, 3
      %v4156 = vor.u32 %v4154, %v4155
      %v4157 = vsel %vm4098, %v4152, %v4156
      %v4158 = vrot.slane %v3851, 2
      %v4159 = vrot.slane %v3854, 3
      %v4160 = vor.u32 %v4158, %v4159
      %v4161 = vsel %vm4098, %v4156, %v4160
      %v4162 = vrot.slane %v3860, 2
      %v4163 = vrot.slane %v3863, 3
      %v4164 = vor.u32 %v4162, %v4163
      %v4165 = vsel %vm4098, %v4160, %v4164
      %v4166 = vrot.slane %v3869, 2
      %v4167 = vrot.slane %v3872, 3
      %v4168 = vor.u32 %v4166, %v4167
      %v4169 = vsel %vm4098, %v4164, %v4168
      %v4170 = vrot.slane %v3878, 2
      %v4171 = vrot.slane %v3881, 3
      %v4172 = vor.u32 %v4170, %v4171
      %v4173 = vsel %vm4098, %v4168, %v4172
      %v4174 = vrot.slane %v3887, 2
      %v4175 = vrot.slane %v3890, 3
      %v4176 = vor.u32 %v4174, %v4175
      %v4177 = vsel %vm4098, %v4172, %v4176
      %v4178 = vrot.slane %v3896, 2
      %v4179 = vrot.slane %v3899, 3
      %v4180 = vor.u32 %v4178, %v4179
      %v4181 = vsel %vm4098, %v4176, %v4180
      %v4218 = vunpack.c.l.b16 %v4082
      %v4219 = vunpack.c.l.b16 %v4083
      %v4220 = vunpack.c.l.b16 %v4084
      %v4221 = vunpack.c.l.b16 %v4085
      %v4222 = vunpack.c.l.b16 %v4086
      %v4223 = vunpack.c.l.b16 %v4087
      %v4224 = vunpack.c.l.b16 %v4088
      %v4225 = vunpack.c.l.b16 %v4089
      %v4226 = vunpack.c.l.b16 %v4090
      %v4227 = vunpack.c.l.b16 %v4091
      %v4228 = vunpack.c.l.b16 %v4092
      %v4229 = vunpack.c.l.b16 %v4093
      %v4230 = vunpack.c.l.b16 %v4094
      %v4231 = vunpack.c.l.b16 %v4095
      %v4232 = vunpack.c.l.b16 %v4096
      %v4233 = vunpack.c.l.b16 %v4097
      %v4234 = vpack.c.b16 %v4219, %v4218
      %v4235 = vpack.c.b16 %v4221, %v4220
      %v4236 = vpack.c.b16 %v4223, %v4222
      %v4237 = vpack.c.b16 %v4225, %v4224
      %v4238 = vpack.c.b16 %v4227, %v4226
      %v4239 = vpack.c.b16 %v4229, %v4228
      %v4240 = vpack.c.b16 %v4231, %v4230
      %v4241 = vpack.c.b16 %v4233, %v4232
      %4250 = vmatpush.bf16.msra.mxu0 %v4241
      %4251 = vmatpush.bf16.msra.mxu0 %v4240
      %4252 = vmatpush.bf16.msra.mxu0 %v4239
      %4253 = vmatpush.bf16.msra.mxu0 %v4238
      %4254 = vmatpush.bf16.msra.mxu0 %v4237
      %4255 = vmatpush.bf16.msra.mxu0 %v4236
      %4256 = vmatpush.bf16.msra.mxu0 %v4235
      %4257 = vmatpush.bf16.msra.mxu0 %v4234
      %4258 = vmatmul.bf16.gmra.mxu0 %v4105
      %v4259 = vpop.f32.mrf.mxu0
      %v4260 = vadd.f32 0.0, %v4259
      %v4261 = vpop.f32.mrf.mxu0
      %v4262 = vadd.f32 0.0, %v4261
      %4263 = vmatmul.bf16.gmra.mxu0 %v4109
      %v4264 = vpop.f32.mrf.mxu0
      %v4265 = vadd.f32 0.0, %v4264
      %v4266 = vpop.f32.mrf.mxu0
      %v4267 = vadd.f32 0.0, %v4266
      %4268 = vmatmul.bf16.gmra.mxu0 %v4113
      %v4269 = vpop.f32.mrf.mxu0
      %v4270 = vadd.f32 0.0, %v4269
      %v4271 = vpop.f32.mrf.mxu0
      %v4272 = vadd.f32 0.0, %v4271
      %4273 = vmatmul.bf16.gmra.mxu0 %v4117
      %v4274 = vpop.f32.mrf.mxu0
      %v4275 = vadd.f32 0.0, %v4274
      %v4276 = vpop.f32.mrf.mxu0
      %v4277 = vadd.f32 0.0, %v4276
      %4278 = vmatmul.bf16.gmra.mxu0 %v4121
      %v4279 = vpop.f32.mrf.mxu0
      %v4280 = vadd.f32 0.0, %v4279
      %v4281 = vpop.f32.mrf.mxu0
      %v4282 = vadd.f32 0.0, %v4281
      %4283 = vmatmul.bf16.gmra.mxu0 %v4125
      %v4284 = vpop.f32.mrf.mxu0
      %v4285 = vadd.f32 0.0, %v4284
      %v4286 = vpop.f32.mrf.mxu0
      %v4287 = vadd.f32 0.0, %v4286
      %4288 = vmatmul.bf16.gmra.mxu0 %v4129
      %v4289 = vpop.f32.mrf.mxu0
      %v4290 = vadd.f32 0.0, %v4289
      %v4291 = vpop.f32.mrf.mxu0
      %v4292 = vadd.f32 0.0, %v4291
      %4293 = vmatmul.bf16.gmra.mxu0 %v4133
      %v4294 = vpop.f32.mrf.mxu0
      %v4295 = vadd.f32 0.0, %v4294
      %v4296 = vpop.f32.mrf.mxu0
      %v4297 = vadd.f32 0.0, %v4296
      %4298 = vmatmul.bf16.gmra.mxu0 %v4137
      %v4299 = vpop.f32.mrf.mxu0
      %v4300 = vadd.f32 0.0, %v4299
      %v4301 = vpop.f32.mrf.mxu0
      %v4302 = vadd.f32 0.0, %v4301
      %4303 = vmatmul.bf16.gmra.mxu0 %v4141
      %v4304 = vpop.f32.mrf.mxu0
      %v4305 = vadd.f32 0.0, %v4304
      %v4306 = vpop.f32.mrf.mxu0
      %v4307 = vadd.f32 0.0, %v4306
      %4308 = vmatmul.bf16.gmra.mxu0 %v4145
      %v4309 = vpop.f32.mrf.mxu0
      %v4310 = vadd.f32 0.0, %v4309
      %v4311 = vpop.f32.mrf.mxu0
      %v4312 = vadd.f32 0.0, %v4311
      %4313 = vmatmul.bf16.gmra.mxu0 %v4149
      %v4314 = vpop.f32.mrf.mxu0
      %v4315 = vadd.f32 0.0, %v4314
      %v4316 = vpop.f32.mrf.mxu0
      %v4317 = vadd.f32 0.0, %v4316
      %4318 = vmatmul.bf16.gmra.mxu0 %v4153
      %v4319 = vpop.f32.mrf.mxu0
      %v4320 = vadd.f32 0.0, %v4319
      %v4321 = vpop.f32.mrf.mxu0
      %v4322 = vadd.f32 0.0, %v4321
      %4323 = vmatmul.bf16.gmra.mxu0 %v4157
      %v4324 = vpop.f32.mrf.mxu0
      %v4325 = vadd.f32 0.0, %v4324
      %v4326 = vpop.f32.mrf.mxu0
      %v4327 = vadd.f32 0.0, %v4326
      %4328 = vmatmul.bf16.gmra.mxu0 %v4161
      %v4329 = vpop.f32.mrf.mxu0
      %v4330 = vadd.f32 0.0, %v4329
      %v4331 = vpop.f32.mrf.mxu0
      %v4332 = vadd.f32 0.0, %v4331
      %4333 = vmatmul.bf16.gmra.mxu0 %v4165
      %v4334 = vpop.f32.mrf.mxu0
      %v4335 = vadd.f32 0.0, %v4334
      %v4336 = vpop.f32.mrf.mxu0
      %v4337 = vadd.f32 0.0, %v4336
      %4338 = vmatmul.bf16.gmra.mxu0 %v4169
      %v4339 = vpop.f32.mrf.mxu0
      %v4340 = vadd.f32 0.0, %v4339
      %v4341 = vpop.f32.mrf.mxu0
      %v4342 = vadd.f32 0.0, %v4341
      %4343 = vmatmul.bf16.gmra.mxu0 %v4173
      %v4344 = vpop.f32.mrf.mxu0
      %v4345 = vadd.f32 0.0, %v4344
      %v4346 = vpop.f32.mrf.mxu0
      %v4347 = vadd.f32 0.0, %v4346
      %4348 = vmatmul.bf16.gmra.mxu0 %v4177
      %v4349 = vpop.f32.mrf.mxu0
      %v4350 = vadd.f32 0.0, %v4349
      %v4351 = vpop.f32.mrf.mxu0
      %v4352 = vadd.f32 0.0, %v4351
      %4353 = vmatmul.bf16.gmra.mxu0 %v4181
      %v4354 = vpop.f32.mrf.mxu0
      %v4355 = vadd.f32 0.0, %v4354
      %v4356 = vpop.f32.mrf.mxu0
      %v4357 = vadd.f32 0.0, %v4356
      %4358 = vdwg.mxu0
      %v4359 = vadd.f32 %v3982, %v4260
      %v4360 = vadd.f32 %v3984, %v4262
      %v4361 = vadd.f32 %v3987, %v4265
      %v4362 = vadd.f32 %v3989, %v4267
      %v4363 = vadd.f32 %v3992, %v4270
      %v4364 = vadd.f32 %v3994, %v4272
      %v4365 = vadd.f32 %v3997, %v4275
      %v4366 = vadd.f32 %v3999, %v4277
      %v4367 = vadd.f32 %v4002, %v4280
      %v4368 = vadd.f32 %v4004, %v4282
      %v4369 = vadd.f32 %v4007, %v4285
      %v4370 = vadd.f32 %v4009, %v4287
      %v4371 = vadd.f32 %v4012, %v4290
      %v4372 = vadd.f32 %v4014, %v4292
      %v4373 = vadd.f32 %v4017, %v4295
      %v4374 = vadd.f32 %v4019, %v4297
      %v4375 = vadd.f32 %v4022, %v4300
      %v4376 = vadd.f32 %v4024, %v4302
      %v4377 = vadd.f32 %v4027, %v4305
      %v4378 = vadd.f32 %v4029, %v4307
      %v4379 = vadd.f32 %v4032, %v4310
      %v4380 = vadd.f32 %v4034, %v4312
      %v4381 = vadd.f32 %v4037, %v4315
      %v4382 = vadd.f32 %v4039, %v4317
      %v4383 = vadd.f32 %v4042, %v4320
      %v4384 = vadd.f32 %v4044, %v4322
      %v4385 = vadd.f32 %v4047, %v4325
      %v4386 = vadd.f32 %v4049, %v4327
      %v4387 = vadd.f32 %v4052, %v4330
      %v4388 = vadd.f32 %v4054, %v4332
      %v4389 = vadd.f32 %v4057, %v4335
      %v4390 = vadd.f32 %v4059, %v4337
      %v4391 = vadd.f32 %v4062, %v4340
      %v4392 = vadd.f32 %v4064, %v4342
      %v4393 = vadd.f32 %v4067, %v4345
      %v4394 = vadd.f32 %v4069, %v4347
      %v4395 = vadd.f32 %v4072, %v4350
      %v4396 = vadd.f32 %v4074, %v4352
      %v4397 = vadd.f32 %v4077, %v4355
      %v4398 = vadd.f32 %v4079, %v4357
      %v4399 = vpack.c.bf16 %v3416, %v3415
      %v4400 = vpack.c.bf16 %v3417, %v3417
      %s4401 = scalar_lea.vmem %s3, 192
      %v4402 = vld [vmem:[%s4401] sm:$0xf]
      %v4403 = vld [vmem:[%s4401 + $0x4] sm:$0xf]
      %v4404 = vld [vmem:[%s4401 + $0x8] sm:$0xf]
      %v4405 = vld [vmem:[%s4401 + $0xc] sm:$0xf]
      %v4406 = vld [vmem:[%s4401 + $0x10] sm:$0xf]
      %v4407 = vld [vmem:[%s4401 + $0x14] sm:$0xf]
      %v4408 = vld [vmem:[%s4401 + $0x18] sm:$0xf]
      %v4409 = vld [vmem:[%s4401 + $0x1c] sm:$0xf]
      %v4410 = vld [vmem:[%s4401 + $0x20] sm:$0xf]
      %v4411 = vld [vmem:[%s4401 + $0x24] sm:$0xf]
      %v4412 = vld [vmem:[%s4401 + $0x28] sm:$0xf]
      %v4413 = vld [vmem:[%s4401 + $0x2c] sm:$0xf]
      %v4414 = vld [vmem:[%s4401 + $0x30] sm:$0xf]
      %v4415 = vld [vmem:[%s4401 + $0x34] sm:$0xf]
      %v4416 = vld [vmem:[%s4401 + $0x38] sm:$0xf]
      %v4417 = vld [vmem:[%s4401 + $0x3c] sm:$0xf]
      %vm4418 = vsmask.f32 4352
      %v4419 = vrot.slane %v3725, 3
      %v4420 = vrot.slane %v3728, 4
      %v4421 = vor.u32 %v4419, %v4420
      %v4422 = vrot.slane %v3734, 3
      %v4423 = vrot.slane %v3737, 4
      %v4424 = vor.u32 %v4422, %v4423
      %v4425 = vsel %vm4418, %v4421, %v4424
      %v4426 = vrot.slane %v3743, 3
      %v4427 = vrot.slane %v3746, 4
      %v4428 = vor.u32 %v4426, %v4427
      %v4429 = vsel %vm4418, %v4424, %v4428
      %v4430 = vrot.slane %v3752, 3
      %v4431 = vrot.slane %v3755, 4
      %v4432 = vor.u32 %v4430, %v4431
      %v4433 = vsel %vm4418, %v4428, %v4432
      %v4434 = vrot.slane %v3761, 3
      %v4435 = vrot.slane %v3764, 4
      %v4436 = vor.u32 %v4434, %v4435
      %v4437 = vsel %vm4418, %v4432, %v4436
      %v4438 = vrot.slane %v3770, 3
      %v4439 = vrot.slane %v3773, 4
      %v4440 = vor.u32 %v4438, %v4439
      %v4441 = vsel %vm4418, %v4436, %v4440
      %v4442 = vrot.slane %v3779, 3
      %v4443 = vrot.slane %v3782, 4
      %v4444 = vor.u32 %v4442, %v4443
      %v4445 = vsel %vm4418, %v4440, %v4444
      %v4446 = vrot.slane %v3788, 3
      %v4447 = vrot.slane %v3791, 4
      %v4448 = vor.u32 %v4446, %v4447
      %v4449 = vsel %vm4418, %v4444, %v4448
      %v4450 = vrot.slane %v3797, 3
      %v4451 = vrot.slane %v3800, 4
      %v4452 = vor.u32 %v4450, %v4451
      %v4453 = vsel %vm4418, %v4448, %v4452
      %v4454 = vrot.slane %v3806, 3
      %v4455 = vrot.slane %v3809, 4
      %v4456 = vor.u32 %v4454, %v4455
      %v4457 = vsel %vm4418, %v4452, %v4456
      %v4458 = vrot.slane %v3815, 3
      %v4459 = vrot.slane %v3818, 4
      %v4460 = vor.u32 %v4458, %v4459
      %v4461 = vsel %vm4418, %v4456, %v4460
      %v4462 = vrot.slane %v3824, 3
      %v4463 = vrot.slane %v3827, 4
      %v4464 = vor.u32 %v4462, %v4463
      %v4465 = vsel %vm4418, %v4460, %v4464
      %v4466 = vrot.slane %v3833, 3
      %v4467 = vrot.slane %v3836, 4
      %v4468 = vor.u32 %v4466, %v4467
      %v4469 = vsel %vm4418, %v4464, %v4468
      %v4470 = vrot.slane %v3842, 3
      %v4471 = vrot.slane %v3845, 4
      %v4472 = vor.u32 %v4470, %v4471
      %v4473 = vsel %vm4418, %v4468, %v4472
      %v4474 = vrot.slane %v3851, 3
      %v4475 = vrot.slane %v3854, 4
      %v4476 = vor.u32 %v4474, %v4475
      %v4477 = vsel %vm4418, %v4472, %v4476
      %v4478 = vrot.slane %v3860, 3
      %v4479 = vrot.slane %v3863, 4
      %v4480 = vor.u32 %v4478, %v4479
      %v4481 = vsel %vm4418, %v4476, %v4480
      %v4482 = vrot.slane %v3869, 3
      %v4483 = vrot.slane %v3872, 4
      %v4484 = vor.u32 %v4482, %v4483
      %v4485 = vsel %vm4418, %v4480, %v4484
      %v4486 = vrot.slane %v3878, 3
      %v4487 = vrot.slane %v3881, 4
      %v4488 = vor.u32 %v4486, %v4487
      %v4489 = vsel %vm4418, %v4484, %v4488
      %v4490 = vrot.slane %v3887, 3
      %v4491 = vrot.slane %v3890, 4
      %v4492 = vor.u32 %v4490, %v4491
      %v4493 = vsel %vm4418, %v4488, %v4492
      %v4495 = vshrl.u32 %v4399, 16
      %v4497 = vrot.slane %v4495, 3
      %v4498 = vshll.u32 %v4399, 16
      %v4500 = vrot.slane %v4498, 4
      %v4501 = vor.u32 %v4497, %v4500
      %v4502 = vsel %vm4418, %v4492, %v4501
      %v4504 = vshrl.u32 %v4400, 16
      %v4506 = vrot.slane %v4504, 3
      %v4507 = vshll.u32 %v4400, 16
      %v4509 = vrot.slane %v4507, 4
      %v4510 = vor.u32 %v4506, %v4509
      %v4511 = vsel %vm4418, %v4501, %v4510
      %v4548 = vunpack.c.l.b16 %v4402
      %v4549 = vunpack.c.l.b16 %v4403
      %v4550 = vunpack.c.l.b16 %v4404
      %v4551 = vunpack.c.l.b16 %v4405
      %v4552 = vunpack.c.l.b16 %v4406
      %v4553 = vunpack.c.l.b16 %v4407
      %v4554 = vunpack.c.l.b16 %v4408
      %v4555 = vunpack.c.l.b16 %v4409
      %v4556 = vunpack.c.l.b16 %v4410
      %v4557 = vunpack.c.l.b16 %v4411
      %v4558 = vunpack.c.l.b16 %v4412
      %v4559 = vunpack.c.l.b16 %v4413
      %v4560 = vunpack.c.l.b16 %v4414
      %v4561 = vunpack.c.l.b16 %v4415
      %v4562 = vunpack.c.l.b16 %v4416
      %v4563 = vunpack.c.l.b16 %v4417
      %v4564 = vpack.c.b16 %v4549, %v4548
      %v4565 = vpack.c.b16 %v4551, %v4550
      %v4566 = vpack.c.b16 %v4553, %v4552
      %v4567 = vpack.c.b16 %v4555, %v4554
      %v4568 = vpack.c.b16 %v4557, %v4556
      %v4569 = vpack.c.b16 %v4559, %v4558
      %v4570 = vpack.c.b16 %v4561, %v4560
      %v4571 = vpack.c.b16 %v4563, %v4562
      %4580 = vmatpush.bf16.msra.mxu0 %v4571
      %4581 = vmatpush.bf16.msra.mxu0 %v4570
      %4582 = vmatpush.bf16.msra.mxu0 %v4569
      %4583 = vmatpush.bf16.msra.mxu0 %v4568
      %4584 = vmatpush.bf16.msra.mxu0 %v4567
      %4585 = vmatpush.bf16.msra.mxu0 %v4566
      %4586 = vmatpush.bf16.msra.mxu0 %v4565
      %4587 = vmatpush.bf16.msra.mxu0 %v4564
      %4588 = vmatmul.bf16.gmra.mxu0 %v4425
      %v4589 = vpop.f32.mrf.mxu0
      %v4590 = vadd.f32 0.0, %v4589
      %v4591 = vpop.f32.mrf.mxu0
      %v4592 = vadd.f32 0.0, %v4591
      %4593 = vmatmul.bf16.gmra.mxu0 %v4429
      %v4594 = vpop.f32.mrf.mxu0
      %v4595 = vadd.f32 0.0, %v4594
      %v4596 = vpop.f32.mrf.mxu0
      %v4597 = vadd.f32 0.0, %v4596
      %4598 = vmatmul.bf16.gmra.mxu0 %v4433
      %v4599 = vpop.f32.mrf.mxu0
      %v4600 = vadd.f32 0.0, %v4599
      %v4601 = vpop.f32.mrf.mxu0
      %v4602 = vadd.f32 0.0, %v4601
      %4603 = vmatmul.bf16.gmra.mxu0 %v4437
      %v4604 = vpop.f32.mrf.mxu0
      %v4605 = vadd.f32 0.0, %v4604
      %v4606 = vpop.f32.mrf.mxu0
      %v4607 = vadd.f32 0.0, %v4606
      %4608 = vmatmul.bf16.gmra.mxu0 %v4441
      %v4609 = vpop.f32.mrf.mxu0
      %v4610 = vadd.f32 0.0, %v4609
      %v4611 = vpop.f32.mrf.mxu0
      %v4612 = vadd.f32 0.0, %v4611
      %4613 = vmatmul.bf16.gmra.mxu0 %v4445
      %v4614 = vpop.f32.mrf.mxu0
      %v4615 = vadd.f32 0.0, %v4614
      %v4616 = vpop.f32.mrf.mxu0
      %v4617 = vadd.f32 0.0, %v4616
      %4618 = vmatmul.bf16.gmra.mxu0 %v4449
      %v4619 = vpop.f32.mrf.mxu0
      %v4620 = vadd.f32 0.0, %v4619
      %v4621 = vpop.f32.mrf.mxu0
      %v4622 = vadd.f32 0.0, %v4621
      %4623 = vmatmul.bf16.gmra.mxu0 %v4453
      %v4624 = vpop.f32.mrf.mxu0
      %v4625 = vadd.f32 0.0, %v4624
      %v4626 = vpop.f32.mrf.mxu0
      %v4627 = vadd.f32 0.0, %v4626
      %4628 = vmatmul.bf16.gmra.mxu0 %v4457
      %v4629 = vpop.f32.mrf.mxu0
      %v4630 = vadd.f32 0.0, %v4629
      %v4631 = vpop.f32.mrf.mxu0
      %v4632 = vadd.f32 0.0, %v4631
      %4633 = vmatmul.bf16.gmra.mxu0 %v4461
      %v4634 = vpop.f32.mrf.mxu0
      %v4635 = vadd.f32 0.0, %v4634
      %v4636 = vpop.f32.mrf.mxu0
      %v4637 = vadd.f32 0.0, %v4636
      %4638 = vmatmul.bf16.gmra.mxu0 %v4465
      %v4639 = vpop.f32.mrf.mxu0
      %v4640 = vadd.f32 0.0, %v4639
      %v4641 = vpop.f32.mrf.mxu0
      %v4642 = vadd.f32 0.0, %v4641
      %4643 = vmatmul.bf16.gmra.mxu0 %v4469
      %v4644 = vpop.f32.mrf.mxu0
      %v4645 = vadd.f32 0.0, %v4644
      %v4646 = vpop.f32.mrf.mxu0
      %v4647 = vadd.f32 0.0, %v4646
      %4648 = vmatmul.bf16.gmra.mxu0 %v4473
      %v4649 = vpop.f32.mrf.mxu0
      %v4650 = vadd.f32 0.0, %v4649
      %v4651 = vpop.f32.mrf.mxu0
      %v4652 = vadd.f32 0.0, %v4651
      %4653 = vmatmul.bf16.gmra.mxu0 %v4477
      %v4654 = vpop.f32.mrf.mxu0
      %v4655 = vadd.f32 0.0, %v4654
      %v4656 = vpop.f32.mrf.mxu0
      %v4657 = vadd.f32 0.0, %v4656
      %4658 = vmatmul.bf16.gmra.mxu0 %v4481
      %v4659 = vpop.f32.mrf.mxu0
      %v4660 = vadd.f32 0.0, %v4659
      %v4661 = vpop.f32.mrf.mxu0
      %v4662 = vadd.f32 0.0, %v4661
      %4663 = vmatmul.bf16.gmra.mxu0 %v4485
      %v4664 = vpop.f32.mrf.mxu0
      %v4665 = vadd.f32 0.0, %v4664
      %v4666 = vpop.f32.mrf.mxu0
      %v4667 = vadd.f32 0.0, %v4666
      %4668 = vmatmul.bf16.gmra.mxu0 %v4489
      %v4669 = vpop.f32.mrf.mxu0
      %v4670 = vadd.f32 0.0, %v4669
      %v4671 = vpop.f32.mrf.mxu0
      %v4672 = vadd.f32 0.0, %v4671
      %4673 = vmatmul.bf16.gmra.mxu0 %v4493
      %v4674 = vpop.f32.mrf.mxu0
      %v4675 = vadd.f32 0.0, %v4674
      %v4676 = vpop.f32.mrf.mxu0
      %v4677 = vadd.f32 0.0, %v4676
      %4678 = vmatmul.bf16.gmra.mxu0 %v4502
      %v4679 = vpop.f32.mrf.mxu0
      %v4680 = vadd.f32 0.0, %v4679
      %v4681 = vpop.f32.mrf.mxu0
      %v4682 = vadd.f32 0.0, %v4681
      %4683 = vmatmul.bf16.gmra.mxu0 %v4511
      %v4684 = vpop.f32.mrf.mxu0
      %v4685 = vadd.f32 0.0, %v4684
      %v4686 = vpop.f32.mrf.mxu0
      %v4687 = vadd.f32 0.0, %v4686
      %4688 = vdwg.mxu0
      %v4689 = vadd.f32 %v4359, %v4590
      %v4690 = vadd.f32 %v4360, %v4592
      %v4691 = vadd.f32 %v4361, %v4595
      %v4692 = vadd.f32 %v4362, %v4597
      %v4693 = vadd.f32 %v4363, %v4600
      %v4694 = vadd.f32 %v4364, %v4602
      %v4695 = vadd.f32 %v4365, %v4605
      %v4696 = vadd.f32 %v4366, %v4607
      %v4697 = vadd.f32 %v4367, %v4610
      %v4698 = vadd.f32 %v4368, %v4612
      %v4699 = vadd.f32 %v4369, %v4615
      %v4700 = vadd.f32 %v4370, %v4617
      %v4701 = vadd.f32 %v4371, %v4620
      %v4702 = vadd.f32 %v4372, %v4622
      %v4703 = vadd.f32 %v4373, %v4625
      %v4704 = vadd.f32 %v4374, %v4627
      %v4705 = vadd.f32 %v4375, %v4630
      %v4706 = vadd.f32 %v4376, %v4632
      %v4707 = vadd.f32 %v4377, %v4635
      %v4708 = vadd.f32 %v4378, %v4637
      %v4709 = vadd.f32 %v4379, %v4640
      %v4710 = vadd.f32 %v4380, %v4642
      %v4711 = vadd.f32 %v4381, %v4645
      %v4712 = vadd.f32 %v4382, %v4647
      %v4713 = vadd.f32 %v4383, %v4650
      %v4714 = vadd.f32 %v4384, %v4652
      %v4715 = vadd.f32 %v4385, %v4655
      %v4716 = vadd.f32 %v4386, %v4657
      %v4717 = vadd.f32 %v4387, %v4660
      %v4718 = vadd.f32 %v4388, %v4662
      %v4719 = vadd.f32 %v4389, %v4665
      %v4720 = vadd.f32 %v4390, %v4667
      %v4721 = vadd.f32 %v4391, %v4670
      %v4722 = vadd.f32 %v4392, %v4672
      %v4723 = vadd.f32 %v4393, %v4675
      %v4724 = vadd.f32 %v4394, %v4677
      %v4725 = vadd.f32 %v4395, %v4680
      %v4726 = vadd.f32 %v4396, %v4682
      %v4727 = vadd.f32 %v4397, %v4685
      %v4728 = vadd.f32 %v4398, %v4687
      %v4729 = vpack.c.bf16 %v3379, %v3378
      %v4730 = vpack.c.bf16 %v3381, %v3380
      %v4731 = vpack.c.bf16 %v3383, %v3382
      %v4732 = vpack.c.bf16 %v3385, %v3384
      %v4733 = vpack.c.bf16 %v3387, %v3386
      %v4734 = vpack.c.bf16 %v3389, %v3388
      %v4735 = vpack.c.bf16 %v3391, %v3390
      %v4736 = vpack.c.bf16 %v3393, %v3392
      %v4737 = vpack.c.bf16 %v3395, %v3394
      %v4738 = vpack.c.bf16 %v3397, %v3396
      %v4739 = vpack.c.bf16 %v3399, %v3398
      %v4740 = vpack.c.bf16 %v3401, %v3400
      %v4741 = vpack.c.bf16 %v3403, %v3402
      %v4742 = vpack.c.bf16 %v3405, %v3404
      %v4743 = vpack.c.bf16 %v3407, %v3406
      %v4744 = vpack.c.bf16 %v3409, %v3408
      %v4745 = vpack.c.bf16 %v3411, %v3410
      %v4746 = vpack.c.bf16 %v3413, %v3412
      %v4747 = vpack.c.bf16 %v3415, %v3414
      %v4748 = vpack.c.bf16 %v3417, %v3416
      %s4749 = scalar_lea.vmem %s3, 256
      %v4750 = vld [vmem:[%s4749] sm:$0xf]
      %v4751 = vld [vmem:[%s4749 + $0x4] sm:$0xf]
      %v4752 = vld [vmem:[%s4749 + $0x8] sm:$0xf]
      %v4753 = vld [vmem:[%s4749 + $0xc] sm:$0xf]
      %v4754 = vld [vmem:[%s4749 + $0x10] sm:$0xf]
      %v4755 = vld [vmem:[%s4749 + $0x14] sm:$0xf]
      %v4756 = vld [vmem:[%s4749 + $0x18] sm:$0xf]
      %v4757 = vld [vmem:[%s4749 + $0x1c] sm:$0xf]
      %v4758 = vld [vmem:[%s4749 + $0x20] sm:$0xf]
      %v4759 = vld [vmem:[%s4749 + $0x24] sm:$0xf]
      %v4760 = vld [vmem:[%s4749 + $0x28] sm:$0xf]
      %v4761 = vld [vmem:[%s4749 + $0x2c] sm:$0xf]
      %v4762 = vld [vmem:[%s4749 + $0x30] sm:$0xf]
      %v4763 = vld [vmem:[%s4749 + $0x34] sm:$0xf]
      %v4764 = vld [vmem:[%s4749 + $0x38] sm:$0xf]
      %v4765 = vld [vmem:[%s4749 + $0x3c] sm:$0xf]
      %v4782 = vunpack.c.l.b16 %v4750
      %v4783 = vunpack.c.l.b16 %v4751
      %v4784 = vunpack.c.l.b16 %v4752
      %v4785 = vunpack.c.l.b16 %v4753
      %v4786 = vunpack.c.l.b16 %v4754
      %v4787 = vunpack.c.l.b16 %v4755
      %v4788 = vunpack.c.l.b16 %v4756
      %v4789 = vunpack.c.l.b16 %v4757
      %v4790 = vunpack.c.l.b16 %v4758
      %v4791 = vunpack.c.l.b16 %v4759
      %v4792 = vunpack.c.l.b16 %v4760
      %v4793 = vunpack.c.l.b16 %v4761
      %v4794 = vunpack.c.l.b16 %v4762
      %v4795 = vunpack.c.l.b16 %v4763
      %v4796 = vunpack.c.l.b16 %v4764
      %v4797 = vunpack.c.l.b16 %v4765
      %v4798 = vpack.c.b16 %v4783, %v4782
      %v4799 = vpack.c.b16 %v4785, %v4784
      %v4800 = vpack.c.b16 %v4787, %v4786
      %v4801 = vpack.c.b16 %v4789, %v4788
      %v4802 = vpack.c.b16 %v4791, %v4790
      %v4803 = vpack.c.b16 %v4793, %v4792
      %v4804 = vpack.c.b16 %v4795, %v4794
      %v4805 = vpack.c.b16 %v4797, %v4796
      %4814 = vmatpush.bf16.msra.mxu0 %v4805
      %4815 = vmatpush.bf16.msra.mxu0 %v4804
      %4816 = vmatpush.bf16.msra.mxu0 %v4803
      %4817 = vmatpush.bf16.msra.mxu0 %v4802
      %4818 = vmatpush.bf16.msra.mxu0 %v4801
      %4819 = vmatpush.bf16.msra.mxu0 %v4800
      %4820 = vmatpush.bf16.msra.mxu0 %v4799
      %4821 = vmatpush.bf16.msra.mxu0 %v4798
      %4822 = vmatmul.bf16.gmra.mxu0 %v4729
      %v4823 = vpop.f32.mrf.mxu0
      %v4824 = vadd.f32 0.0, %v4823
      %v4825 = vpop.f32.mrf.mxu0
      %v4826 = vadd.f32 0.0, %v4825
      %4827 = vmatmul.bf16.gmra.mxu0 %v4730
      %v4828 = vpop.f32.mrf.mxu0
      %v4829 = vadd.f32 0.0, %v4828
      %v4830 = vpop.f32.mrf.mxu0
      %v4831 = vadd.f32 0.0, %v4830
      %4832 = vmatmul.bf16.gmra.mxu0 %v4731
      %v4833 = vpop.f32.mrf.mxu0
      %v4834 = vadd.f32 0.0, %v4833
      %v4835 = vpop.f32.mrf.mxu0
      %v4836 = vadd.f32 0.0, %v4835
      %4837 = vmatmul.bf16.gmra.mxu0 %v4732
      %v4838 = vpop.f32.mrf.mxu0
      %v4839 = vadd.f32 0.0, %v4838
      %v4840 = vpop.f32.mrf.mxu0
      %v4841 = vadd.f32 0.0, %v4840
      %4842 = vmatmul.bf16.gmra.mxu0 %v4733
      %v4843 = vpop.f32.mrf.mxu0
      %v4844 = vadd.f32 0.0, %v4843
      %v4845 = vpop.f32.mrf.mxu0
      %v4846 = vadd.f32 0.0, %v4845
      %4847 = vmatmul.bf16.gmra.mxu0 %v4734
      %v4848 = vpop.f32.mrf.mxu0
      %v4849 = vadd.f32 0.0, %v4848
      %v4850 = vpop.f32.mrf.mxu0
      %v4851 = vadd.f32 0.0, %v4850
      %4852 = vmatmul.bf16.gmra.mxu0 %v4735
      %v4853 = vpop.f32.mrf.mxu0
      %v4854 = vadd.f32 0.0, %v4853
      %v4855 = vpop.f32.mrf.mxu0
      %v4856 = vadd.f32 0.0, %v4855
      %4857 = vmatmul.bf16.gmra.mxu0 %v4736
      %v4858 = vpop.f32.mrf.mxu0
      %v4859 = vadd.f32 0.0, %v4858
      %v4860 = vpop.f32.mrf.mxu0
      %v4861 = vadd.f32 0.0, %v4860
      %4862 = vmatmul.bf16.gmra.mxu0 %v4737
      %v4863 = vpop.f32.mrf.mxu0
      %v4864 = vadd.f32 0.0, %v4863
      %v4865 = vpop.f32.mrf.mxu0
      %v4866 = vadd.f32 0.0, %v4865
      %4867 = vmatmul.bf16.gmra.mxu0 %v4738
      %v4868 = vpop.f32.mrf.mxu0
      %v4869 = vadd.f32 0.0, %v4868
      %v4870 = vpop.f32.mrf.mxu0
      %v4871 = vadd.f32 0.0, %v4870
      %4872 = vmatmul.bf16.gmra.mxu0 %v4739
      %v4873 = vpop.f32.mrf.mxu0
      %v4874 = vadd.f32 0.0, %v4873
      %v4875 = vpop.f32.mrf.mxu0
      %v4876 = vadd.f32 0.0, %v4875
      %4877 = vmatmul.bf16.gmra.mxu0 %v4740
      %v4878 = vpop.f32.mrf.mxu0
      %v4879 = vadd.f32 0.0, %v4878
      %v4880 = vpop.f32.mrf.mxu0
      %v4881 = vadd.f32 0.0, %v4880
      %4882 = vmatmul.bf16.gmra.mxu0 %v4741
      %v4883 = vpop.f32.mrf.mxu0
      %v4884 = vadd.f32 0.0, %v4883
      %v4885 = vpop.f32.mrf.mxu0
      %v4886 = vadd.f32 0.0, %v4885
      %4887 = vmatmul.bf16.gmra.mxu0 %v4742
      %v4888 = vpop.f32.mrf.mxu0
      %v4889 = vadd.f32 0.0, %v4888
      %v4890 = vpop.f32.mrf.mxu0
      %v4891 = vadd.f32 0.0, %v4890
      %4892 = vmatmul.bf16.gmra.mxu0 %v4743
      %v4893 = vpop.f32.mrf.mxu0
      %v4894 = vadd.f32 0.0, %v4893
      %v4895 = vpop.f32.mrf.mxu0
      %v4896 = vadd.f32 0.0, %v4895
      %4897 = vmatmul.bf16.gmra.mxu0 %v4744
      %v4898 = vpop.f32.mrf.mxu0
      %v4899 = vadd.f32 0.0, %v4898
      %v4900 = vpop.f32.mrf.mxu0
      %v4901 = vadd.f32 0.0, %v4900
      %4902 = vmatmul.bf16.gmra.mxu0 %v4745
      %v4903 = vpop.f32.mrf.mxu0
      %v4904 = vadd.f32 0.0, %v4903
      %v4905 = vpop.f32.mrf.mxu0
      %v4906 = vadd.f32 0.0, %v4905
      %4907 = vmatmul.bf16.gmra.mxu0 %v4746
      %v4908 = vpop.f32.mrf.mxu0
      %v4909 = vadd.f32 0.0, %v4908
      %v4910 = vpop.f32.mrf.mxu0
      %v4911 = vadd.f32 0.0, %v4910
      %4912 = vmatmul.bf16.gmra.mxu0 %v4747
      %v4913 = vpop.f32.mrf.mxu0
      %v4914 = vadd.f32 0.0, %v4913
      %v4915 = vpop.f32.mrf.mxu0
      %v4916 = vadd.f32 0.0, %v4915
      %4917 = vmatmul.bf16.gmra.mxu0 %v4748
      %v4918 = vpop.f32.mrf.mxu0
      %v4919 = vadd.f32 0.0, %v4918
      %v4920 = vpop.f32.mrf.mxu0
      %v4921 = vadd.f32 0.0, %v4920
      %4922 = vdwg.mxu0
      %v4923 = vadd.f32 %v4689, %v4824
      %v4924 = vadd.f32 %v4690, %v4826
      %v4925 = vadd.f32 %v4691, %v4829
      %v4926 = vadd.f32 %v4692, %v4831
      %v4927 = vadd.f32 %v4693, %v4834
      %v4928 = vadd.f32 %v4694, %v4836
      %v4929 = vadd.f32 %v4695, %v4839
      %v4930 = vadd.f32 %v4696, %v4841
      %v4931 = vadd.f32 %v4697, %v4844
      %v4932 = vadd.f32 %v4698, %v4846
      %v4933 = vadd.f32 %v4699, %v4849
      %v4934 = vadd.f32 %v4700, %v4851
      %v4935 = vadd.f32 %v4701, %v4854
      %v4936 = vadd.f32 %v4702, %v4856
      %v4937 = vadd.f32 %v4703, %v4859
      %v4938 = vadd.f32 %v4704, %v4861
      %v4939 = vadd.f32 %v4705, %v4864
      %v4940 = vadd.f32 %v4706, %v4866
      %v4941 = vadd.f32 %v4707, %v4869
      %v4942 = vadd.f32 %v4708, %v4871
      %v4943 = vadd.f32 %v4709, %v4874
      %v4944 = vadd.f32 %v4710, %v4876
      %v4945 = vadd.f32 %v4711, %v4879
      %v4946 = vadd.f32 %v4712, %v4881
      %v4947 = vadd.f32 %v4713, %v4884
      %v4948 = vadd.f32 %v4714, %v4886
      %v4949 = vadd.f32 %v4715, %v4889
      %v4950 = vadd.f32 %v4716, %v4891
      %v4951 = vadd.f32 %v4717, %v4894
      %v4952 = vadd.f32 %v4718, %v4896
      %v4953 = vadd.f32 %v4719, %v4899
      %v4954 = vadd.f32 %v4720, %v4901
      %v4955 = vadd.f32 %v4721, %v4904
      %v4956 = vadd.f32 %v4722, %v4906
      %v4957 = vadd.f32 %v4723, %v4909
      %v4958 = vadd.f32 %v4724, %v4911
      %v4959 = vadd.f32 %v4725, %v4914
      %v4960 = vadd.f32 %v4726, %v4916
      %v4961 = vadd.f32 %v4727, %v4919
      %v4962 = vadd.f32 %v4728, %v4921
      %v4963 = vpack.c.bf16 %v3418, %v3418
      %s4964 = scalar_lea.vmem %s3, 320
      %v4965 = vld [vmem:[%s4964] sm:$0xf]
      %v4966 = vld [vmem:[%s4964 + $0x4] sm:$0xf]
      %v4967 = vld [vmem:[%s4964 + $0x8] sm:$0xf]
      %v4968 = vld [vmem:[%s4964 + $0xc] sm:$0xf]
      %v4969 = vld [vmem:[%s4964 + $0x10] sm:$0xf]
      %v4970 = vld [vmem:[%s4964 + $0x14] sm:$0xf]
      %v4971 = vld [vmem:[%s4964 + $0x18] sm:$0xf]
      %v4972 = vld [vmem:[%s4964 + $0x1c] sm:$0xf]
      %v4973 = vld [vmem:[%s4964 + $0x20] sm:$0xf]
      %v4974 = vld [vmem:[%s4964 + $0x24] sm:$0xf]
      %v4975 = vld [vmem:[%s4964 + $0x28] sm:$0xf]
      %v4976 = vld [vmem:[%s4964 + $0x2c] sm:$0xf]
      %v4977 = vld [vmem:[%s4964 + $0x30] sm:$0xf]
      %v4978 = vld [vmem:[%s4964 + $0x34] sm:$0xf]
      %v4979 = vld [vmem:[%s4964 + $0x38] sm:$0xf]
      %v4980 = vld [vmem:[%s4964 + $0x3c] sm:$0xf]
      %vm4981 = vsmask.f32 7424
      %v4983 = vshrl.u32 %v4729, 16
      %v4985 = vshll.u32 %v4729, 16
      %v4987 = vrot.slane %v4985, 1
      %v4988 = vor.u32 %v4983, %v4987
      %v4990 = vshll.u32 %v4730, 16
      %v4992 = vrot.slane %v4990, 1
      %v4993 = vsel %vm4981, %v4988, %v4992
      %v4994 = vshrl.u32 %v4730, 16
      %v4996 = vor.u32 %v4994, %v4992
      %v4998 = vshll.u32 %v4731, 16
      %v5000 = vrot.slane %v4998, 1
      %v5001 = vsel %vm4981, %v4996, %v5000
      %v5002 = vshrl.u32 %v4731, 16
      %v5004 = vor.u32 %v5002, %v5000
      %v5006 = vshll.u32 %v4732, 16
      %v5008 = vrot.slane %v5006, 1
      %v5009 = vsel %vm4981, %v5004, %v5008
      %v5010 = vshrl.u32 %v4732, 16
      %v5012 = vor.u32 %v5010, %v5008
      %v5014 = vshll.u32 %v4733, 16
      %v5016 = vrot.slane %v5014, 1
      %v5017 = vsel %vm4981, %v5012, %v5016
      %v5018 = vshrl.u32 %v4733, 16
      %v5020 = vor.u32 %v5018, %v5016
      %v5022 = vshll.u32 %v4734, 16
      %v5024 = vrot.slane %v5022, 1
      %v5025 = vsel %vm4981, %v5020, %v5024
      %v5026 = vshrl.u32 %v4734, 16
      %v5028 = vor.u32 %v5026, %v5024
      %v5030 = vshll.u32 %v4735, 16
      %v5032 = vrot.slane %v5030, 1
      %v5033 = vsel %vm4981, %v5028, %v5032
      %v5034 = vshrl.u32 %v4735, 16
      %v5036 = vor.u32 %v5034, %v5032
      %v5038 = vshll.u32 %v4736, 16
      %v5040 = vrot.slane %v5038, 1
      %v5041 = vsel %vm4981, %v5036, %v5040
      %v5042 = vshrl.u32 %v4736, 16
      %v5044 = vor.u32 %v5042, %v5040
      %v5046 = vshll.u32 %v4737, 16
      %v5048 = vrot.slane %v5046, 1
      %v5049 = vsel %vm4981, %v5044, %v5048
      %v5050 = vshrl.u32 %v4737, 16
      %v5052 = vor.u32 %v5050, %v5048
      %v5054 = vshll.u32 %v4738, 16
      %v5056 = vrot.slane %v5054, 1
      %v5057 = vsel %vm4981, %v5052, %v5056
      %v5058 = vshrl.u32 %v4738, 16
      %v5060 = vor.u32 %v5058, %v5056
      %v5062 = vshll.u32 %v4739, 16
      %v5064 = vrot.slane %v5062, 1
      %v5065 = vsel %vm4981, %v5060, %v5064
      %v5066 = vshrl.u32 %v4739, 16
      %v5068 = vor.u32 %v5066, %v5064
      %v5070 = vshll.u32 %v4740, 16
      %v5072 = vrot.slane %v5070, 1
      %v5073 = vsel %vm4981, %v5068, %v5072
      %v5074 = vshrl.u32 %v4740, 16
      %v5076 = vor.u32 %v5074, %v5072
      %v5078 = vshll.u32 %v4741, 16
      %v5080 = vrot.slane %v5078, 1
      %v5081 = vsel %vm4981, %v5076, %v5080
      %v5082 = vshrl.u32 %v4741, 16
      %v5084 = vor.u32 %v5082, %v5080
      %v5086 = vshll.u32 %v4742, 16
      %v5088 = vrot.slane %v5086, 1
      %v5089 = vsel %vm4981, %v5084, %v5088
      %v5090 = vshrl.u32 %v4742, 16
      %v5092 = vor.u32 %v5090, %v5088
      %v5094 = vshll.u32 %v4743, 16
      %v5096 = vrot.slane %v5094, 1
      %v5097 = vsel %vm4981, %v5092, %v5096
      %v5098 = vshrl.u32 %v4743, 16
      %v5100 = vor.u32 %v5098, %v5096
      %v5102 = vshll.u32 %v4744, 16
      %v5104 = vrot.slane %v5102, 1
      %v5105 = vsel %vm4981, %v5100, %v5104
      %v5106 = vshrl.u32 %v4744, 16
      %v5108 = vor.u32 %v5106, %v5104
      %v5110 = vshll.u32 %v4745, 16
      %v5112 = vrot.slane %v5110, 1
      %v5113 = vsel %vm4981, %v5108, %v5112
      %v5114 = vshrl.u32 %v4745, 16
      %v5116 = vor.u32 %v5114, %v5112
      %v5118 = vshll.u32 %v4746, 16
      %v5120 = vrot.slane %v5118, 1
      %v5121 = vsel %vm4981, %v5116, %v5120
      %v5122 = vshrl.u32 %v4746, 16
      %v5124 = vor.u32 %v5122, %v5120
      %v5126 = vshll.u32 %v4747, 16
      %v5128 = vrot.slane %v5126, 1
      %v5129 = vsel %vm4981, %v5124, %v5128
      %v5130 = vshrl.u32 %v4747, 16
      %v5132 = vor.u32 %v5130, %v5128
      %v5134 = vshll.u32 %v4748, 16
      %v5136 = vrot.slane %v5134, 1
      %v5137 = vsel %vm4981, %v5132, %v5136
      %v5138 = vshrl.u32 %v4748, 16
      %v5140 = vor.u32 %v5138, %v5136
      %v5142 = vshll.u32 %v4963, 16
      %v5144 = vrot.slane %v5142, 1
      %v5145 = vsel %vm4981, %v5140, %v5144
      %v5182 = vunpack.c.l.b16 %v4965
      %v5183 = vunpack.c.l.b16 %v4966
      %v5184 = vunpack.c.l.b16 %v4967
      %v5185 = vunpack.c.l.b16 %v4968
      %v5186 = vunpack.c.l.b16 %v4969
      %v5187 = vunpack.c.l.b16 %v4970
      %v5188 = vunpack.c.l.b16 %v4971
      %v5189 = vunpack.c.l.b16 %v4972
      %v5190 = vunpack.c.l.b16 %v4973
      %v5191 = vunpack.c.l.b16 %v4974
      %v5192 = vunpack.c.l.b16 %v4975
      %v5193 = vunpack.c.l.b16 %v4976
      %v5194 = vunpack.c.l.b16 %v4977
      %v5195 = vunpack.c.l.b16 %v4978
      %v5196 = vunpack.c.l.b16 %v4979
      %v5197 = vunpack.c.l.b16 %v4980
      %v5198 = vpack.c.b16 %v5183, %v5182
      %v5199 = vpack.c.b16 %v5185, %v5184
      %v5200 = vpack.c.b16 %v5187, %v5186
      %v5201 = vpack.c.b16 %v5189, %v5188
      %v5202 = vpack.c.b16 %v5191, %v5190
      %v5203 = vpack.c.b16 %v5193, %v5192
      %v5204 = vpack.c.b16 %v5195, %v5194
      %v5205 = vpack.c.b16 %v5197, %v5196
      %5214 = vmatpush.bf16.msra.mxu0 %v5205
      %5215 = vmatpush.bf16.msra.mxu0 %v5204
      %5216 = vmatpush.bf16.msra.mxu0 %v5203
      %5217 = vmatpush.bf16.msra.mxu0 %v5202
      %5218 = vmatpush.bf16.msra.mxu0 %v5201
      %5219 = vmatpush.bf16.msra.mxu0 %v5200
      %5220 = vmatpush.bf16.msra.mxu0 %v5199
      %5221 = vmatpush.bf16.msra.mxu0 %v5198
      %5222 = vmatmul.bf16.gmra.mxu0 %v4993
      %v5223 = vpop.f32.mrf.mxu0
      %v5224 = vadd.f32 0.0, %v5223
      %v5225 = vpop.f32.mrf.mxu0
      %v5226 = vadd.f32 0.0, %v5225
      %5227 = vmatmul.bf16.gmra.mxu0 %v5001
      %v5228 = vpop.f32.mrf.mxu0
      %v5229 = vadd.f32 0.0, %v5228
      %v5230 = vpop.f32.mrf.mxu0
      %v5231 = vadd.f32 0.0, %v5230
      %5232 = vmatmul.bf16.gmra.mxu0 %v5009
      %v5233 = vpop.f32.mrf.mxu0
      %v5234 = vadd.f32 0.0, %v5233
      %v5235 = vpop.f32.mrf.mxu0
      %v5236 = vadd.f32 0.0, %v5235
      %5237 = vmatmul.bf16.gmra.mxu0 %v5017
      %v5238 = vpop.f32.mrf.mxu0
      %v5239 = vadd.f32 0.0, %v5238
      %v5240 = vpop.f32.mrf.mxu0
      %v5241 = vadd.f32 0.0, %v5240
      %5242 = vmatmul.bf16.gmra.mxu0 %v5025
      %v5243 = vpop.f32.mrf.mxu0
      %v5244 = vadd.f32 0.0, %v5243
      %v5245 = vpop.f32.mrf.mxu0
      %v5246 = vadd.f32 0.0, %v5245
      %5247 = vmatmul.bf16.gmra.mxu0 %v5033
      %v5248 = vpop.f32.mrf.mxu0
      %v5249 = vadd.f32 0.0, %v5248
      %v5250 = vpop.f32.mrf.mxu0
      %v5251 = vadd.f32 0.0, %v5250
      %5252 = vmatmul.bf16.gmra.mxu0 %v5041
      %v5253 = vpop.f32.mrf.mxu0
      %v5254 = vadd.f32 0.0, %v5253
      %v5255 = vpop.f32.mrf.mxu0
      %v5256 = vadd.f32 0.0, %v5255
      %5257 = vmatmul.bf16.gmra.mxu0 %v5049
      %v5258 = vpop.f32.mrf.mxu0
      %v5259 = vadd.f32 0.0, %v5258
      %v5260 = vpop.f32.mrf.mxu0
      %v5261 = vadd.f32 0.0, %v5260
      %5262 = vmatmul.bf16.gmra.mxu0 %v5057
      %v5263 = vpop.f32.mrf.mxu0
      %v5264 = vadd.f32 0.0, %v5263
      %v5265 = vpop.f32.mrf.mxu0
      %v5266 = vadd.f32 0.0, %v5265
      %5267 = vmatmul.bf16.gmra.mxu0 %v5065
      %v5268 = vpop.f32.mrf.mxu0
      %v5269 = vadd.f32 0.0, %v5268
      %v5270 = vpop.f32.mrf.mxu0
      %v5271 = vadd.f32 0.0, %v5270
      %5272 = vmatmul.bf16.gmra.mxu0 %v5073
      %v5273 = vpop.f32.mrf.mxu0
      %v5274 = vadd.f32 0.0, %v5273
      %v5275 = vpop.f32.mrf.mxu0
      %v5276 = vadd.f32 0.0, %v5275
      %5277 = vmatmul.bf16.gmra.mxu0 %v5081
      %v5278 = vpop.f32.mrf.mxu0
      %v5279 = vadd.f32 0.0, %v5278
      %v5280 = vpop.f32.mrf.mxu0
      %v5281 = vadd.f32 0.0, %v5280
      %5282 = vmatmul.bf16.gmra.mxu0 %v5089
      %v5283 = vpop.f32.mrf.mxu0
      %v5284 = vadd.f32 0.0, %v5283
      %v5285 = vpop.f32.mrf.mxu0
      %v5286 = vadd.f32 0.0, %v5285
      %5287 = vmatmul.bf16.gmra.mxu0 %v5097
      %v5288 = vpop.f32.mrf.mxu0
      %v5289 = vadd.f32 0.0, %v5288
      %v5290 = vpop.f32.mrf.mxu0
      %v5291 = vadd.f32 0.0, %v5290
      %5292 = vmatmul.bf16.gmra.mxu0 %v5105
      %v5293 = vpop.f32.mrf.mxu0
      %v5294 = vadd.f32 0.0, %v5293
      %v5295 = vpop.f32.mrf.mxu0
      %v5296 = vadd.f32 0.0, %v5295
      %5297 = vmatmul.bf16.gmra.mxu0 %v5113
      %v5298 = vpop.f32.mrf.mxu0
      %v5299 = vadd.f32 0.0, %v5298
      %v5300 = vpop.f32.mrf.mxu0
      %v5301 = vadd.f32 0.0, %v5300
      %5302 = vmatmul.bf16.gmra.mxu0 %v5121
      %v5303 = vpop.f32.mrf.mxu0
      %v5304 = vadd.f32 0.0, %v5303
      %v5305 = vpop.f32.mrf.mxu0
      %v5306 = vadd.f32 0.0, %v5305
      %5307 = vmatmul.bf16.gmra.mxu0 %v5129
      %v5308 = vpop.f32.mrf.mxu0
      %v5309 = vadd.f32 0.0, %v5308
      %v5310 = vpop.f32.mrf.mxu0
      %v5311 = vadd.f32 0.0, %v5310
      %5312 = vmatmul.bf16.gmra.mxu0 %v5137
      %v5313 = vpop.f32.mrf.mxu0
      %v5314 = vadd.f32 0.0, %v5313
      %v5315 = vpop.f32.mrf.mxu0
      %v5316 = vadd.f32 0.0, %v5315
      %5317 = vmatmul.bf16.gmra.mxu0 %v5145
      %v5318 = vpop.f32.mrf.mxu0
      %v5319 = vadd.f32 0.0, %v5318
      %v5320 = vpop.f32.mrf.mxu0
      %v5321 = vadd.f32 0.0, %v5320
      %5322 = vdwg.mxu0
      %v5323 = vadd.f32 %v4923, %v5224
      %v5324 = vadd.f32 %v4924, %v5226
      %v5325 = vadd.f32 %v4925, %v5229
      %v5326 = vadd.f32 %v4926, %v5231
      %v5327 = vadd.f32 %v4927, %v5234
      %v5328 = vadd.f32 %v4928, %v5236
      %v5329 = vadd.f32 %v4929, %v5239
      %v5330 = vadd.f32 %v4930, %v5241
      %v5331 = vadd.f32 %v4931, %v5244
      %v5332 = vadd.f32 %v4932, %v5246
      %v5333 = vadd.f32 %v4933, %v5249
      %v5334 = vadd.f32 %v4934, %v5251
      %v5335 = vadd.f32 %v4935, %v5254
      %v5336 = vadd.f32 %v4936, %v5256
      %v5337 = vadd.f32 %v4937, %v5259
      %v5338 = vadd.f32 %v4938, %v5261
      %v5339 = vadd.f32 %v4939, %v5264
      %v5340 = vadd.f32 %v4940, %v5266
      %v5341 = vadd.f32 %v4941, %v5269
      %v5342 = vadd.f32 %v4942, %v5271
      %v5343 = vadd.f32 %v4943, %v5274
      %v5344 = vadd.f32 %v4944, %v5276
      %v5345 = vadd.f32 %v4945, %v5279
      %v5346 = vadd.f32 %v4946, %v5281
      %v5347 = vadd.f32 %v4947, %v5284
      %v5348 = vadd.f32 %v4948, %v5286
      %v5349 = vadd.f32 %v4949, %v5289
      %v5350 = vadd.f32 %v4950, %v5291
      %v5351 = vadd.f32 %v4951, %v5294
      %v5352 = vadd.f32 %v4952, %v5296
      %v5353 = vadd.f32 %v4953, %v5299
      %v5354 = vadd.f32 %v4954, %v5301
      %v5355 = vadd.f32 %v4955, %v5304
      %v5356 = vadd.f32 %v4956, %v5306
      %v5357 = vadd.f32 %v4957, %v5309
      %v5358 = vadd.f32 %v4958, %v5311
      %v5359 = vadd.f32 %v4959, %v5314
      %v5360 = vadd.f32 %v4960, %v5316
      %v5361 = vadd.f32 %v4961, %v5319
      %v5362 = vadd.f32 %v4962, %v5321
      %v5363 = vpack.c.bf16 %v3419, %v3418
      %v5364 = vpack.c.bf16 %v3420, %v3420
      %s5365 = scalar_lea.vmem %s3, 384
      %v5366 = vld [vmem:[%s5365] sm:$0xf]
      %v5367 = vld [vmem:[%s5365 + $0x4] sm:$0xf]
      %v5368 = vld [vmem:[%s5365 + $0x8] sm:$0xf]
      %v5369 = vld [vmem:[%s5365 + $0xc] sm:$0xf]
      %v5370 = vld [vmem:[%s5365 + $0x10] sm:$0xf]
      %v5371 = vld [vmem:[%s5365 + $0x14] sm:$0xf]
      %v5372 = vld [vmem:[%s5365 + $0x18] sm:$0xf]
      %v5373 = vld [vmem:[%s5365 + $0x1c] sm:$0xf]
      %v5374 = vld [vmem:[%s5365 + $0x20] sm:$0xf]
      %v5375 = vld [vmem:[%s5365 + $0x24] sm:$0xf]
      %v5376 = vld [vmem:[%s5365 + $0x28] sm:$0xf]
      %v5377 = vld [vmem:[%s5365 + $0x2c] sm:$0xf]
      %v5378 = vld [vmem:[%s5365 + $0x30] sm:$0xf]
      %v5379 = vld [vmem:[%s5365 + $0x34] sm:$0xf]
      %v5380 = vld [vmem:[%s5365 + $0x38] sm:$0xf]
      %v5381 = vld [vmem:[%s5365 + $0x3c] sm:$0xf]
      %v5382 = vrot.slane %v4994, 1
      %v5383 = vrot.slane %v4990, 2
      %v5384 = vor.u32 %v5382, %v5383
      %v5385 = vrot.slane %v5002, 1
      %v5386 = vrot.slane %v4998, 2
      %v5387 = vor.u32 %v5385, %v5386
      %v5388 = vsel %vm3715, %v5384, %v5387
      %v5389 = vrot.slane %v5010, 1
      %v5390 = vrot.slane %v5006, 2
      %v5391 = vor.u32 %v5389, %v5390
      %v5392 = vsel %vm3715, %v5387, %v5391
      %v5393 = vrot.slane %v5018, 1
      %v5394 = vrot.slane %v5014, 2
      %v5395 = vor.u32 %v5393, %v5394
      %v5396 = vsel %vm3715, %v5391, %v5395
      %v5397 = vrot.slane %v5026, 1
      %v5398 = vrot.slane %v5022, 2
      %v5399 = vor.u32 %v5397, %v5398
      %v5400 = vsel %vm3715, %v5395, %v5399
      %v5401 = vrot.slane %v5034, 1
      %v5402 = vrot.slane %v5030, 2
      %v5403 = vor.u32 %v5401, %v5402
      %v5404 = vsel %vm3715, %v5399, %v5403
      %v5405 = vrot.slane %v5042, 1
      %v5406 = vrot.slane %v5038, 2
      %v5407 = vor.u32 %v5405, %v5406
      %v5408 = vsel %vm3715, %v5403, %v5407
      %v5409 = vrot.slane %v5050, 1
      %v5410 = vrot.slane %v5046, 2
      %v5411 = vor.u32 %v5409, %v5410
      %v5412 = vsel %vm3715, %v5407, %v5411
      %v5413 = vrot.slane %v5058, 1
      %v5414 = vrot.slane %v5054, 2
      %v5415 = vor.u32 %v5413, %v5414
      %v5416 = vsel %vm3715, %v5411, %v5415
      %v5417 = vrot.slane %v5066, 1
      %v5418 = vrot.slane %v5062, 2
      %v5419 = vor.u32 %v5417, %v5418
      %v5420 = vsel %vm3715, %v5415, %v5419
      %v5421 = vrot.slane %v5074, 1
      %v5422 = vrot.slane %v5070, 2
      %v5423 = vor.u32 %v5421, %v5422
      %v5424 = vsel %vm3715, %v5419, %v5423
      %v5425 = vrot.slane %v5082, 1
      %v5426 = vrot.slane %v5078, 2
      %v5427 = vor.u32 %v5425, %v5426
      %v5428 = vsel %vm3715, %v5423, %v5427
      %v5429 = vrot.slane %v5090, 1
      %v5430 = vrot.slane %v5086, 2
      %v5431 = vor.u32 %v5429, %v5430
      %v5432 = vsel %vm3715, %v5427, %v5431
      %v5433 = vrot.slane %v5098, 1
      %v5434 = vrot.slane %v5094, 2
      %v5435 = vor.u32 %v5433, %v5434
      %v5436 = vsel %vm3715, %v5431, %v5435
      %v5437 = vrot.slane %v5106, 1
      %v5438 = vrot.slane %v5102, 2
      %v5439 = vor.u32 %v5437, %v5438
      %v5440 = vsel %vm3715, %v5435, %v5439
      %v5441 = vrot.slane %v5114, 1
      %v5442 = vrot.slane %v5110, 2
      %v5443 = vor.u32 %v5441, %v5442
      %v5444 = vsel %vm3715, %v5439, %v5443
      %v5445 = vrot.slane %v5122, 1
      %v5446 = vrot.slane %v5118, 2
      %v5447 = vor.u32 %v5445, %v5446
      %v5448 = vsel %vm3715, %v5443, %v5447
      %v5449 = vrot.slane %v5130, 1
      %v5450 = vrot.slane %v5126, 2
      %v5451 = vor.u32 %v5449, %v5450
      %v5452 = vsel %vm3715, %v5447, %v5451
      %v5453 = vrot.slane %v5138, 1
      %v5454 = vrot.slane %v5134, 2
      %v5455 = vor.u32 %v5453, %v5454
      %v5456 = vsel %vm3715, %v5451, %v5455
      %v5458 = vshrl.u32 %v5363, 16
      %v5460 = vrot.slane %v5458, 1
      %v5461 = vshll.u32 %v5363, 16
      %v5463 = vrot.slane %v5461, 2
      %v5464 = vor.u32 %v5460, %v5463
      %v5465 = vsel %vm3715, %v5455, %v5464
      %v5467 = vshrl.u32 %v5364, 16
      %v5469 = vrot.slane %v5467, 1
      %v5470 = vshll.u32 %v5364, 16
      %v5472 = vrot.slane %v5470, 2
      %v5473 = vor.u32 %v5469, %v5472
      %v5474 = vsel %vm3715, %v5464, %v5473
      %v5511 = vunpack.c.l.b16 %v5366
      %v5512 = vunpack.c.l.b16 %v5367
      %v5513 = vunpack.c.l.b16 %v5368
      %v5514 = vunpack.c.l.b16 %v5369
      %v5515 = vunpack.c.l.b16 %v5370
      %v5516 = vunpack.c.l.b16 %v5371
      %v5517 = vunpack.c.l.b16 %v5372
      %v5518 = vunpack.c.l.b16 %v5373
      %v5519 = vunpack.c.l.b16 %v5374
      %v5520 = vunpack.c.l.b16 %v5375
      %v5521 = vunpack.c.l.b16 %v5376
      %v5522 = vunpack.c.l.b16 %v5377
      %v5523 = vunpack.c.l.b16 %v5378
      %v5524 = vunpack.c.l.b16 %v5379
      %v5525 = vunpack.c.l.b16 %v5380
      %v5526 = vunpack.c.l.b16 %v5381
      %v5527 = vpack.c.b16 %v5512, %v5511
      %v5528 = vpack.c.b16 %v5514, %v5513
      %v5529 = vpack.c.b16 %v5516, %v5515
      %v5530 = vpack.c.b16 %v5518, %v5517
      %v5531 = vpack.c.b16 %v5520, %v5519
      %v5532 = vpack.c.b16 %v5522, %v5521
      %v5533 = vpack.c.b16 %v5524, %v5523
      %v5534 = vpack.c.b16 %v5526, %v5525
      %5543 = vmatpush.bf16.msra.mxu0 %v5534
      %5544 = vmatpush.bf16.msra.mxu0 %v5533
      %5545 = vmatpush.bf16.msra.mxu0 %v5532
      %5546 = vmatpush.bf16.msra.mxu0 %v5531
      %5547 = vmatpush.bf16.msra.mxu0 %v5530
      %5548 = vmatpush.bf16.msra.mxu0 %v5529
      %5549 = vmatpush.bf16.msra.mxu0 %v5528
      %5550 = vmatpush.bf16.msra.mxu0 %v5527
      %5551 = vmatmul.bf16.gmra.mxu0 %v5388
      %v5552 = vpop.f32.mrf.mxu0
      %v5553 = vadd.f32 0.0, %v5552
      %v5554 = vpop.f32.mrf.mxu0
      %v5555 = vadd.f32 0.0, %v5554
      %5556 = vmatmul.bf16.gmra.mxu0 %v5392
      %v5557 = vpop.f32.mrf.mxu0
      %v5558 = vadd.f32 0.0, %v5557
      %v5559 = vpop.f32.mrf.mxu0
      %v5560 = vadd.f32 0.0, %v5559
      %5561 = vmatmul.bf16.gmra.mxu0 %v5396
      %v5562 = vpop.f32.mrf.mxu0
      %v5563 = vadd.f32 0.0, %v5562
      %v5564 = vpop.f32.mrf.mxu0
      %v5565 = vadd.f32 0.0, %v5564
      %5566 = vmatmul.bf16.gmra.mxu0 %v5400
      %v5567 = vpop.f32.mrf.mxu0
      %v5568 = vadd.f32 0.0, %v5567
      %v5569 = vpop.f32.mrf.mxu0
      %v5570 = vadd.f32 0.0, %v5569
      %5571 = vmatmul.bf16.gmra.mxu0 %v5404
      %v5572 = vpop.f32.mrf.mxu0
      %v5573 = vadd.f32 0.0, %v5572
      %v5574 = vpop.f32.mrf.mxu0
      %v5575 = vadd.f32 0.0, %v5574
      %5576 = vmatmul.bf16.gmra.mxu0 %v5408
      %v5577 = vpop.f32.mrf.mxu0
      %v5578 = vadd.f32 0.0, %v5577
      %v5579 = vpop.f32.mrf.mxu0
      %v5580 = vadd.f32 0.0, %v5579
      %5581 = vmatmul.bf16.gmra.mxu0 %v5412
      %v5582 = vpop.f32.mrf.mxu0
      %v5583 = vadd.f32 0.0, %v5582
      %v5584 = vpop.f32.mrf.mxu0
      %v5585 = vadd.f32 0.0, %v5584
      %5586 = vmatmul.bf16.gmra.mxu0 %v5416
      %v5587 = vpop.f32.mrf.mxu0
      %v5588 = vadd.f32 0.0, %v5587
      %v5589 = vpop.f32.mrf.mxu0
      %v5590 = vadd.f32 0.0, %v5589
      %5591 = vmatmul.bf16.gmra.mxu0 %v5420
      %v5592 = vpop.f32.mrf.mxu0
      %v5593 = vadd.f32 0.0, %v5592
      %v5594 = vpop.f32.mrf.mxu0
      %v5595 = vadd.f32 0.0, %v5594
      %5596 = vmatmul.bf16.gmra.mxu0 %v5424
      %v5597 = vpop.f32.mrf.mxu0
      %v5598 = vadd.f32 0.0, %v5597
      %v5599 = vpop.f32.mrf.mxu0
      %v5600 = vadd.f32 0.0, %v5599
      %5601 = vmatmul.bf16.gmra.mxu0 %v5428
      %v5602 = vpop.f32.mrf.mxu0
      %v5603 = vadd.f32 0.0, %v5602
      %v5604 = vpop.f32.mrf.mxu0
      %v5605 = vadd.f32 0.0, %v5604
      %5606 = vmatmul.bf16.gmra.mxu0 %v5432
      %v5607 = vpop.f32.mrf.mxu0
      %v5608 = vadd.f32 0.0, %v5607
      %v5609 = vpop.f32.mrf.mxu0
      %v5610 = vadd.f32 0.0, %v5609
      %5611 = vmatmul.bf16.gmra.mxu0 %v5436
      %v5612 = vpop.f32.mrf.mxu0
      %v5613 = vadd.f32 0.0, %v5612
      %v5614 = vpop.f32.mrf.mxu0
      %v5615 = vadd.f32 0.0, %v5614
      %5616 = vmatmul.bf16.gmra.mxu0 %v5440
      %v5617 = vpop.f32.mrf.mxu0
      %v5618 = vadd.f32 0.0, %v5617
      %v5619 = vpop.f32.mrf.mxu0
      %v5620 = vadd.f32 0.0, %v5619
      %5621 = vmatmul.bf16.gmra.mxu0 %v5444
      %v5622 = vpop.f32.mrf.mxu0
      %v5623 = vadd.f32 0.0, %v5622
      %v5624 = vpop.f32.mrf.mxu0
      %v5625 = vadd.f32 0.0, %v5624
      %5626 = vmatmul.bf16.gmra.mxu0 %v5448
      %v5627 = vpop.f32.mrf.mxu0
      %v5628 = vadd.f32 0.0, %v5627
      %v5629 = vpop.f32.mrf.mxu0
      %v5630 = vadd.f32 0.0, %v5629
      %5631 = vmatmul.bf16.gmra.mxu0 %v5452
      %v5632 = vpop.f32.mrf.mxu0
      %v5633 = vadd.f32 0.0, %v5632
      %v5634 = vpop.f32.mrf.mxu0
      %v5635 = vadd.f32 0.0, %v5634
      %5636 = vmatmul.bf16.gmra.mxu0 %v5456
      %v5637 = vpop.f32.mrf.mxu0
      %v5638 = vadd.f32 0.0, %v5637
      %v5639 = vpop.f32.mrf.mxu0
      %v5640 = vadd.f32 0.0, %v5639
      %5641 = vmatmul.bf16.gmra.mxu0 %v5465
      %v5642 = vpop.f32.mrf.mxu0
      %v5643 = vadd.f32 0.0, %v5642
      %v5644 = vpop.f32.mrf.mxu0
      %v5645 = vadd.f32 0.0, %v5644
      %5646 = vmatmul.bf16.gmra.mxu0 %v5474
      %v5647 = vpop.f32.mrf.mxu0
      %v5648 = vadd.f32 0.0, %v5647
      %v5649 = vpop.f32.mrf.mxu0
      %v5650 = vadd.f32 0.0, %v5649
      %5651 = vdwg.mxu0
      %v5652 = vadd.f32 %v5323, %v5553
      %v5653 = vadd.f32 %v5324, %v5555
      %v5654 = vadd.f32 %v5325, %v5558
      %v5655 = vadd.f32 %v5326, %v5560
      %v5656 = vadd.f32 %v5327, %v5563
      %v5657 = vadd.f32 %v5328, %v5565
      %v5658 = vadd.f32 %v5329, %v5568
      %v5659 = vadd.f32 %v5330, %v5570
      %v5660 = vadd.f32 %v5331, %v5573
      %v5661 = vadd.f32 %v5332, %v5575
      %v5662 = vadd.f32 %v5333, %v5578
      %v5663 = vadd.f32 %v5334, %v5580
      %v5664 = vadd.f32 %v5335, %v5583
      %v5665 = vadd.f32 %v5336, %v5585
      %v5666 = vadd.f32 %v5337, %v5588
      %v5667 = vadd.f32 %v5338, %v5590
      %v5668 = vadd.f32 %v5339, %v5593
      %v5669 = vadd.f32 %v5340, %v5595
      %v5670 = vadd.f32 %v5341, %v5598
      %v5671 = vadd.f32 %v5342, %v5600
      %v5672 = vadd.f32 %v5343, %v5603
      %v5673 = vadd.f32 %v5344, %v5605
      %v5674 = vadd.f32 %v5345, %v5608
      %v5675 = vadd.f32 %v5346, %v5610
      %v5676 = vadd.f32 %v5347, %v5613
      %v5677 = vadd.f32 %v5348, %v5615
      %v5678 = vadd.f32 %v5349, %v5618
      %v5679 = vadd.f32 %v5350, %v5620
      %v5680 = vadd.f32 %v5351, %v5623
      %v5681 = vadd.f32 %v5352, %v5625
      %v5682 = vadd.f32 %v5353, %v5628
      %v5683 = vadd.f32 %v5354, %v5630
      %v5684 = vadd.f32 %v5355, %v5633
      %v5685 = vadd.f32 %v5356, %v5635
      %v5686 = vadd.f32 %v5357, %v5638
      %v5687 = vadd.f32 %v5358, %v5640
      %v5688 = vadd.f32 %v5359, %v5643
      %v5689 = vadd.f32 %v5360, %v5645
      %v5690 = vadd.f32 %v5361, %v5648
      %v5691 = vadd.f32 %v5362, %v5650
      %s5692 = scalar_lea.vmem %s3, 448
      %v5693 = vld [vmem:[%s5692] sm:$0xf]
      %v5694 = vld [vmem:[%s5692 + $0x4] sm:$0xf]
      %v5695 = vld [vmem:[%s5692 + $0x8] sm:$0xf]
      %v5696 = vld [vmem:[%s5692 + $0xc] sm:$0xf]
      %v5697 = vld [vmem:[%s5692 + $0x10] sm:$0xf]
      %v5698 = vld [vmem:[%s5692 + $0x14] sm:$0xf]
      %v5699 = vld [vmem:[%s5692 + $0x18] sm:$0xf]
      %v5700 = vld [vmem:[%s5692 + $0x1c] sm:$0xf]
      %v5701 = vld [vmem:[%s5692 + $0x20] sm:$0xf]
      %v5702 = vld [vmem:[%s5692 + $0x24] sm:$0xf]
      %v5703 = vld [vmem:[%s5692 + $0x28] sm:$0xf]
      %v5704 = vld [vmem:[%s5692 + $0x2c] sm:$0xf]
      %v5705 = vld [vmem:[%s5692 + $0x30] sm:$0xf]
      %v5706 = vld [vmem:[%s5692 + $0x34] sm:$0xf]
      %v5707 = vld [vmem:[%s5692 + $0x38] sm:$0xf]
      %v5708 = vld [vmem:[%s5692 + $0x3c] sm:$0xf]
      %v5730 = vrot.slane %v4730, 2
      %v5731 = vrot.slane %v4731, 2
      %v5732 = vsel %vm3496, %v5730, %v5731
      %v5733 = vrot.slane %v4732, 2
      %v5734 = vsel %vm3496, %v5731, %v5733
      %v5735 = vrot.slane %v4733, 2
      %v5736 = vsel %vm3496, %v5733, %v5735
      %v5737 = vrot.slane %v4734, 2
      %v5738 = vsel %vm3496, %v5735, %v5737
      %v5739 = vrot.slane %v4735, 2
      %v5740 = vsel %vm3496, %v5737, %v5739
      %v5741 = vrot.slane %v4736, 2
      %v5742 = vsel %vm3496, %v5739, %v5741
      %v5743 = vrot.slane %v4737, 2
      %v5744 = vsel %vm3496, %v5741, %v5743
      %v5745 = vrot.slane %v4738, 2
      %v5746 = vsel %vm3496, %v5743, %v5745
      %v5747 = vrot.slane %v4739, 2
      %v5748 = vsel %vm3496, %v5745, %v5747
      %v5749 = vrot.slane %v4740, 2
      %v5750 = vsel %vm3496, %v5747, %v5749
      %v5751 = vrot.slane %v4741, 2
      %v5752 = vsel %vm3496, %v5749, %v5751
      %v5753 = vrot.slane %v4742, 2
      %v5754 = vsel %vm3496, %v5751, %v5753
      %v5755 = vrot.slane %v4743, 2
      %v5756 = vsel %vm3496, %v5753, %v5755
      %v5757 = vrot.slane %v4744, 2
      %v5758 = vsel %vm3496, %v5755, %v5757
      %v5759 = vrot.slane %v4745, 2
      %v5760 = vsel %vm3496, %v5757, %v5759
      %v5761 = vrot.slane %v4746, 2
      %v5762 = vsel %vm3496, %v5759, %v5761
      %v5763 = vrot.slane %v4747, 2
      %v5764 = vsel %vm3496, %v5761, %v5763
      %v5765 = vrot.slane %v4748, 2
      %v5766 = vsel %vm3496, %v5763, %v5765
      %v5767 = vrot.slane %v5363, 2
      %v5768 = vsel %vm3496, %v5765, %v5767
      %v5769 = vrot.slane %v5364, 2
      %v5770 = vsel %vm3496, %v5767, %v5769
      %v5807 = vunpack.c.l.b16 %v5693
      %v5808 = vunpack.c.l.b16 %v5694
      %v5809 = vunpack.c.l.b16 %v5695
      %v5810 = vunpack.c.l.b16 %v5696
      %v5811 = vunpack.c.l.b16 %v5697
      %v5812 = vunpack.c.l.b16 %v5698
      %v5813 = vunpack.c.l.b16 %v5699
      %v5814 = vunpack.c.l.b16 %v5700
      %v5815 = vunpack.c.l.b16 %v5701
      %v5816 = vunpack.c.l.b16 %v5702
      %v5817 = vunpack.c.l.b16 %v5703
      %v5818 = vunpack.c.l.b16 %v5704
      %v5819 = vunpack.c.l.b16 %v5705
      %v5820 = vunpack.c.l.b16 %v5706
      %v5821 = vunpack.c.l.b16 %v5707
      %v5822 = vunpack.c.l.b16 %v5708
      %v5823 = vpack.c.b16 %v5808, %v5807
      %v5824 = vpack.c.b16 %v5810, %v5809
      %v5825 = vpack.c.b16 %v5812, %v5811
      %v5826 = vpack.c.b16 %v5814, %v5813
      %v5827 = vpack.c.b16 %v5816, %v5815
      %v5828 = vpack.c.b16 %v5818, %v5817
      %v5829 = vpack.c.b16 %v5820, %v5819
      %v5830 = vpack.c.b16 %v5822, %v5821
      %5839 = vmatpush.bf16.msra.mxu0 %v5830
      %5840 = vmatpush.bf16.msra.mxu0 %v5829
      %5841 = vmatpush.bf16.msra.mxu0 %v5828
      %5842 = vmatpush.bf16.msra.mxu0 %v5827
      %5843 = vmatpush.bf16.msra.mxu0 %v5826
      %5844 = vmatpush.bf16.msra.mxu0 %v5825
      %5845 = vmatpush.bf16.msra.mxu0 %v5824
      %5846 = vmatpush.bf16.msra.mxu0 %v5823
      %5847 = vmatmul.bf16.gmra.mxu0 %v5732
      %v5848 = vpop.f32.mrf.mxu0
      %v5849 = vadd.f32 0.0, %v5848
      %v5850 = vpop.f32.mrf.mxu0
      %v5851 = vadd.f32 0.0, %v5850
      %5852 = vmatmul.bf16.gmra.mxu0 %v5734
      %v5853 = vpop.f32.mrf.mxu0
      %v5854 = vadd.f32 0.0, %v5853
      %v5855 = vpop.f32.mrf.mxu0
      %v5856 = vadd.f32 0.0, %v5855
      %5857 = vmatmul.bf16.gmra.mxu0 %v5736
      %v5858 = vpop.f32.mrf.mxu0
      %v5859 = vadd.f32 0.0, %v5858
      %v5860 = vpop.f32.mrf.mxu0
      %v5861 = vadd.f32 0.0, %v5860
      %5862 = vmatmul.bf16.gmra.mxu0 %v5738
      %v5863 = vpop.f32.mrf.mxu0
      %v5864 = vadd.f32 0.0, %v5863
      %v5865 = vpop.f32.mrf.mxu0
      %v5866 = vadd.f32 0.0, %v5865
      %5867 = vmatmul.bf16.gmra.mxu0 %v5740
      %v5868 = vpop.f32.mrf.mxu0
      %v5869 = vadd.f32 0.0, %v5868
      %v5870 = vpop.f32.mrf.mxu0
      %v5871 = vadd.f32 0.0, %v5870
      %5872 = vmatmul.bf16.gmra.mxu0 %v5742
      %v5873 = vpop.f32.mrf.mxu0
      %v5874 = vadd.f32 0.0, %v5873
      %v5875 = vpop.f32.mrf.mxu0
      %v5876 = vadd.f32 0.0, %v5875
      %5877 = vmatmul.bf16.gmra.mxu0 %v5744
      %v5878 = vpop.f32.mrf.mxu0
      %v5879 = vadd.f32 0.0, %v5878
      %v5880 = vpop.f32.mrf.mxu0
      %v5881 = vadd.f32 0.0, %v5880
      %5882 = vmatmul.bf16.gmra.mxu0 %v5746
      %v5883 = vpop.f32.mrf.mxu0
      %v5884 = vadd.f32 0.0, %v5883
      %v5885 = vpop.f32.mrf.mxu0
      %v5886 = vadd.f32 0.0, %v5885
      %5887 = vmatmul.bf16.gmra.mxu0 %v5748
      %v5888 = vpop.f32.mrf.mxu0
      %v5889 = vadd.f32 0.0, %v5888
      %v5890 = vpop.f32.mrf.mxu0
      %v5891 = vadd.f32 0.0, %v5890
      %5892 = vmatmul.bf16.gmra.mxu0 %v5750
      %v5893 = vpop.f32.mrf.mxu0
      %v5894 = vadd.f32 0.0, %v5893
      %v5895 = vpop.f32.mrf.mxu0
      %v5896 = vadd.f32 0.0, %v5895
      %5897 = vmatmul.bf16.gmra.mxu0 %v5752
      %v5898 = vpop.f32.mrf.mxu0
      %v5899 = vadd.f32 0.0, %v5898
      %v5900 = vpop.f32.mrf.mxu0
      %v5901 = vadd.f32 0.0, %v5900
      %5902 = vmatmul.bf16.gmra.mxu0 %v5754
      %v5903 = vpop.f32.mrf.mxu0
      %v5904 = vadd.f32 0.0, %v5903
      %v5905 = vpop.f32.mrf.mxu0
      %v5906 = vadd.f32 0.0, %v5905
      %5907 = vmatmul.bf16.gmra.mxu0 %v5756
      %v5908 = vpop.f32.mrf.mxu0
      %v5909 = vadd.f32 0.0, %v5908
      %v5910 = vpop.f32.mrf.mxu0
      %v5911 = vadd.f32 0.0, %v5910
      %5912 = vmatmul.bf16.gmra.mxu0 %v5758
      %v5913 = vpop.f32.mrf.mxu0
      %v5914 = vadd.f32 0.0, %v5913
      %v5915 = vpop.f32.mrf.mxu0
      %v5916 = vadd.f32 0.0, %v5915
      %5917 = vmatmul.bf16.gmra.mxu0 %v5760
      %v5918 = vpop.f32.mrf.mxu0
      %v5919 = vadd.f32 0.0, %v5918
      %v5920 = vpop.f32.mrf.mxu0
      %v5921 = vadd.f32 0.0, %v5920
      %5922 = vmatmul.bf16.gmra.mxu0 %v5762
      %v5923 = vpop.f32.mrf.mxu0
      %v5924 = vadd.f32 0.0, %v5923
      %v5925 = vpop.f32.mrf.mxu0
      %v5926 = vadd.f32 0.0, %v5925
      %5927 = vmatmul.bf16.gmra.mxu0 %v5764
      %v5928 = vpop.f32.mrf.mxu0
      %v5929 = vadd.f32 0.0, %v5928
      %v5930 = vpop.f32.mrf.mxu0
      %v5931 = vadd.f32 0.0, %v5930
      %5932 = vmatmul.bf16.gmra.mxu0 %v5766
      %v5933 = vpop.f32.mrf.mxu0
      %v5934 = vadd.f32 0.0, %v5933
      %v5935 = vpop.f32.mrf.mxu0
      %v5936 = vadd.f32 0.0, %v5935
      %5937 = vmatmul.bf16.gmra.mxu0 %v5768
      %v5938 = vpop.f32.mrf.mxu0
      %v5939 = vadd.f32 0.0, %v5938
      %v5940 = vpop.f32.mrf.mxu0
      %v5941 = vadd.f32 0.0, %v5940
      %5942 = vmatmul.bf16.gmra.mxu0 %v5770
      %v5943 = vpop.f32.mrf.mxu0
      %v5944 = vadd.f32 0.0, %v5943
      %v5945 = vpop.f32.mrf.mxu0
      %v5946 = vadd.f32 0.0, %v5945
      %5947 = vdwg.mxu0
      %v5948 = vadd.f32 %v5652, %v5849
      %v5949 = vadd.f32 %v5653, %v5851
      %v5950 = vadd.f32 %v5654, %v5854
      %v5951 = vadd.f32 %v5655, %v5856
      %v5952 = vadd.f32 %v5656, %v5859
      %v5953 = vadd.f32 %v5657, %v5861
      %v5954 = vadd.f32 %v5658, %v5864
      %v5955 = vadd.f32 %v5659, %v5866
      %v5956 = vadd.f32 %v5660, %v5869
      %v5957 = vadd.f32 %v5661, %v5871
      %v5958 = vadd.f32 %v5662, %v5874
      %v5959 = vadd.f32 %v5663, %v5876
      %v5960 = vadd.f32 %v5664, %v5879
      %v5961 = vadd.f32 %v5665, %v5881
      %v5962 = vadd.f32 %v5666, %v5884
      %v5963 = vadd.f32 %v5667, %v5886
      %v5964 = vadd.f32 %v5668, %v5889
      %v5965 = vadd.f32 %v5669, %v5891
      %v5966 = vadd.f32 %v5670, %v5894
      %v5967 = vadd.f32 %v5671, %v5896
      %v5968 = vadd.f32 %v5672, %v5899
      %v5969 = vadd.f32 %v5673, %v5901
      %v5970 = vadd.f32 %v5674, %v5904
      %v5971 = vadd.f32 %v5675, %v5906
      %v5972 = vadd.f32 %v5676, %v5909
      %v5973 = vadd.f32 %v5677, %v5911
      %v5974 = vadd.f32 %v5678, %v5914
      %v5975 = vadd.f32 %v5679, %v5916
      %v5976 = vadd.f32 %v5680, %v5919
      %v5977 = vadd.f32 %v5681, %v5921
      %v5978 = vadd.f32 %v5682, %v5924
      %v5979 = vadd.f32 %v5683, %v5926
      %v5980 = vadd.f32 %v5684, %v5929
      %v5981 = vadd.f32 %v5685, %v5931
      %v5982 = vadd.f32 %v5686, %v5934
      %v5983 = vadd.f32 %v5687, %v5936
      %v5984 = vadd.f32 %v5688, %v5939
      %v5985 = vadd.f32 %v5689, %v5941
      %v5986 = vadd.f32 %v5690, %v5944
      %v5987 = vadd.f32 %v5691, %v5946
      %s5988 = scalar_lea.vmem %s3, 512
      %v5989 = vld [vmem:[%s5988] sm:$0xf]
      %v5990 = vld [vmem:[%s5988 + $0x4] sm:$0xf]
      %v5991 = vld [vmem:[%s5988 + $0x8] sm:$0xf]
      %v5992 = vld [vmem:[%s5988 + $0xc] sm:$0xf]
      %v5993 = vld [vmem:[%s5988 + $0x10] sm:$0xf]
      %v5994 = vld [vmem:[%s5988 + $0x14] sm:$0xf]
      %v5995 = vld [vmem:[%s5988 + $0x18] sm:$0xf]
      %v5996 = vld [vmem:[%s5988 + $0x1c] sm:$0xf]
      %v5997 = vld [vmem:[%s5988 + $0x20] sm:$0xf]
      %v5998 = vld [vmem:[%s5988 + $0x24] sm:$0xf]
      %v5999 = vld [vmem:[%s5988 + $0x28] sm:$0xf]
      %v6000 = vld [vmem:[%s5988 + $0x2c] sm:$0xf]
      %v6001 = vld [vmem:[%s5988 + $0x30] sm:$0xf]
      %v6002 = vld [vmem:[%s5988 + $0x34] sm:$0xf]
      %v6003 = vld [vmem:[%s5988 + $0x38] sm:$0xf]
      %v6004 = vld [vmem:[%s5988 + $0x3c] sm:$0xf]
      %v6005 = vrot.slane %v4994, 2
      %v6006 = vrot.slane %v4990, 3
      %v6007 = vor.u32 %v6005, %v6006
      %v6008 = vrot.slane %v5002, 2
      %v6009 = vrot.slane %v4998, 3
      %v6010 = vor.u32 %v6008, %v6009
      %v6011 = vsel %vm4098, %v6007, %v6010
      %v6012 = vrot.slane %v5010, 2
      %v6013 = vrot.slane %v5006, 3
      %v6014 = vor.u32 %v6012, %v6013
      %v6015 = vsel %vm4098, %v6010, %v6014
      %v6016 = vrot.slane %v5018, 2
      %v6017 = vrot.slane %v5014, 3
      %v6018 = vor.u32 %v6016, %v6017
      %v6019 = vsel %vm4098, %v6014, %v6018
      %v6020 = vrot.slane %v5026, 2
      %v6021 = vrot.slane %v5022, 3
      %v6022 = vor.u32 %v6020, %v6021
      %v6023 = vsel %vm4098, %v6018, %v6022
      %v6024 = vrot.slane %v5034, 2
      %v6025 = vrot.slane %v5030, 3
      %v6026 = vor.u32 %v6024, %v6025
      %v6027 = vsel %vm4098, %v6022, %v6026
      %v6028 = vrot.slane %v5042, 2
      %v6029 = vrot.slane %v5038, 3
      %v6030 = vor.u32 %v6028, %v6029
      %v6031 = vsel %vm4098, %v6026, %v6030
      %v6032 = vrot.slane %v5050, 2
      %v6033 = vrot.slane %v5046, 3
      %v6034 = vor.u32 %v6032, %v6033
      %v6035 = vsel %vm4098, %v6030, %v6034
      %v6036 = vrot.slane %v5058, 2
      %v6037 = vrot.slane %v5054, 3
      %v6038 = vor.u32 %v6036, %v6037
      %v6039 = vsel %vm4098, %v6034, %v6038
      %v6040 = vrot.slane %v5066, 2
      %v6041 = vrot.slane %v5062, 3
      %v6042 = vor.u32 %v6040, %v6041
      %v6043 = vsel %vm4098, %v6038, %v6042
      %v6044 = vrot.slane %v5074, 2
      %v6045 = vrot.slane %v5070, 3
      %v6046 = vor.u32 %v6044, %v6045
      %v6047 = vsel %vm4098, %v6042, %v6046
      %v6048 = vrot.slane %v5082, 2
      %v6049 = vrot.slane %v5078, 3
      %v6050 = vor.u32 %v6048, %v6049
      %v6051 = vsel %vm4098, %v6046, %v6050
      %v6052 = vrot.slane %v5090, 2
      %v6053 = vrot.slane %v5086, 3
      %v6054 = vor.u32 %v6052, %v6053
      %v6055 = vsel %vm4098, %v6050, %v6054
      %v6056 = vrot.slane %v5098, 2
      %v6057 = vrot.slane %v5094, 3
      %v6058 = vor.u32 %v6056, %v6057
      %v6059 = vsel %vm4098, %v6054, %v6058
      %v6060 = vrot.slane %v5106, 2
      %v6061 = vrot.slane %v5102, 3
      %v6062 = vor.u32 %v6060, %v6061
      %v6063 = vsel %vm4098, %v6058, %v6062
      %v6064 = vrot.slane %v5114, 2
      %v6065 = vrot.slane %v5110, 3
      %v6066 = vor.u32 %v6064, %v6065
      %v6067 = vsel %vm4098, %v6062, %v6066
      %v6068 = vrot.slane %v5122, 2
      %v6069 = vrot.slane %v5118, 3
      %v6070 = vor.u32 %v6068, %v6069
      %v6071 = vsel %vm4098, %v6066, %v6070
      %v6072 = vrot.slane %v5130, 2
      %v6073 = vrot.slane %v5126, 3
      %v6074 = vor.u32 %v6072, %v6073
      %v6075 = vsel %vm4098, %v6070, %v6074
      %v6076 = vrot.slane %v5138, 2
      %v6077 = vrot.slane %v5134, 3
      %v6078 = vor.u32 %v6076, %v6077
      %v6079 = vsel %vm4098, %v6074, %v6078
      %v6080 = vrot.slane %v5458, 2
      %v6081 = vrot.slane %v5461, 3
      %v6082 = vor.u32 %v6080, %v6081
      %v6083 = vsel %vm4098, %v6078, %v6082
      %v6084 = vrot.slane %v5467, 2
      %v6085 = vrot.slane %v5470, 3
      %v6086 = vor.u32 %v6084, %v6085
      %v6087 = vsel %vm4098, %v6082, %v6086
      %v6124 = vunpack.c.l.b16 %v5989
      %v6125 = vunpack.c.l.b16 %v5990
      %v6126 = vunpack.c.l.b16 %v5991
      %v6127 = vunpack.c.l.b16 %v5992
      %v6128 = vunpack.c.l.b16 %v5993
      %v6129 = vunpack.c.l.b16 %v5994
      %v6130 = vunpack.c.l.b16 %v5995
      %v6131 = vunpack.c.l.b16 %v5996
      %v6132 = vunpack.c.l.b16 %v5997
      %v6133 = vunpack.c.l.b16 %v5998
      %v6134 = vunpack.c.l.b16 %v5999
      %v6135 = vunpack.c.l.b16 %v6000
      %v6136 = vunpack.c.l.b16 %v6001
      %v6137 = vunpack.c.l.b16 %v6002
      %v6138 = vunpack.c.l.b16 %v6003
      %v6139 = vunpack.c.l.b16 %v6004
      %v6140 = vpack.c.b16 %v6125, %v6124
      %v6141 = vpack.c.b16 %v6127, %v6126
      %v6142 = vpack.c.b16 %v6129, %v6128
      %v6143 = vpack.c.b16 %v6131, %v6130
      %v6144 = vpack.c.b16 %v6133, %v6132
      %v6145 = vpack.c.b16 %v6135, %v6134
      %v6146 = vpack.c.b16 %v6137, %v6136
      %v6147 = vpack.c.b16 %v6139, %v6138
      %6156 = vmatpush.bf16.msra.mxu0 %v6147
      %6157 = vmatpush.bf16.msra.mxu0 %v6146
      %6158 = vmatpush.bf16.msra.mxu0 %v6145
      %6159 = vmatpush.bf16.msra.mxu0 %v6144
      %6160 = vmatpush.bf16.msra.mxu0 %v6143
      %6161 = vmatpush.bf16.msra.mxu0 %v6142
      %6162 = vmatpush.bf16.msra.mxu0 %v6141
      %6163 = vmatpush.bf16.msra.mxu0 %v6140
      %6164 = vmatmul.bf16.gmra.mxu0 %v6011
      %v6165 = vpop.f32.mrf.mxu0
      %v6166 = vadd.f32 0.0, %v6165
      %v6167 = vpop.f32.mrf.mxu0
      %v6168 = vadd.f32 0.0, %v6167
      %6169 = vmatmul.bf16.gmra.mxu0 %v6015
      %v6170 = vpop.f32.mrf.mxu0
      %v6171 = vadd.f32 0.0, %v6170
      %v6172 = vpop.f32.mrf.mxu0
      %v6173 = vadd.f32 0.0, %v6172
      %6174 = vmatmul.bf16.gmra.mxu0 %v6019
      %v6175 = vpop.f32.mrf.mxu0
      %v6176 = vadd.f32 0.0, %v6175
      %v6177 = vpop.f32.mrf.mxu0
      %v6178 = vadd.f32 0.0, %v6177
      %6179 = vmatmul.bf16.gmra.mxu0 %v6023
      %v6180 = vpop.f32.mrf.mxu0
      %v6181 = vadd.f32 0.0, %v6180
      %v6182 = vpop.f32.mrf.mxu0
      %v6183 = vadd.f32 0.0, %v6182
      %6184 = vmatmul.bf16.gmra.mxu0 %v6027
      %v6185 = vpop.f32.mrf.mxu0
      %v6186 = vadd.f32 0.0, %v6185
      %v6187 = vpop.f32.mrf.mxu0
      %v6188 = vadd.f32 0.0, %v6187
      %6189 = vmatmul.bf16.gmra.mxu0 %v6031
      %v6190 = vpop.f32.mrf.mxu0
      %v6191 = vadd.f32 0.0, %v6190
      %v6192 = vpop.f32.mrf.mxu0
      %v6193 = vadd.f32 0.0, %v6192
      %6194 = vmatmul.bf16.gmra.mxu0 %v6035
      %v6195 = vpop.f32.mrf.mxu0
      %v6196 = vadd.f32 0.0, %v6195
      %v6197 = vpop.f32.mrf.mxu0
      %v6198 = vadd.f32 0.0, %v6197
      %6199 = vmatmul.bf16.gmra.mxu0 %v6039
      %v6200 = vpop.f32.mrf.mxu0
      %v6201 = vadd.f32 0.0, %v6200
      %v6202 = vpop.f32.mrf.mxu0
      %v6203 = vadd.f32 0.0, %v6202
      %6204 = vmatmul.bf16.gmra.mxu0 %v6043
      %v6205 = vpop.f32.mrf.mxu0
      %v6206 = vadd.f32 0.0, %v6205
      %v6207 = vpop.f32.mrf.mxu0
      %v6208 = vadd.f32 0.0, %v6207
      %6209 = vmatmul.bf16.gmra.mxu0 %v6047
      %v6210 = vpop.f32.mrf.mxu0
      %v6211 = vadd.f32 0.0, %v6210
      %v6212 = vpop.f32.mrf.mxu0
      %v6213 = vadd.f32 0.0, %v6212
      %6214 = vmatmul.bf16.gmra.mxu0 %v6051
      %v6215 = vpop.f32.mrf.mxu0
      %v6216 = vadd.f32 0.0, %v6215
      %v6217 = vpop.f32.mrf.mxu0
      %v6218 = vadd.f32 0.0, %v6217
      %6219 = vmatmul.bf16.gmra.mxu0 %v6055
      %v6220 = vpop.f32.mrf.mxu0
      %v6221 = vadd.f32 0.0, %v6220
      %v6222 = vpop.f32.mrf.mxu0
      %v6223 = vadd.f32 0.0, %v6222
      %6224 = vmatmul.bf16.gmra.mxu0 %v6059
      %v6225 = vpop.f32.mrf.mxu0
      %v6226 = vadd.f32 0.0, %v6225
      %v6227 = vpop.f32.mrf.mxu0
      %v6228 = vadd.f32 0.0, %v6227
      %6229 = vmatmul.bf16.gmra.mxu0 %v6063
      %v6230 = vpop.f32.mrf.mxu0
      %v6231 = vadd.f32 0.0, %v6230
      %v6232 = vpop.f32.mrf.mxu0
      %v6233 = vadd.f32 0.0, %v6232
      %6234 = vmatmul.bf16.gmra.mxu0 %v6067
      %v6235 = vpop.f32.mrf.mxu0
      %v6236 = vadd.f32 0.0, %v6235
      %v6237 = vpop.f32.mrf.mxu0
      %v6238 = vadd.f32 0.0, %v6237
      %6239 = vmatmul.bf16.gmra.mxu0 %v6071
      %v6240 = vpop.f32.mrf.mxu0
      %v6241 = vadd.f32 0.0, %v6240
      %v6242 = vpop.f32.mrf.mxu0
      %v6243 = vadd.f32 0.0, %v6242
      %6244 = vmatmul.bf16.gmra.mxu0 %v6075
      %v6245 = vpop.f32.mrf.mxu0
      %v6246 = vadd.f32 0.0, %v6245
      %v6247 = vpop.f32.mrf.mxu0
      %v6248 = vadd.f32 0.0, %v6247
      %6249 = vmatmul.bf16.gmra.mxu0 %v6079
      %v6250 = vpop.f32.mrf.mxu0
      %v6251 = vadd.f32 0.0, %v6250
      %v6252 = vpop.f32.mrf.mxu0
      %v6253 = vadd.f32 0.0, %v6252
      %6254 = vmatmul.bf16.gmra.mxu0 %v6083
      %v6255 = vpop.f32.mrf.mxu0
      %v6256 = vadd.f32 0.0, %v6255
      %v6257 = vpop.f32.mrf.mxu0
      %v6258 = vadd.f32 0.0, %v6257
      %6259 = vmatmul.bf16.gmra.mxu0 %v6087
      %v6260 = vpop.f32.mrf.mxu0
      %v6261 = vadd.f32 0.0, %v6260
      %v6262 = vpop.f32.mrf.mxu0
      %v6263 = vadd.f32 0.0, %v6262
      %6264 = vdwg.mxu0
      %v6265 = vadd.f32 %v5948, %v6166
      %v6266 = vadd.f32 %v5949, %v6168
      %v6267 = vadd.f32 %v5950, %v6171
      %v6268 = vadd.f32 %v5951, %v6173
      %v6269 = vadd.f32 %v5952, %v6176
      %v6270 = vadd.f32 %v5953, %v6178
      %v6271 = vadd.f32 %v5954, %v6181
      %v6272 = vadd.f32 %v5955, %v6183
      %v6273 = vadd.f32 %v5956, %v6186
      %v6274 = vadd.f32 %v5957, %v6188
      %v6275 = vadd.f32 %v5958, %v6191
      %v6276 = vadd.f32 %v5959, %v6193
      %v6277 = vadd.f32 %v5960, %v6196
      %v6278 = vadd.f32 %v5961, %v6198
      %v6279 = vadd.f32 %v5962, %v6201
      %v6280 = vadd.f32 %v5963, %v6203
      %v6281 = vadd.f32 %v5964, %v6206
      %v6282 = vadd.f32 %v5965, %v6208
      %v6283 = vadd.f32 %v5966, %v6211
      %v6284 = vadd.f32 %v5967, %v6213
      %v6285 = vadd.f32 %v5968, %v6216
      %v6286 = vadd.f32 %v5969, %v6218
      %v6287 = vadd.f32 %v5970, %v6221
      %v6288 = vadd.f32 %v5971, %v6223
      %v6289 = vadd.f32 %v5972, %v6226
      %v6290 = vadd.f32 %v5973, %v6228
      %v6291 = vadd.f32 %v5974, %v6231
      %v6292 = vadd.f32 %v5975, %v6233
      %v6293 = vadd.f32 %v5976, %v6236
      %v6294 = vadd.f32 %v5977, %v6238
      %v6295 = vadd.f32 %v5978, %v6241
      %v6296 = vadd.f32 %v5979, %v6243
      %v6297 = vadd.f32 %v5980, %v6246
      %v6298 = vadd.f32 %v5981, %v6248
      %v6299 = vadd.f32 %v5982, %v6251
      %v6300 = vadd.f32 %v5983, %v6253
      %v6301 = vadd.f32 %v5984, %v6256
      %v6302 = vadd.f32 %v5985, %v6258
      %v6303 = vadd.f32 %v5986, %v6261
      %v6304 = vadd.f32 %v5987, %v6263
      %v6305 = vld [vmem:[%s246 + $0x50] sm:$0xff]
      %v6306 = vld [vmem:[%s246 + $0x58] sm:$0xff]
      %v6307 = vld [vmem:[%s246 + $0x60] sm:$0xff]
      %v6308 = vld [vmem:[%s246 + $0x68] sm:$0xff]
      %v6309 = vld [vmem:[%s246 + $0x70] sm:$0xff]
      %v6310 = vld [vmem:[%s246 + $0x78] sm:$0xff]
      %v6311 = vld [vmem:[%s246 + $0x80] sm:$0xff]
      %v6312 = vld [vmem:[%s246 + $0x88] sm:$0xff]
      %v6313 = vld [vmem:[%s246 + $0x90] sm:$0xff]
      %v6314 = vld [vmem:[%s246 + $0x98] sm:$0xff]
      %v6315 = vld [vmem:[%s246 + $0xa0] sm:$0xff]
      %v6316 = vld [vmem:[%s246 + $0xa8] sm:$0xff]
      %v6317 = vld [vmem:[%s246 + $0xb0] sm:$0xff]
      %v6318 = vld [vmem:[%s246 + $0xb8] sm:$0xff]
      %v6319 = vld [vmem:[%s246 + $0xc0] sm:$0xff]
      %v6320 = vld [vmem:[%s246 + $0xc8] sm:$0xff]
      %v6321 = vld [vmem:[%s246 + $0xd0] sm:$0xff]
      %v6322 = vld [vmem:[%s246 + $0xd8] sm:$0xff]
      %v6323 = vld [vmem:[%s246 + $0xe0] sm:$0xff]
      %v6324 = vld [vmem:[%s246 + $0xe8] sm:$0xff]
      %v6325 = vld [vmem:[%s246 + $0xf0] sm:$0xff]
      %v6326 = vld [vmem:[%s246 + $0xf8] sm:$0xff]
      %v6327 = vld [vmem:[%s246 + $0x100] sm:$0xff]
      %v6328 = vld [vmem:[%s246 + $0x108] sm:$0xff]
      %v6329 = vld [vmem:[%s246 + $0x110] sm:$0xff]
      %v6330 = vld [vmem:[%s246 + $0x118] sm:$0xff]
      %v6331 = vld [vmem:[%s246 + $0x120] sm:$0xff]
      %v6332 = vld [vmem:[%s246 + $0x128] sm:$0xff]
      %v6333 = vld [vmem:[%s246 + $0x130] sm:$0xff]
      %v6334 = vld [vmem:[%s246 + $0x138] sm:$0xff]
      %v6335 = vld [vmem:[%s246 + $0x140] sm:$0xff]
      %v6336 = vld [vmem:[%s246 + $0x148] sm:$0xff]
      %v6337 = vld [vmem:[%s246 + $0x150] sm:$0xff]
      %v6338 = vld [vmem:[%s246 + $0x158] sm:$0xff]
      %v6339 = vld [vmem:[%s246 + $0x160] sm:$0xff]
      %v6340 = vld [vmem:[%s246 + $0x168] sm:$0xff]
      %v6341 = vld [vmem:[%s246 + $0x170] sm:$0xff]
      %v6342 = vld [vmem:[%s246 + $0x178] sm:$0xff]
      %v6343 = vld [vmem:[%s246 + $0x180] sm:$0xff]
      %v6344 = vld [vmem:[%s246 + $0x188] sm:$0xff]
      %v6345 = vld [vmem:[%s4] sm:$0x1]
      %v6347 = vperm.slane %v6345, 0
      %v6349 = vadd.f32 %v6265, %v6347
      %v6350 = vadd.f32 %v6266, %v6347
      %v6351 = vadd.f32 %v6267, %v6347
      %v6352 = vadd.f32 %v6268, %v6347
      %v6353 = vadd.f32 %v6269, %v6347
      %v6354 = vadd.f32 %v6270, %v6347
      %v6355 = vadd.f32 %v6271, %v6347
      %v6356 = vadd.f32 %v6272, %v6347
      %v6357 = vadd.f32 %v6273, %v6347
      %v6358 = vadd.f32 %v6274, %v6347
      %v6359 = vadd.f32 %v6275, %v6347
      %v6360 = vadd.f32 %v6276, %v6347
      %v6361 = vadd.f32 %v6277, %v6347
      %v6362 = vadd.f32 %v6278, %v6347
      %v6363 = vadd.f32 %v6279, %v6347
      %v6364 = vadd.f32 %v6280, %v6347
      %v6365 = vadd.f32 %v6281, %v6347
      %v6366 = vadd.f32 %v6282, %v6347
      %v6367 = vadd.f32 %v6283, %v6347
      %v6368 = vadd.f32 %v6284, %v6347
      %v6369 = vadd.f32 %v6285, %v6347
      %v6370 = vadd.f32 %v6286, %v6347
      %v6371 = vadd.f32 %v6287, %v6347
      %v6372 = vadd.f32 %v6288, %v6347
      %v6373 = vadd.f32 %v6289, %v6347
      %v6374 = vadd.f32 %v6290, %v6347
      %v6375 = vadd.f32 %v6291, %v6347
      %v6376 = vadd.f32 %v6292, %v6347
      %v6377 = vadd.f32 %v6293, %v6347
      %v6378 = vadd.f32 %v6294, %v6347
      %v6379 = vadd.f32 %v6295, %v6347
      %v6380 = vadd.f32 %v6296, %v6347
      %v6381 = vadd.f32 %v6297, %v6347
      %v6382 = vadd.f32 %v6298, %v6347
      %v6383 = vadd.f32 %v6299, %v6347
      %v6384 = vadd.f32 %v6300, %v6347
      %v6385 = vadd.f32 %v6301, %v6347
      %v6386 = vadd.f32 %v6302, %v6347
      %v6387 = vadd.f32 %v6303, %v6347
      %v6388 = vadd.f32 %v6304, %v6347
      %v6389 = vadd.f32 %v6349, %v6305
      %v6390 = vadd.f32 %v6350, %v6306
      %v6391 = vadd.f32 %v6351, %v6307
      %v6392 = vadd.f32 %v6352, %v6308
      %v6393 = vadd.f32 %v6353, %v6309
      %v6394 = vadd.f32 %v6354, %v6310
      %v6395 = vadd.f32 %v6355, %v6311
      %v6396 = vadd.f32 %v6356, %v6312
      %v6397 = vadd.f32 %v6357, %v6313
      %v6398 = vadd.f32 %v6358, %v6314
      %v6399 = vadd.f32 %v6359, %v6315
      %v6400 = vadd.f32 %v6360, %v6316
      %v6401 = vadd.f32 %v6361, %v6317
      %v6402 = vadd.f32 %v6362, %v6318
      %v6403 = vadd.f32 %v6363, %v6319
      %v6404 = vadd.f32 %v6364, %v6320
      %v6405 = vadd.f32 %v6365, %v6321
      %v6406 = vadd.f32 %v6366, %v6322
      %v6407 = vadd.f32 %v6367, %v6323
      %v6408 = vadd.f32 %v6368, %v6324
      %v6409 = vadd.f32 %v6369, %v6325
      %v6410 = vadd.f32 %v6370, %v6326
      %v6411 = vadd.f32 %v6371, %v6327
      %v6412 = vadd.f32 %v6372, %v6328
      %v6413 = vadd.f32 %v6373, %v6329
      %v6414 = vadd.f32 %v6374, %v6330
      %v6415 = vadd.f32 %v6375, %v6331
      %v6416 = vadd.f32 %v6376, %v6332
      %v6417 = vadd.f32 %v6377, %v6333
      %v6418 = vadd.f32 %v6378, %v6334
      %v6419 = vadd.f32 %v6379, %v6335
      %v6420 = vadd.f32 %v6380, %v6336
      %v6421 = vadd.f32 %v6381, %v6337
      %v6422 = vadd.f32 %v6382, %v6338
      %v6423 = vadd.f32 %v6383, %v6339
      %v6424 = vadd.f32 %v6384, %v6340
      %v6425 = vadd.f32 %v6385, %v6341
      %v6426 = vadd.f32 %v6386, %v6342
      %v6427 = vadd.f32 %v6387, %v6343
      %v6428 = vadd.f32 %v6388, %v6344
      %v6429 = vmax.f32 %v6389, 0.0
      %v6430 = vmax.f32 %v6390, 0.0
      %v6431 = vmax.f32 %v6391, 0.0
      %v6432 = vmax.f32 %v6392, 0.0
      %v6433 = vmax.f32 %v6393, 0.0
      %v6434 = vmax.f32 %v6394, 0.0
      %v6435 = vmax.f32 %v6395, 0.0
      %v6436 = vmax.f32 %v6396, 0.0
      %v6437 = vmax.f32 %v6397, 0.0
      %v6438 = vmax.f32 %v6398, 0.0
      %v6439 = vmax.f32 %v6399, 0.0
      %v6440 = vmax.f32 %v6400, 0.0
      %v6441 = vmax.f32 %v6401, 0.0
      %v6442 = vmax.f32 %v6402, 0.0
      %v6443 = vmax.f32 %v6403, 0.0
      %v6444 = vmax.f32 %v6404, 0.0
      %v6445 = vmax.f32 %v6405, 0.0
      %v6446 = vmax.f32 %v6406, 0.0
      %v6447 = vmax.f32 %v6407, 0.0
      %v6448 = vmax.f32 %v6408, 0.0
      %v6449 = vmax.f32 %v6409, 0.0
      %v6450 = vmax.f32 %v6410, 0.0
      %v6451 = vmax.f32 %v6411, 0.0
      %v6452 = vmax.f32 %v6412, 0.0
      %v6453 = vmax.f32 %v6413, 0.0
      %v6454 = vmax.f32 %v6414, 0.0
      %v6455 = vmax.f32 %v6415, 0.0
      %v6456 = vmax.f32 %v6416, 0.0
      %v6457 = vmax.f32 %v6417, 0.0
      %v6458 = vmax.f32 %v6418, 0.0
      %v6459 = vmax.f32 %v6419, 0.0
      %v6460 = vmax.f32 %v6420, 0.0
      %v6461 = vmax.f32 %v6421, 0.0
      %v6462 = vmax.f32 %v6422, 0.0
      %v6463 = vmax.f32 %v6423, 0.0
      %v6464 = vmax.f32 %v6424, 0.0
      %v6465 = vmax.f32 %v6425, 0.0
      %v6466 = vmax.f32 %v6426, 0.0
      %v6467 = vmax.f32 %v6427, 0.0
      %v6468 = vmax.f32 %v6428, 0.0
      %6469 = vst [vmem:[%s251] sm:$0xff] %v6429
      %6470 = vst [vmem:[%s251 + $0x8] sm:$0xff] %v6430
      %6471 = vst [vmem:[%s251 + $0x10] sm:$0xff] %v6431
      %6472 = vst [vmem:[%s251 + $0x18] sm:$0xff] %v6432
      %6473 = vst [vmem:[%s251 + $0x20] sm:$0xff] %v6433
      %6474 = vst [vmem:[%s251 + $0x28] sm:$0xff] %v6434
      %6475 = vst [vmem:[%s251 + $0x30] sm:$0xff] %v6435
      %6476 = vst [vmem:[%s251 + $0x38] sm:$0xff] %v6436
      %6477 = vst [vmem:[%s251 + $0x40] sm:$0xff] %v6437
      %6478 = vst [vmem:[%s251 + $0x48] sm:$0xff] %v6438
      %6479 = vst [vmem:[%s251 + $0x50] sm:$0xff] %v6439
      %6480 = vst [vmem:[%s251 + $0x58] sm:$0xff] %v6440
      %6481 = vst [vmem:[%s251 + $0x60] sm:$0xff] %v6441
      %6482 = vst [vmem:[%s251 + $0x68] sm:$0xff] %v6442
      %6483 = vst [vmem:[%s251 + $0x70] sm:$0xff] %v6443
      %6484 = vst [vmem:[%s251 + $0x78] sm:$0xff] %v6444
      %6485 = vst [vmem:[%s251 + $0x80] sm:$0xff] %v6445
      %6486 = vst [vmem:[%s251 + $0x88] sm:$0xff] %v6446
      %6487 = vst [vmem:[%s251 + $0x90] sm:$0xff] %v6447
      %6488 = vst [vmem:[%s251 + $0x98] sm:$0xff] %v6448
      %6489 = vst [vmem:[%s251 + $0xa0] sm:$0xff] %v6449
      %6490 = vst [vmem:[%s251 + $0xa8] sm:$0xff] %v6450
      %6491 = vst [vmem:[%s251 + $0xb0] sm:$0xff] %v6451
      %6492 = vst [vmem:[%s251 + $0xb8] sm:$0xff] %v6452
      %6493 = vst [vmem:[%s251 + $0xc0] sm:$0xff] %v6453
      %6494 = vst [vmem:[%s251 + $0xc8] sm:$0xff] %v6454
      %6495 = vst [vmem:[%s251 + $0xd0] sm:$0xff] %v6455
      %6496 = vst [vmem:[%s251 + $0xd8] sm:$0xff] %v6456
      %6497 = vst [vmem:[%s251 + $0xe0] sm:$0xff] %v6457
      %6498 = vst [vmem:[%s251 + $0xe8] sm:$0xff] %v6458
      %6499 = vst [vmem:[%s251 + $0xf0] sm:$0xff] %v6459
      %6500 = vst [vmem:[%s251 + $0xf8] sm:$0xff] %v6460
      %6501 = vst [vmem:[%s251 + $0x100] sm:$0xff] %v6461
      %6502 = vst [vmem:[%s251 + $0x108] sm:$0xff] %v6462
      %6503 = vst [vmem:[%s251 + $0x110] sm:$0xff] %v6463
      %6504 = vst [vmem:[%s251 + $0x118] sm:$0xff] %v6464
      %6505 = vst [vmem:[%s251 + $0x120] sm:$0xff] %v6465
      %6506 = vst [vmem:[%s251 + $0x128] sm:$0xff] %v6466
      %6507 = vst [vmem:[%s251 + $0x130] sm:$0xff] %v6467
      %6508 = vst [vmem:[%s251 + $0x138] sm:$0xff] %v6468
      %p6509 = scmp.lt.s32.totalorder %s17, 1
      %s6510 = scalar_select %p6509, %s17, 1
      %s6511 = smul.addr %s6510, 40
      %s6512 = smul.addr %s6511, 8
      %s6513 = scalar_lea.vmem %s6, %s6512
      // Predicated region
      $region45: #{basic_block_forward.1} parent=43 // pred_check
        %p6514 = pneg %p166
      $region46: #{basic_block_forward.1} parent=43 // pred_check_branch
        %6516 = sbr.rel (%p6514) target = $region48
      $region47: #{basic_block_forward.1} parent=43 // pred_region
        _
      $region48: #{basic_block_forward.1} parent=43 // pred_fallthru
        _
    $region44: #{basic_block_forward.1} parent=5 // pred_fallthru
      _
    %p6517 = scmp.le.s32.totalorder 2, %s12
    // Predicated region
    $region49: #{basic_block_forward.1} parent=5 // pred_check
      %p6518 = pneg %p6517
    $region50: #{basic_block_forward.1} parent=5 // pred_check_branch
      %6520 = sbr.rel (%p6518) target = $region52
    $region51: #{basic_block_forward.1} parent=5 // pred_region
      %s6521 = ssub.s32 %s12, 2
      // Predicated region
      $region53: #{basic_block_forward.1} parent=51 // pred_check
        %p6522 = pneg %p172
      $region54: #{basic_block_forward.1} parent=51 // pred_check_branch
        %6524 = sbr.rel (%p6522) target = $region56
      $region55: #{basic_block_forward.1} parent=51 // pred_region
        %p6525 = scmp.lt.s32.totalorder %s18, 1
        %s6526 = scalar_select %p6525, %s18, 1
        %s6527 = smul.addr %s6526, 40
        %s6528 = smul.addr %s6527, 8
        %s6529 = scalar_lea.vmem %s6, %s6528
      $region56: #{basic_block_forward.1} parent=51 // pred_fallthru
        _
    $region52: #{basic_block_forward.1} parent=5 // pred_fallthru
      _
  $region6: #{basic_block_forward.1} parent=0 // loop_footer
    %s16 = sadd.s32 1, %s12
  $region7: #{basic_block_forward.1} parent=0 // loop_footer_branch
    %11 = sbr.rel target = $region3
  $region8: #{basic_block_forward.1} parent=0 // loop_exit
    _

</llo_original>
